<compile_context>
chip_gen: v7x
topology: tpu7x:2x2x1
jax: 0.10.0
libtpu: 0.0.40
codegen_flags: <defaults>
</compile_context>

<pallas_src>
import functools

import jax
import jax.numpy as jnp
import numpy as np
from jax.experimental import pallas as pl
from jax.experimental.pallas import tpu as pltpu

LN_EPS = 1e-5


def _segment_avg_matrix(hidden_dim: int) -> jnp.ndarray:
    """(4H, 4H) block-diagonal matrix of 1/H: z @ A = per-gate mean, broadcast per lane."""
    seg = jnp.arange(4 * hidden_dim) // hidden_dim
    return (seg[:, None] == seg[None, :]).astype(jnp.float32) / float(hidden_dim)


def _pick_batch_tile(batch: int, seq_len: int, input_dim: int, hidden_dim: int) -> int:
    """Largest batch tile (multiple of 8, dividing B) under a VMEM budget; prefer >= 2 tiles
    so the 'parallel' batch-tile grid axis can shard across v7x's two TensorCores."""
    if batch <= 8 or batch % 8 != 0:
        return batch
    gate_w = 4 * hidden_dim
    # Rough per-batch-row VMEM bytes: x block (x2 double-buffered) + xg scratch +
    # lane-padded h-sequence scratch + output block (x2).
    bytes_per_row = 4 * seq_len * (2 * input_dim + gate_w + max(hidden_dim, 128) + 2)
    budget = 24 << 20                      # headroom under the 32 MiB scoped default (v7x)
    cap = max(8, min(256, budget // max(bytes_per_row, 1)))
    cap -= cap % 8
    divisors = [tb for tb in range(8, min(batch, cap) + 1, 8) if batch % tb == 0]
    if not divisors:
        return batch
    two_plus = [tb for tb in divisors if batch // tb >= 2]
    return max(two_plus) if two_plus else max(divisors)


def _make_fused_kernel(temperature: float, return_logits: bool, unroll: int):
    inv_temp = 1.0 / float(temperature)

    def kernel(xt_ref, wxc_ref, bxc_ref, gx_ref, bbx_ref,
               whc_ref, bhc_ref, gh_ref, bbh_ref, avg_ref,
               fcw_ref, fcb_ref, out_ref, xg_sc, hseq_sc):
        T, TB, D = xt_ref.shape
        G = avg_ref.shape[0]               # 4H (gates fused along lanes)
        H = whc_ref.shape[0]

        # ---- Phase A (non-recurrent): input projection + per-gate LayerNorm for all T.
        # One matmul yields both z and the per-gate mean ([Wx | Wx@A] packed along lanes).
        x2 = xt_ref[...].reshape(T * TB, D)
        zx_full = (jnp.dot(x2, wxc_ref[...], preferred_element_type=jnp.float32)
                   + bxc_ref[...])                               # (T*TB, 8H)
        zx, mux = zx_full[:, :G], zx_full[:, G:]
        zcx = zx - mux
        varx = jnp.dot(zcx * zcx, avg_ref[...], preferred_element_type=jnp.float32)
        lnx = zcx * jax.lax.rsqrt(varx + LN_EPS) * gx_ref[...] + bbx_ref[...]
        xg_sc[...] = lnx.reshape(T, TB, G)                       # single dense block store

        # ---- Phase B: the serial recurrence.  Per step: 2 dependent MXU passes
        # ([Wh | Wh@A] folds the mean) + 3 EUP passes (1 sigmoid over f/i/o, 2 tanh).
        def step(t, carry):
            h_prev, c_prev = carry
            xg_t = xg_sc[t]                                      # (TB, 4H)
            hz_full = (jnp.dot(h_prev, whc_ref[...],
                               preferred_element_type=jnp.float32) + bhc_ref[...])
            hz, muh = hz_full[:, :G], hz_full[:, G:]
            zch = hz - muh
            varh = jnp.dot(zch * zch, avg_ref[...],
                           preferred_element_type=jnp.float32)
            hg = zch * jax.lax.rsqrt(varh + LN_EPS) * gh_ref[...] + bbh_ref[...]
            g = xg_t + hg                                        # gate order [f, i, o, c_hat]
            fio = jax.nn.sigmoid(g[:, :3 * H])                   # one EUP pass, 3H lanes
            f_t = fio[:, 0 * H:1 * H]
            i_t = fio[:, 1 * H:2 * H]
            o_t = fio[:, 2 * H:3 * H]
            c_hat = jnp.tanh(g[:, 3 * H:4 * H])
            c_new = f_t * c_prev + i_t * c_hat
            h_new = o_t * jnp.tanh(c_new)
            hseq_sc[t] = h_new
            return h_new, c_new

        h0 = jnp.zeros((TB, H), jnp.float32)
        c0 = jnp.zeros((TB, H), jnp.float32)
        jax.lax.fori_loop(0, T, step, (h0, c0), unroll=min(unroll, T))

        # ---- fc head + temperature + sigmoid once for all T; lane-dense (TB, T) store.
        hs = hseq_sc[...]                                        # (T, TB, H)
        w_row = fcw_ref[...].reshape(1, 1, H)
        logits = jnp.sum(hs * w_row, axis=-1) + fcb_ref[...]     # (T, TB)
        logits = logits * inv_temp
        vals = logits if return_logits else jax.nn.sigmoid(logits)
        out_ref[0] = vals.T                                      # (TB, T): T on the lane axis

    return kernel


@functools.partial(jax.jit, static_argnames=("temperature", "return_logits"))
def combined_video_rnn_forward(x, params, temperature=1.0, return_logits=False):
    """x: (B, T, D) float32.  Returns (B, T, 1) = sigmoid(fc(LN-LSTM(x)) / temperature)."""
    B, T, D = x.shape
    H = params["wh"].shape[0]
    G = 4 * H
    avg_mat = _segment_avg_matrix(H)

    # Fold the per-gate mean into the gate matmuls: [W | W @ A], [b | b @ A] along lanes.
    wx_cat = jnp.concatenate([params["wx"], params["wx"] @ avg_mat], axis=1)  # (D, 8H)
    bx_cat = jnp.concatenate([params["bx"], params["bx"] @ avg_mat], axis=1)  # (1, 8H)
    wh_cat = jnp.concatenate([params["wh"], params["wh"] @ avg_mat], axis=1)  # (H, 8H)
    bh_cat = jnp.concatenate([params["bh"], params["bh"] @ avg_mat], axis=1)  # (1, 8H)

    TB = _pick_batch_tile(B, T, D, H)
    nb = B // TB

    # Time-major x so the in-kernel xg scratch is written with one dense block store and
    # read with plain leading-axis indexing inside the recurrence.
    x_t = jnp.transpose(x, (1, 0, 2))                                         # (T, B, D)

    kernel = _make_fused_kernel(float(temperature), bool(return_logits), unroll=8)
    out3 = pl.pallas_call(
        kernel,
        out_shape=jax.ShapeDtypeStruct((nb, TB, T), jnp.float32),
        grid_spec=pltpu.PrefetchScalarGridSpec(
            num_scalar_prefetch=0,
            grid=(nb,),
            in_specs=[
                pl.BlockSpec((T, TB, D), lambda b: (0, b, 0)),    # x, time-major batch tile
                pl.BlockSpec((D, 2 * G), lambda b: (0, 0)),       # [Wx | Wx@A]
                pl.BlockSpec((1, 2 * G), lambda b: (0, 0)),       # [bx | bx@A]
                pl.BlockSpec((1, G), lambda b: (0, 0)),           # gamma_x
                pl.BlockSpec((1, G), lambda b: (0, 0)),           # beta_x
                pl.BlockSpec((H, 2 * G), lambda b: (0, 0)),       # [Wh | Wh@A]
                pl.BlockSpec((1, 2 * G), lambda b: (0, 0)),       # [bh | bh@A]
                pl.BlockSpec((1, G), lambda b: (0, 0)),           # gamma_h
                pl.BlockSpec((1, G), lambda b: (0, 0)),           # beta_h
                pl.BlockSpec((G, G), lambda b: (0, 0)),           # block-diag 1/H avg matrix
                pl.BlockSpec((1, H), lambda b: (0, 0)),           # fc weight (row)
                pl.BlockSpec((1, 1), lambda b: (0, 0)),           # fc bias
            ],
            out_specs=pl.BlockSpec((1, TB, T), lambda b: (b, 0, 0)),
            scratch_shapes=[
                pltpu.VMEM((T, TB, G), jnp.float32),              # LN'ed x gates, time-major
                pltpu.VMEM((T, TB, H), jnp.float32),              # h sequence for fc head
            ],
        ),
        compiler_params=pltpu.CompilerParams(dimension_semantics=("parallel",)),
    )(x_t, wx_cat, bx_cat, params["gx"], params["bbx"],
      wh_cat, bh_cat, params["gh"], params["bbh"], avg_mat,
      params["fcw"], params["fcb"])

    # (nb, TB, T) -> (B, T, 1): pure reshape, no transpose needed (output is lane-dense).
    return out3.reshape(B, T)[:, :, None]


def init_params(key, input_dim, hidden_dim):
    """Fused-gate parameters.  Gate order along the 4H axis: [f, i, o, c_hat].
    Linear weights ~ U(-1/sqrt(fan_in), 1/sqrt(fan_in)) like PyTorch; LN gamma=1, beta=0."""
    ks = jax.random.split(key, 6)
    lim_w = 1.0 / np.sqrt(input_dim)
    lim_u = 1.0 / np.sqrt(hidden_dim)
    G = 4 * hidden_dim
    return {
        "wx": jax.random.uniform(ks[0], (input_dim, G), jnp.float32, -lim_w, lim_w),
        "bx": jax.random.uniform(ks[1], (1, G), jnp.float32, -lim_w, lim_w),
        "gx": jnp.ones((1, G), jnp.float32),
        "bbx": jnp.zeros((1, G), jnp.float32),
        "wh": jax.random.uniform(ks[2], (hidden_dim, G), jnp.float32, -lim_u, lim_u),
        "bh": jax.random.uniform(ks[3], (1, G), jnp.float32, -lim_u, lim_u),
        "gh": jnp.ones((1, G), jnp.float32),
        "bbh": jnp.zeros((1, G), jnp.float32),
        "fcw": jax.random.uniform(ks[4], (1, hidden_dim), jnp.float32, -lim_u, lim_u),
        "fcb": jax.random.uniform(ks[5], (1, 1), jnp.float32, -lim_u, lim_u),
    }


def reference_forward(x, p, temperature=1.0, return_logits=False):
    """Pure-JAX reference of CombinedVideoRNN (layer_norm=True, ln_type='after', eval)."""
    B, T, D = x.shape
    H = p["wh"].shape[0]

    def ln(z, gamma, beta):
        mu = jnp.mean(z, axis=-1, keepdims=True)
        var = jnp.mean((z - mu) ** 2, axis=-1, keepdims=True)
        return (z - mu) * jax.lax.rsqrt(var + LN_EPS) * gamma + beta

    h = jnp.zeros((B, H), jnp.float32)
    c = jnp.zeros((B, H), jnp.float32)
    outs = []
    for t in range(T):
        xt = x[:, t]
        gates = []
        for g in range(4):
            sl = slice(g * H, (g + 1) * H)
            xg = ln(xt @ p["wx"][:, sl] + p["bx"][:, sl], p["gx"][:, sl], p["bbx"][:, sl])
            hg = ln(h @ p["wh"][:, sl] + p["bh"][:, sl], p["gh"][:, sl], p["bbh"][:, sl])
            gates.append(xg + hg)
        f = jax.nn.sigmoid(gates[0])
        i = jax.nn.sigmoid(gates[1])
        o = jax.nn.sigmoid(gates[2])
        ch = jnp.tanh(gates[3])
        c = f * c + i * ch
        h = o * jnp.tanh(c)
        outs.append(h)
    r = jnp.stack(outs, axis=1)                                   # (B, T, H)
    out = (r @ p["fcw"].T + p["fcb"]) / temperature               # (B, T, 1)
    if not return_logits:
        out = jax.nn.sigmoid(out)
    return out


if __name__ == "__main__":
    # B=8 fills the sublanes, H=32 -> 4H=128 fills the lanes.
    B, T, D, H = 8, 8, 16, 32
    temperature = 1.0
    return_logits = False

    key = jax.random.PRNGKey(0)
    kx, kp = jax.random.split(key)
    x = jax.random.normal(kx, (B, T, D), jnp.float32)
    params = init_params(kp, D, H)

    out = combined_video_rnn_forward(x, params, temperature=temperature,
                                     return_logits=return_logits)
    out = jax.block_until_ready(out)

    ref = reference_forward(x, params, temperature=temperature,
                            return_logits=return_logits)
    np.testing.assert_allclose(np.asarray(out), np.asarray(ref), rtol=2e-3, atol=2e-4)
    assert out.shape == (B, T, 1)
    print("KERNEL_OK")
</pallas_src>

<mosaic_0001>
module attributes {stable_mosaic.version = 11 : i64} {
  func.func @kernel(%arg0: i32, %arg1: memref<8x8x16xf32, #tpu.memory_space<vmem>>, %arg2: memref<16x256xf32, #tpu.memory_space<vmem>>, %arg3: memref<1x256xf32, #tpu.memory_space<vmem>>, %arg4: memref<1x128xf32, #tpu.memory_space<vmem>>, %arg5: memref<1x128xf32, #tpu.memory_space<vmem>>, %arg6: memref<32x256xf32, #tpu.memory_space<vmem>>, %arg7: memref<1x256xf32, #tpu.memory_space<vmem>>, %arg8: memref<1x128xf32, #tpu.memory_space<vmem>>, %arg9: memref<1x128xf32, #tpu.memory_space<vmem>>, %arg10: memref<128x128xf32, #tpu.memory_space<vmem>>, %arg11: memref<1x32xf32, #tpu.memory_space<vmem>>, %arg12: memref<1x1xf32, #tpu.memory_space<vmem>>, %arg13: memref<1x8x8xf32, #tpu.memory_space<vmem>>, %arg14: memref<8x8x128xf32, #tpu.memory_space<vmem>>, %arg15: memref<8x8x32xf32, #tpu.memory_space<vmem>>) attributes {dimension_semantics = [#tpu.dimension_semantics<parallel>], iteration_bounds = array<i64: 1>, scalar_prefetch = 0 : i64, scratch_operands = 2 : i64, tpu.core_type = #tpu.core_type<tc>, window_params = [{transform_indices = @transform_0, window_bounds = array<i64: 8, 8, 16>}, {pipeline_mode = #tpu.pipeline_mode<synchronous>, transform_indices = @transform_1, window_bounds = array<i64: 16, 256>}, {pipeline_mode = #tpu.pipeline_mode<synchronous>, transform_indices = @transform_2, window_bounds = array<i64: 1, 256>}, {pipeline_mode = #tpu.pipeline_mode<synchronous>, transform_indices = @transform_3, window_bounds = array<i64: 1, 128>}, {pipeline_mode = #tpu.pipeline_mode<synchronous>, transform_indices = @transform_4, window_bounds = array<i64: 1, 128>}, {pipeline_mode = #tpu.pipeline_mode<synchronous>, transform_indices = @transform_5, window_bounds = array<i64: 32, 256>}, {pipeline_mode = #tpu.pipeline_mode<synchronous>, transform_indices = @transform_6, window_bounds = array<i64: 1, 256>}, {pipeline_mode = #tpu.pipeline_mode<synchronous>, transform_indices = @transform_7, window_bounds = array<i64: 1, 128>}, {pipeline_mode = #tpu.pipeline_mode<synchronous>, transform_indices = @transform_8, window_bounds = array<i64: 1, 128>}, {pipeline_mode = #tpu.pipeline_mode<synchronous>, transform_indices = @transform_9, window_bounds = array<i64: 128, 128>}, {pipeline_mode = #tpu.pipeline_mode<synchronous>, transform_indices = @transform_10, window_bounds = array<i64: 1, 32>}, {pipeline_mode = #tpu.pipeline_mode<synchronous>, transform_indices = @transform_11, window_bounds = array<i64: 1, 1>}, {transform_indices = @transform_12, window_bounds = array<i64: 1, 8, 8>}]} {
    %c0 = arith.constant 0 : index
    %c0_0 = arith.constant 0 : index
    %c0_1 = arith.constant 0 : index
    %0 = vector.load %arg1[%c0, %c0_0, %c0_1] : memref<8x8x16xf32, #tpu.memory_space<vmem>>, vector<8x8x16xf32>
    %1 = vector.shape_cast %0 : vector<8x8x16xf32> to vector<64x16xf32>
    %c0_2 = arith.constant 0 : index
    %c0_3 = arith.constant 0 : index
    %2 = vector.load %arg2[%c0_2, %c0_3] : memref<16x256xf32, #tpu.memory_space<vmem>>, vector<16x256xf32>
    %cst = arith.constant dense<0.000000e+00> : vector<64x256xf32>
    %3 = tpu.matmul %1, %2, %cst {dimension_numbers = #tpu.dot_dimension_numbers<[1], [0], [0], [1], [0, 0, 1, 1], [], []>} : vector<64x16xf32>, vector<16x256xf32>, vector<64x256xf32> -> vector<64x256xf32>
    %c0_4 = arith.constant 0 : index
    %c0_5 = arith.constant 0 : index
    %4 = vector.load %arg3[%c0_4, %c0_5] : memref<1x256xf32, #tpu.memory_space<vmem>>, vector<1x256xf32>
    %5 = vector.broadcast %4 : vector<1x256xf32> to vector<64x256xf32>
    %6 = arith.addf %3, %5 : vector<64x256xf32>
    %7 = vector.extract_strided_slice %6 {offsets = [0, 0], sizes = [64, 128], strides = [1, 1]} : vector<64x256xf32> to vector<64x128xf32>
    %8 = vector.extract_strided_slice %6 {offsets = [0, 128], sizes = [64, 128], strides = [1, 1]} : vector<64x256xf32> to vector<64x128xf32>
    %9 = arith.subf %7, %8 : vector<64x128xf32>
    %10 = arith.mulf %9, %9 : vector<64x128xf32>
    %c0_6 = arith.constant 0 : index
    %c0_7 = arith.constant 0 : index
    %11 = vector.load %arg10[%c0_6, %c0_7] : memref<128x128xf32, #tpu.memory_space<vmem>>, vector<128x128xf32>
    %cst_8 = arith.constant dense<0.000000e+00> : vector<64x128xf32>
    %12 = tpu.matmul %10, %11, %cst_8 {dimension_numbers = #tpu.dot_dimension_numbers<[1], [0], [0], [1], [0, 0, 1, 1], [], []>} : vector<64x128xf32>, vector<128x128xf32>, vector<64x128xf32> -> vector<64x128xf32>
    %cst_9 = arith.constant 9.99999974E-6 : f32
    %13 = vector.broadcast %cst_9 : f32 to vector<64x128xf32>
    %14 = arith.addf %12, %13 : vector<64x128xf32>
    %15 = math.rsqrt %14 : vector<64x128xf32>
    %16 = arith.mulf %9, %15 : vector<64x128xf32>
    %c0_10 = arith.constant 0 : index
    %c0_11 = arith.constant 0 : index
    %17 = vector.load %arg4[%c0_10, %c0_11] : memref<1x128xf32, #tpu.memory_space<vmem>>, vector<1x128xf32>
    %18 = vector.broadcast %17 : vector<1x128xf32> to vector<64x128xf32>
    %19 = arith.mulf %16, %18 : vector<64x128xf32>
    %c0_12 = arith.constant 0 : index
    %c0_13 = arith.constant 0 : index
    %20 = vector.load %arg5[%c0_12, %c0_13] : memref<1x128xf32, #tpu.memory_space<vmem>>, vector<1x128xf32>
    %21 = vector.broadcast %20 : vector<1x128xf32> to vector<64x128xf32>
    %22 = arith.addf %19, %21 : vector<64x128xf32>
    %23 = vector.shape_cast %22 : vector<64x128xf32> to vector<8x8x128xf32>
    %c0_14 = arith.constant 0 : index
    %c0_15 = arith.constant 0 : index
    %c0_16 = arith.constant 0 : index
    %24 = vector.load %arg14[%c0_14, %c0_15, %c0_16] : memref<8x8x128xf32, #tpu.memory_space<vmem>>, vector<8x8x128xf32>
    tpu.vector_store %arg14[%c0_14, %c0_15, %c0_16], %23 {strides = array<i32>} : memref<8x8x128xf32, #tpu.memory_space<vmem>>, vector<8x8x128xf32>,
    %cst_17 = arith.constant 0.000000e+00 : f32
    %25 = vector.broadcast %cst_17 : f32 to vector<8x32xf32>
    %cst_18 = arith.constant 0.000000e+00 : f32
    %26 = vector.broadcast %cst_18 : f32 to vector<8x32xf32>
    %c0_i32 = arith.constant 0 : i32
    %27 = arith.index_cast %c0_i32 : i32 to index
    %c0_19 = arith.constant 0 : index
    %c0_20 = arith.constant 0 : index
    %28 = vector.load %arg14[%27, %c0_19, %c0_20] : memref<8x8x128xf32, #tpu.memory_space<vmem>>, vector<1x8x128xf32>
    %29 = vector.shape_cast %28 : vector<1x8x128xf32> to vector<8x128xf32>
    %c0_21 = arith.constant 0 : index
    %c0_22 = arith.constant 0 : index
    %30 = vector.load %arg6[%c0_21, %c0_22] : memref<32x256xf32, #tpu.memory_space<vmem>>, vector<32x256xf32>
    %cst_23 = arith.constant dense<0.000000e+00> : vector<8x256xf32>
    %31 = tpu.matmul %25, %30, %cst_23 {dimension_numbers = #tpu.dot_dimension_numbers<[1], [0], [0], [1], [0, 0, 1, 1], [], []>} : vector<8x32xf32>, vector<32x256xf32>, vector<8x256xf32> -> vector<8x256xf32>
    %c0_24 = arith.constant 0 : index
    %c0_25 = arith.constant 0 : index
    %32 = vector.load %arg7[%c0_24, %c0_25] : memref<1x256xf32, #tpu.memory_space<vmem>>, vector<1x256xf32>
    %33 = vector.broadcast %32 : vector<1x256xf32> to vector<8x256xf32>
    %34 = arith.addf %31, %33 : vector<8x256xf32>
    %35 = vector.extract_strided_slice %34 {offsets = [0, 0], sizes = [8, 128], strides = [1, 1]} : vector<8x256xf32> to vector<8x128xf32>
    %36 = vector.extract_strided_slice %34 {offsets = [0, 128], sizes = [8, 128], strides = [1, 1]} : vector<8x256xf32> to vector<8x128xf32>
    %37 = arith.subf %35, %36 : vector<8x128xf32>
    %38 = arith.mulf %37, %37 : vector<8x128xf32>
    %c0_26 = arith.constant 0 : index
    %c0_27 = arith.constant 0 : index
    %39 = vector.load %arg10[%c0_26, %c0_27] : memref<128x128xf32, #tpu.memory_space<vmem>>, vector<128x128xf32>
    %cst_28 = arith.constant dense<0.000000e+00> : vector<8x128xf32>
    %40 = tpu.matmul %38, %39, %cst_28 {dimension_numbers = #tpu.dot_dimension_numbers<[1], [0], [0], [1], [0, 0, 1, 1], [], []>} : vector<8x128xf32>, vector<128x128xf32>, vector<8x128xf32> -> vector<8x128xf32>
    %cst_29 = arith.constant 9.99999974E-6 : f32
    %41 = vector.broadcast %cst_29 : f32 to vector<8x128xf32>
    %42 = arith.addf %40, %41 : vector<8x128xf32>
    %43 = math.rsqrt %42 : vector<8x128xf32>
    %44 = arith.mulf %37, %43 : vector<8x128xf32>
    %c0_30 = arith.constant 0 : index
    %c0_31 = arith.constant 0 : index
    %45 = vector.load %arg8[%c0_30, %c0_31] : memref<1x128xf32, #tpu.memory_space<vmem>>, vector<1x128xf32>
    %46 = vector.broadcast %45 : vector<1x128xf32> to vector<8x128xf32>
    %47 = arith.mulf %44, %46 : vector<8x128xf32>
    %c0_32 = arith.constant 0 : index
    %c0_33 = arith.constant 0 : index
    %48 = vector.load %arg9[%c0_32, %c0_33] : memref<1x128xf32, #tpu.memory_space<vmem>>, vector<1x128xf32>
    %49 = vector.broadcast %48 : vector<1x128xf32> to vector<8x128xf32>
    %50 = arith.addf %47, %49 : vector<8x128xf32>
    %51 = arith.addf %29, %50 : vector<8x128xf32>
    %52 = vector.extract_strided_slice %51 {offsets = [0, 0], sizes = [8, 96], strides = [1, 1]} : vector<8x128xf32> to vector<8x96xf32>
    %53 = arith.negf %52 : vector<8x96xf32>
    %54 = math.exp %53 : vector<8x96xf32>
    %cst_34 = arith.constant 1.000000e+00 : f32
    %55 = vector.broadcast %cst_34 : f32 to vector<8x96xf32>
    %56 = arith.addf %55, %54 : vector<8x96xf32>
    %57 = arith.divf %55, %56 : vector<8x96xf32>
    %58 = vector.extract_strided_slice %57 {offsets = [0, 0], sizes = [8, 32], strides = [1, 1]} : vector<8x96xf32> to vector<8x32xf32>
    %59 = vector.extract_strided_slice %57 {offsets = [0, 32], sizes = [8, 32], strides = [1, 1]} : vector<8x96xf32> to vector<8x32xf32>
    %60 = vector.extract_strided_slice %57 {offsets = [0, 64], sizes = [8, 32], strides = [1, 1]} : vector<8x96xf32> to vector<8x32xf32>
    %61 = vector.extract_strided_slice %51 {offsets = [0, 96], sizes = [8, 32], strides = [1, 1]} : vector<8x128xf32> to vector<8x32xf32>
    %62 = math.tanh %61 : vector<8x32xf32>
    %63 = arith.mulf %58, %26 : vector<8x32xf32>
    %64 = arith.mulf %59, %62 : vector<8x32xf32>
    %65 = arith.addf %63, %64 : vector<8x32xf32>
    %66 = math.tanh %65 : vector<8x32xf32>
    %67 = arith.mulf %60, %66 : vector<8x32xf32>
    %68 = arith.index_cast %c0_i32 : i32 to index
    %c0_35 = arith.constant 0 : index
    %c0_36 = arith.constant 0 : index
    %69 = vector.load %arg15[%68, %c0_35, %c0_36] : memref<8x8x32xf32, #tpu.memory_space<vmem>>, vector<1x8x32xf32>
    %70 = vector.shape_cast %69 : vector<1x8x32xf32> to vector<8x32xf32>
    %71 = vector.shape_cast %67 : vector<8x32xf32> to vector<1x8x32xf32>
    tpu.vector_store %arg15[%68, %c0_35, %c0_36], %71 {strides = array<i32>} : memref<8x8x32xf32, #tpu.memory_space<vmem>>, vector<1x8x32xf32>,
    %c1_i32 = arith.constant 1 : i32
    %72 = arith.index_cast %c1_i32 : i32 to index
    %c0_37 = arith.constant 0 : index
    %c0_38 = arith.constant 0 : index
    %73 = vector.load %arg14[%72, %c0_37, %c0_38] : memref<8x8x128xf32, #tpu.memory_space<vmem>>, vector<1x8x128xf32>
    %74 = vector.shape_cast %73 : vector<1x8x128xf32> to vector<8x128xf32>
    %c0_39 = arith.constant 0 : index
    %c0_40 = arith.constant 0 : index
    %75 = vector.load %arg6[%c0_39, %c0_40] : memref<32x256xf32, #tpu.memory_space<vmem>>, vector<32x256xf32>
    %cst_41 = arith.constant dense<0.000000e+00> : vector<8x256xf32>
    %76 = tpu.matmul %67, %75, %cst_41 {dimension_numbers = #tpu.dot_dimension_numbers<[1], [0], [0], [1], [0, 0, 1, 1], [], []>} : vector<8x32xf32>, vector<32x256xf32>, vector<8x256xf32> -> vector<8x256xf32>
    %c0_42 = arith.constant 0 : index
    %c0_43 = arith.constant 0 : index
    %77 = vector.load %arg7[%c0_42, %c0_43] : memref<1x256xf32, #tpu.memory_space<vmem>>, vector<1x256xf32>
    %78 = vector.broadcast %77 : vector<1x256xf32> to vector<8x256xf32>
    %79 = arith.addf %76, %78 : vector<8x256xf32>
    %80 = vector.extract_strided_slice %79 {offsets = [0, 0], sizes = [8, 128], strides = [1, 1]} : vector<8x256xf32> to vector<8x128xf32>
    %81 = vector.extract_strided_slice %79 {offsets = [0, 128], sizes = [8, 128], strides = [1, 1]} : vector<8x256xf32> to vector<8x128xf32>
    %82 = arith.subf %80, %81 : vector<8x128xf32>
    %83 = arith.mulf %82, %82 : vector<8x128xf32>
    %c0_44 = arith.constant 0 : index
    %c0_45 = arith.constant 0 : index
    %84 = vector.load %arg10[%c0_44, %c0_45] : memref<128x128xf32, #tpu.memory_space<vmem>>, vector<128x128xf32>
    %cst_46 = arith.constant dense<0.000000e+00> : vector<8x128xf32>
    %85 = tpu.matmul %83, %84, %cst_46 {dimension_numbers = #tpu.dot_dimension_numbers<[1], [0], [0], [1], [0, 0, 1, 1], [], []>} : vector<8x128xf32>, vector<128x128xf32>, vector<8x128xf32> -> vector<8x128xf32>
    %cst_47 = arith.constant 9.99999974E-6 : f32
    %86 = vector.broadcast %cst_47 : f32 to vector<8x128xf32>
    %87 = arith.addf %85, %86 : vector<8x128xf32>
    %88 = math.rsqrt %87 : vector<8x128xf32>
    %89 = arith.mulf %82, %88 : vector<8x128xf32>
    %c0_48 = arith.constant 0 : index
    %c0_49 = arith.constant 0 : index
    %90 = vector.load %arg8[%c0_48, %c0_49] : memref<1x128xf32, #tpu.memory_space<vmem>>, vector<1x128xf32>
    %91 = vector.broadcast %90 : vector<1x128xf32> to vector<8x128xf32>
    %92 = arith.mulf %89, %91 : vector<8x128xf32>
    %c0_50 = arith.constant 0 : index
    %c0_51 = arith.constant 0 : index
    %93 = vector.load %arg9[%c0_50, %c0_51] : memref<1x128xf32, #tpu.memory_space<vmem>>, vector<1x128xf32>
    %94 = vector.broadcast %93 : vector<1x128xf32> to vector<8x128xf32>
    %95 = arith.addf %92, %94 : vector<8x128xf32>
    %96 = arith.addf %74, %95 : vector<8x128xf32>
    %97 = vector.extract_strided_slice %96 {offsets = [0, 0], sizes = [8, 96], strides = [1, 1]} : vector<8x128xf32> to vector<8x96xf32>
    %98 = arith.negf %97 : vector<8x96xf32>
    %99 = math.exp %98 : vector<8x96xf32>
    %cst_52 = arith.constant 1.000000e+00 : f32
    %100 = vector.broadcast %cst_52 : f32 to vector<8x96xf32>
    %101 = arith.addf %100, %99 : vector<8x96xf32>
    %102 = arith.divf %100, %101 : vector<8x96xf32>
    %103 = vector.extract_strided_slice %102 {offsets = [0, 0], sizes = [8, 32], strides = [1, 1]} : vector<8x96xf32> to vector<8x32xf32>
    %104 = vector.extract_strided_slice %102 {offsets = [0, 32], sizes = [8, 32], strides = [1, 1]} : vector<8x96xf32> to vector<8x32xf32>
    %105 = vector.extract_strided_slice %102 {offsets = [0, 64], sizes = [8, 32], strides = [1, 1]} : vector<8x96xf32> to vector<8x32xf32>
    %106 = vector.extract_strided_slice %96 {offsets = [0, 96], sizes = [8, 32], strides = [1, 1]} : vector<8x128xf32> to vector<8x32xf32>
    %107 = math.tanh %106 : vector<8x32xf32>
    %108 = arith.mulf %103, %65 : vector<8x32xf32>
    %109 = arith.mulf %104, %107 : vector<8x32xf32>
    %110 = arith.addf %108, %109 : vector<8x32xf32>
    %111 = math.tanh %110 : vector<8x32xf32>
    %112 = arith.mulf %105, %111 : vector<8x32xf32>
    %113 = arith.index_cast %c1_i32 : i32 to index
    %c0_53 = arith.constant 0 : index
    %c0_54 = arith.constant 0 : index
    %114 = vector.load %arg15[%113, %c0_53, %c0_54] : memref<8x8x32xf32, #tpu.memory_space<vmem>>, vector<1x8x32xf32>
    %115 = vector.shape_cast %114 : vector<1x8x32xf32> to vector<8x32xf32>
    %116 = vector.shape_cast %112 : vector<8x32xf32> to vector<1x8x32xf32>
    tpu.vector_store %arg15[%113, %c0_53, %c0_54], %116 {strides = array<i32>} : memref<8x8x32xf32, #tpu.memory_space<vmem>>, vector<1x8x32xf32>,
    %c2_i32 = arith.constant 2 : i32
    %117 = arith.index_cast %c2_i32 : i32 to index
    %c0_55 = arith.constant 0 : index
    %c0_56 = arith.constant 0 : index
    %118 = vector.load %arg14[%117, %c0_55, %c0_56] : memref<8x8x128xf32, #tpu.memory_space<vmem>>, vector<1x8x128xf32>
    %119 = vector.shape_cast %118 : vector<1x8x128xf32> to vector<8x128xf32>
    %c0_57 = arith.constant 0 : index
    %c0_58 = arith.constant 0 : index
    %120 = vector.load %arg6[%c0_57, %c0_58] : memref<32x256xf32, #tpu.memory_space<vmem>>, vector<32x256xf32>
    %cst_59 = arith.constant dense<0.000000e+00> : vector<8x256xf32>
    %121 = tpu.matmul %112, %120, %cst_59 {dimension_numbers = #tpu.dot_dimension_numbers<[1], [0], [0], [1], [0, 0, 1, 1], [], []>} : vector<8x32xf32>, vector<32x256xf32>, vector<8x256xf32> -> vector<8x256xf32>
    %c0_60 = arith.constant 0 : index
    %c0_61 = arith.constant 0 : index
    %122 = vector.load %arg7[%c0_60, %c0_61] : memref<1x256xf32, #tpu.memory_space<vmem>>, vector<1x256xf32>
    %123 = vector.broadcast %122 : vector<1x256xf32> to vector<8x256xf32>
    %124 = arith.addf %121, %123 : vector<8x256xf32>
    %125 = vector.extract_strided_slice %124 {offsets = [0, 0], sizes = [8, 128], strides = [1, 1]} : vector<8x256xf32> to vector<8x128xf32>
    %126 = vector.extract_strided_slice %124 {offsets = [0, 128], sizes = [8, 128], strides = [1, 1]} : vector<8x256xf32> to vector<8x128xf32>
    %127 = arith.subf %125, %126 : vector<8x128xf32>
    %128 = arith.mulf %127, %127 : vector<8x128xf32>
    %c0_62 = arith.constant 0 : index
    %c0_63 = arith.constant 0 : index
    %129 = vector.load %arg10[%c0_62, %c0_63] : memref<128x128xf32, #tpu.memory_space<vmem>>, vector<128x128xf32>
    %cst_64 = arith.constant dense<0.000000e+00> : vector<8x128xf32>
    %130 = tpu.matmul %128, %129, %cst_64 {dimension_numbers = #tpu.dot_dimension_numbers<[1], [0], [0], [1], [0, 0, 1, 1], [], []>} : vector<8x128xf32>, vector<128x128xf32>, vector<8x128xf32> -> vector<8x128xf32>
    %cst_65 = arith.constant 9.99999974E-6 : f32
    %131 = vector.broadcast %cst_65 : f32 to vector<8x128xf32>
    %132 = arith.addf %130, %131 : vector<8x128xf32>
    %133 = math.rsqrt %132 : vector<8x128xf32>
    %134 = arith.mulf %127, %133 : vector<8x128xf32>
    %c0_66 = arith.constant 0 : index
    %c0_67 = arith.constant 0 : index
    %135 = vector.load %arg8[%c0_66, %c0_67] : memref<1x128xf32, #tpu.memory_space<vmem>>, vector<1x128xf32>
    %136 = vector.broadcast %135 : vector<1x128xf32> to vector<8x128xf32>
    %137 = arith.mulf %134, %136 : vector<8x128xf32>
    %c0_68 = arith.constant 0 : index
    %c0_69 = arith.constant 0 : index
    %138 = vector.load %arg9[%c0_68, %c0_69] : memref<1x128xf32, #tpu.memory_space<vmem>>, vector<1x128xf32>
    %139 = vector.broadcast %138 : vector<1x128xf32> to vector<8x128xf32>
    %140 = arith.addf %137, %139 : vector<8x128xf32>
    %141 = arith.addf %119, %140 : vector<8x128xf32>
    %142 = vector.extract_strided_slice %141 {offsets = [0, 0], sizes = [8, 96], strides = [1, 1]} : vector<8x128xf32> to vector<8x96xf32>
    %143 = arith.negf %142 : vector<8x96xf32>
    %144 = math.exp %143 : vector<8x96xf32>
    %cst_70 = arith.constant 1.000000e+00 : f32
    %145 = vector.broadcast %cst_70 : f32 to vector<8x96xf32>
    %146 = arith.addf %145, %144 : vector<8x96xf32>
    %147 = arith.divf %145, %146 : vector<8x96xf32>
    %148 = vector.extract_strided_slice %147 {offsets = [0, 0], sizes = [8, 32], strides = [1, 1]} : vector<8x96xf32> to vector<8x32xf32>
    %149 = vector.extract_strided_slice %147 {offsets = [0, 32], sizes = [8, 32], strides = [1, 1]} : vector<8x96xf32> to vector<8x32xf32>
    %150 = vector.extract_strided_slice %147 {offsets = [0, 64], sizes = [8, 32], strides = [1, 1]} : vector<8x96xf32> to vector<8x32xf32>
    %151 = vector.extract_strided_slice %141 {offsets = [0, 96], sizes = [8, 32], strides = [1, 1]} : vector<8x128xf32> to vector<8x32xf32>
    %152 = math.tanh %151 : vector<8x32xf32>
    %153 = arith.mulf %148, %110 : vector<8x32xf32>
    %154 = arith.mulf %149, %152 : vector<8x32xf32>
    %155 = arith.addf %153, %154 : vector<8x32xf32>
    %156 = math.tanh %155 : vector<8x32xf32>
    %157 = arith.mulf %150, %156 : vector<8x32xf32>
    %158 = arith.index_cast %c2_i32 : i32 to index
    %c0_71 = arith.constant 0 : index
    %c0_72 = arith.constant 0 : index
    %159 = vector.load %arg15[%158, %c0_71, %c0_72] : memref<8x8x32xf32, #tpu.memory_space<vmem>>, vector<1x8x32xf32>
    %160 = vector.shape_cast %159 : vector<1x8x32xf32> to vector<8x32xf32>
    %161 = vector.shape_cast %157 : vector<8x32xf32> to vector<1x8x32xf32>
    tpu.vector_store %arg15[%158, %c0_71, %c0_72], %161 {strides = array<i32>} : memref<8x8x32xf32, #tpu.memory_space<vmem>>, vector<1x8x32xf32>,
    %c3_i32 = arith.constant 3 : i32
    %162 = arith.index_cast %c3_i32 : i32 to index
    %c0_73 = arith.constant 0 : index
    %c0_74 = arith.constant 0 : index
    %163 = vector.load %arg14[%162, %c0_73, %c0_74] : memref<8x8x128xf32, #tpu.memory_space<vmem>>, vector<1x8x128xf32>
    %164 = vector.shape_cast %163 : vector<1x8x128xf32> to vector<8x128xf32>
    %c0_75 = arith.constant 0 : index
    %c0_76 = arith.constant 0 : index
    %165 = vector.load %arg6[%c0_75, %c0_76] : memref<32x256xf32, #tpu.memory_space<vmem>>, vector<32x256xf32>
    %cst_77 = arith.constant dense<0.000000e+00> : vector<8x256xf32>
    %166 = tpu.matmul %157, %165, %cst_77 {dimension_numbers = #tpu.dot_dimension_numbers<[1], [0], [0], [1], [0, 0, 1, 1], [], []>} : vector<8x32xf32>, vector<32x256xf32>, vector<8x256xf32> -> vector<8x256xf32>
    %c0_78 = arith.constant 0 : index
    %c0_79 = arith.constant 0 : index
    %167 = vector.load %arg7[%c0_78, %c0_79] : memref<1x256xf32, #tpu.memory_space<vmem>>, vector<1x256xf32>
    %168 = vector.broadcast %167 : vector<1x256xf32> to vector<8x256xf32>
    %169 = arith.addf %166, %168 : vector<8x256xf32>
    %170 = vector.extract_strided_slice %169 {offsets = [0, 0], sizes = [8, 128], strides = [1, 1]} : vector<8x256xf32> to vector<8x128xf32>
    %171 = vector.extract_strided_slice %169 {offsets = [0, 128], sizes = [8, 128], strides = [1, 1]} : vector<8x256xf32> to vector<8x128xf32>
    %172 = arith.subf %170, %171 : vector<8x128xf32>
    %173 = arith.mulf %172, %172 : vector<8x128xf32>
    %c0_80 = arith.constant 0 : index
    %c0_81 = arith.constant 0 : index
    %174 = vector.load %arg10[%c0_80, %c0_81] : memref<128x128xf32, #tpu.memory_space<vmem>>, vector<128x128xf32>
    %cst_82 = arith.constant dense<0.000000e+00> : vector<8x128xf32>
    %175 = tpu.matmul %173, %174, %cst_82 {dimension_numbers = #tpu.dot_dimension_numbers<[1], [0], [0], [1], [0, 0, 1, 1], [], []>} : vector<8x128xf32>, vector<128x128xf32>, vector<8x128xf32> -> vector<8x128xf32>
    %cst_83 = arith.constant 9.99999974E-6 : f32
    %176 = vector.broadcast %cst_83 : f32 to vector<8x128xf32>
    %177 = arith.addf %175, %176 : vector<8x128xf32>
    %178 = math.rsqrt %177 : vector<8x128xf32>
    %179 = arith.mulf %172, %178 : vector<8x128xf32>
    %c0_84 = arith.constant 0 : index
    %c0_85 = arith.constant 0 : index
    %180 = vector.load %arg8[%c0_84, %c0_85] : memref<1x128xf32, #tpu.memory_space<vmem>>, vector<1x128xf32>
    %181 = vector.broadcast %180 : vector<1x128xf32> to vector<8x128xf32>
    %182 = arith.mulf %179, %181 : vector<8x128xf32>
    %c0_86 = arith.constant 0 : index
    %c0_87 = arith.constant 0 : index
    %183 = vector.load %arg9[%c0_86, %c0_87] : memref<1x128xf32, #tpu.memory_space<vmem>>, vector<1x128xf32>
    %184 = vector.broadcast %183 : vector<1x128xf32> to vector<8x128xf32>
    %185 = arith.addf %182, %184 : vector<8x128xf32>
    %186 = arith.addf %164, %185 : vector<8x128xf32>
    %187 = vector.extract_strided_slice %186 {offsets = [0, 0], sizes = [8, 96], strides = [1, 1]} : vector<8x128xf32> to vector<8x96xf32>
    %188 = arith.negf %187 : vector<8x96xf32>
    %189 = math.exp %188 : vector<8x96xf32>
    %cst_88 = arith.constant 1.000000e+00 : f32
    %190 = vector.broadcast %cst_88 : f32 to vector<8x96xf32>
    %191 = arith.addf %190, %189 : vector<8x96xf32>
    %192 = arith.divf %190, %191 : vector<8x96xf32>
    %193 = vector.extract_strided_slice %192 {offsets = [0, 0], sizes = [8, 32], strides = [1, 1]} : vector<8x96xf32> to vector<8x32xf32>
    %194 = vector.extract_strided_slice %192 {offsets = [0, 32], sizes = [8, 32], strides = [1, 1]} : vector<8x96xf32> to vector<8x32xf32>
    %195 = vector.extract_strided_slice %192 {offsets = [0, 64], sizes = [8, 32], strides = [1, 1]} : vector<8x96xf32> to vector<8x32xf32>
    %196 = vector.extract_strided_slice %186 {offsets = [0, 96], sizes = [8, 32], strides = [1, 1]} : vector<8x128xf32> to vector<8x32xf32>
    %197 = math.tanh %196 : vector<8x32xf32>
    %198 = arith.mulf %193, %155 : vector<8x32xf32>
    %199 = arith.mulf %194, %197 : vector<8x32xf32>
    %200 = arith.addf %198, %199 : vector<8x32xf32>
    %201 = math.tanh %200 : vector<8x32xf32>
    %202 = arith.mulf %195, %201 : vector<8x32xf32>
    %203 = arith.index_cast %c3_i32 : i32 to index
    %c0_89 = arith.constant 0 : index
    %c0_90 = arith.constant 0 : index
    %204 = vector.load %arg15[%203, %c0_89, %c0_90] : memref<8x8x32xf32, #tpu.memory_space<vmem>>, vector<1x8x32xf32>
    %205 = vector.shape_cast %204 : vector<1x8x32xf32> to vector<8x32xf32>
    %206 = vector.shape_cast %202 : vector<8x32xf32> to vector<1x8x32xf32>
    tpu.vector_store %arg15[%203, %c0_89, %c0_90], %206 {strides = array<i32>} : memref<8x8x32xf32, #tpu.memory_space<vmem>>, vector<1x8x32xf32>,
    %c4_i32 = arith.constant 4 : i32
    %207 = arith.index_cast %c4_i32 : i32 to index
    %c0_91 = arith.constant 0 : index
    %c0_92 = arith.constant 0 : index
    %208 = vector.load %arg14[%207, %c0_91, %c0_92] : memref<8x8x128xf32, #tpu.memory_space<vmem>>, vector<1x8x128xf32>
    %209 = vector.shape_cast %208 : vector<1x8x128xf32> to vector<8x128xf32>
    %c0_93 = arith.constant 0 : index
    %c0_94 = arith.constant 0 : index
    %210 = vector.load %arg6[%c0_93, %c0_94] : memref<32x256xf32, #tpu.memory_space<vmem>>, vector<32x256xf32>
    %cst_95 = arith.constant dense<0.000000e+00> : vector<8x256xf32>
    %211 = tpu.matmul %202, %210, %cst_95 {dimension_numbers = #tpu.dot_dimension_numbers<[1], [0], [0], [1], [0, 0, 1, 1], [], []>} : vector<8x32xf32>, vector<32x256xf32>, vector<8x256xf32> -> vector<8x256xf32>
    %c0_96 = arith.constant 0 : index
    %c0_97 = arith.constant 0 : index
    %212 = vector.load %arg7[%c0_96, %c0_97] : memref<1x256xf32, #tpu.memory_space<vmem>>, vector<1x256xf32>
    %213 = vector.broadcast %212 : vector<1x256xf32> to vector<8x256xf32>
    %214 = arith.addf %211, %213 : vector<8x256xf32>
    %215 = vector.extract_strided_slice %214 {offsets = [0, 0], sizes = [8, 128], strides = [1, 1]} : vector<8x256xf32> to vector<8x128xf32>
    %216 = vector.extract_strided_slice %214 {offsets = [0, 128], sizes = [8, 128], strides = [1, 1]} : vector<8x256xf32> to vector<8x128xf32>
    %217 = arith.subf %215, %216 : vector<8x128xf32>
    %218 = arith.mulf %217, %217 : vector<8x128xf32>
    %c0_98 = arith.constant 0 : index
    %c0_99 = arith.constant 0 : index
    %219 = vector.load %arg10[%c0_98, %c0_99] : memref<128x128xf32, #tpu.memory_space<vmem>>, vector<128x128xf32>
    %cst_100 = arith.constant dense<0.000000e+00> : vector<8x128xf32>
    %220 = tpu.matmul %218, %219, %cst_100 {dimension_numbers = #tpu.dot_dimension_numbers<[1], [0], [0], [1], [0, 0, 1, 1], [], []>} : vector<8x128xf32>, vector<128x128xf32>, vector<8x128xf32> -> vector<8x128xf32>
    %cst_101 = arith.constant 9.99999974E-6 : f32
    %221 = vector.broadcast %cst_101 : f32 to vector<8x128xf32>
    %222 = arith.addf %220, %221 : vector<8x128xf32>
    %223 = math.rsqrt %222 : vector<8x128xf32>
    %224 = arith.mulf %217, %223 : vector<8x128xf32>
    %c0_102 = arith.constant 0 : index
    %c0_103 = arith.constant 0 : index
    %225 = vector.load %arg8[%c0_102, %c0_103] : memref<1x128xf32, #tpu.memory_space<vmem>>, vector<1x128xf32>
    %226 = vector.broadcast %225 : vector<1x128xf32> to vector<8x128xf32>
    %227 = arith.mulf %224, %226 : vector<8x128xf32>
    %c0_104 = arith.constant 0 : index
    %c0_105 = arith.constant 0 : index
    %228 = vector.load %arg9[%c0_104, %c0_105] : memref<1x128xf32, #tpu.memory_space<vmem>>, vector<1x128xf32>
    %229 = vector.broadcast %228 : vector<1x128xf32> to vector<8x128xf32>
    %230 = arith.addf %227, %229 : vector<8x128xf32>
    %231 = arith.addf %209, %230 : vector<8x128xf32>
    %232 = vector.extract_strided_slice %231 {offsets = [0, 0], sizes = [8, 96], strides = [1, 1]} : vector<8x128xf32> to vector<8x96xf32>
    %233 = arith.negf %232 : vector<8x96xf32>
    %234 = math.exp %233 : vector<8x96xf32>
    %cst_106 = arith.constant 1.000000e+00 : f32
    %235 = vector.broadcast %cst_106 : f32 to vector<8x96xf32>
    %236 = arith.addf %235, %234 : vector<8x96xf32>
    %237 = arith.divf %235, %236 : vector<8x96xf32>
    %238 = vector.extract_strided_slice %237 {offsets = [0, 0], sizes = [8, 32], strides = [1, 1]} : vector<8x96xf32> to vector<8x32xf32>
    %239 = vector.extract_strided_slice %237 {offsets = [0, 32], sizes = [8, 32], strides = [1, 1]} : vector<8x96xf32> to vector<8x32xf32>
    %240 = vector.extract_strided_slice %237 {offsets = [0, 64], sizes = [8, 32], strides = [1, 1]} : vector<8x96xf32> to vector<8x32xf32>
    %241 = vector.extract_strided_slice %231 {offsets = [0, 96], sizes = [8, 32], strides = [1, 1]} : vector<8x128xf32> to vector<8x32xf32>
    %242 = math.tanh %241 : vector<8x32xf32>
    %243 = arith.mulf %238, %200 : vector<8x32xf32>
    %244 = arith.mulf %239, %242 : vector<8x32xf32>
    %245 = arith.addf %243, %244 : vector<8x32xf32>
    %246 = math.tanh %245 : vector<8x32xf32>
    %247 = arith.mulf %240, %246 : vector<8x32xf32>
    %248 = arith.index_cast %c4_i32 : i32 to index
    %c0_107 = arith.constant 0 : index
    %c0_108 = arith.constant 0 : index
    %249 = vector.load %arg15[%248, %c0_107, %c0_108] : memref<8x8x32xf32, #tpu.memory_space<vmem>>, vector<1x8x32xf32>
    %250 = vector.shape_cast %249 : vector<1x8x32xf32> to vector<8x32xf32>
    %251 = vector.shape_cast %247 : vector<8x32xf32> to vector<1x8x32xf32>
    tpu.vector_store %arg15[%248, %c0_107, %c0_108], %251 {strides = array<i32>} : memref<8x8x32xf32, #tpu.memory_space<vmem>>, vector<1x8x32xf32>,
    %c5_i32 = arith.constant 5 : i32
    %252 = arith.index_cast %c5_i32 : i32 to index
    %c0_109 = arith.constant 0 : index
    %c0_110 = arith.constant 0 : index
    %253 = vector.load %arg14[%252, %c0_109, %c0_110] : memref<8x8x128xf32, #tpu.memory_space<vmem>>, vector<1x8x128xf32>
    %254 = vector.shape_cast %253 : vector<1x8x128xf32> to vector<8x128xf32>
    %c0_111 = arith.constant 0 : index
    %c0_112 = arith.constant 0 : index
    %255 = vector.load %arg6[%c0_111, %c0_112] : memref<32x256xf32, #tpu.memory_space<vmem>>, vector<32x256xf32>
    %cst_113 = arith.constant dense<0.000000e+00> : vector<8x256xf32>
    %256 = tpu.matmul %247, %255, %cst_113 {dimension_numbers = #tpu.dot_dimension_numbers<[1], [0], [0], [1], [0, 0, 1, 1], [], []>} : vector<8x32xf32>, vector<32x256xf32>, vector<8x256xf32> -> vector<8x256xf32>
    %c0_114 = arith.constant 0 : index
    %c0_115 = arith.constant 0 : index
    %257 = vector.load %arg7[%c0_114, %c0_115] : memref<1x256xf32, #tpu.memory_space<vmem>>, vector<1x256xf32>
    %258 = vector.broadcast %257 : vector<1x256xf32> to vector<8x256xf32>
    %259 = arith.addf %256, %258 : vector<8x256xf32>
    %260 = vector.extract_strided_slice %259 {offsets = [0, 0], sizes = [8, 128], strides = [1, 1]} : vector<8x256xf32> to vector<8x128xf32>
    %261 = vector.extract_strided_slice %259 {offsets = [0, 128], sizes = [8, 128], strides = [1, 1]} : vector<8x256xf32> to vector<8x128xf32>
    %262 = arith.subf %260, %261 : vector<8x128xf32>
    %263 = arith.mulf %262, %262 : vector<8x128xf32>
    %c0_116 = arith.constant 0 : index
    %c0_117 = arith.constant 0 : index
    %264 = vector.load %arg10[%c0_116, %c0_117] : memref<128x128xf32, #tpu.memory_space<vmem>>, vector<128x128xf32>
    %cst_118 = arith.constant dense<0.000000e+00> : vector<8x128xf32>
    %265 = tpu.matmul %263, %264, %cst_118 {dimension_numbers = #tpu.dot_dimension_numbers<[1], [0], [0], [1], [0, 0, 1, 1], [], []>} : vector<8x128xf32>, vector<128x128xf32>, vector<8x128xf32> -> vector<8x128xf32>
    %cst_119 = arith.constant 9.99999974E-6 : f32
    %266 = vector.broadcast %cst_119 : f32 to vector<8x128xf32>
    %267 = arith.addf %265, %266 : vector<8x128xf32>
    %268 = math.rsqrt %267 : vector<8x128xf32>
    %269 = arith.mulf %262, %268 : vector<8x128xf32>
    %c0_120 = arith.constant 0 : index
    %c0_121 = arith.constant 0 : index
    %270 = vector.load %arg8[%c0_120, %c0_121] : memref<1x128xf32, #tpu.memory_space<vmem>>, vector<1x128xf32>
    %271 = vector.broadcast %270 : vector<1x128xf32> to vector<8x128xf32>
    %272 = arith.mulf %269, %271 : vector<8x128xf32>
    %c0_122 = arith.constant 0 : index
    %c0_123 = arith.constant 0 : index
    %273 = vector.load %arg9[%c0_122, %c0_123] : memref<1x128xf32, #tpu.memory_space<vmem>>, vector<1x128xf32>
    %274 = vector.broadcast %273 : vector<1x128xf32> to vector<8x128xf32>
    %275 = arith.addf %272, %274 : vector<8x128xf32>
    %276 = arith.addf %254, %275 : vector<8x128xf32>
    %277 = vector.extract_strided_slice %276 {offsets = [0, 0], sizes = [8, 96], strides = [1, 1]} : vector<8x128xf32> to vector<8x96xf32>
    %278 = arith.negf %277 : vector<8x96xf32>
    %279 = math.exp %278 : vector<8x96xf32>
    %cst_124 = arith.constant 1.000000e+00 : f32
    %280 = vector.broadcast %cst_124 : f32 to vector<8x96xf32>
    %281 = arith.addf %280, %279 : vector<8x96xf32>
    %282 = arith.divf %280, %281 : vector<8x96xf32>
    %283 = vector.extract_strided_slice %282 {offsets = [0, 0], sizes = [8, 32], strides = [1, 1]} : vector<8x96xf32> to vector<8x32xf32>
    %284 = vector.extract_strided_slice %282 {offsets = [0, 32], sizes = [8, 32], strides = [1, 1]} : vector<8x96xf32> to vector<8x32xf32>
    %285 = vector.extract_strided_slice %282 {offsets = [0, 64], sizes = [8, 32], strides = [1, 1]} : vector<8x96xf32> to vector<8x32xf32>
    %286 = vector.extract_strided_slice %276 {offsets = [0, 96], sizes = [8, 32], strides = [1, 1]} : vector<8x128xf32> to vector<8x32xf32>
    %287 = math.tanh %286 : vector<8x32xf32>
    %288 = arith.mulf %283, %245 : vector<8x32xf32>
    %289 = arith.mulf %284, %287 : vector<8x32xf32>
    %290 = arith.addf %288, %289 : vector<8x32xf32>
    %291 = math.tanh %290 : vector<8x32xf32>
    %292 = arith.mulf %285, %291 : vector<8x32xf32>
    %293 = arith.index_cast %c5_i32 : i32 to index
    %c0_125 = arith.constant 0 : index
    %c0_126 = arith.constant 0 : index
    %294 = vector.load %arg15[%293, %c0_125, %c0_126] : memref<8x8x32xf32, #tpu.memory_space<vmem>>, vector<1x8x32xf32>
    %295 = vector.shape_cast %294 : vector<1x8x32xf32> to vector<8x32xf32>
    %296 = vector.shape_cast %292 : vector<8x32xf32> to vector<1x8x32xf32>
    tpu.vector_store %arg15[%293, %c0_125, %c0_126], %296 {strides = array<i32>} : memref<8x8x32xf32, #tpu.memory_space<vmem>>, vector<1x8x32xf32>,
    %c6_i32 = arith.constant 6 : i32
    %297 = arith.index_cast %c6_i32 : i32 to index
    %c0_127 = arith.constant 0 : index
    %c0_128 = arith.constant 0 : index
    %298 = vector.load %arg14[%297, %c0_127, %c0_128] : memref<8x8x128xf32, #tpu.memory_space<vmem>>, vector<1x8x128xf32>
    %299 = vector.shape_cast %298 : vector<1x8x128xf32> to vector<8x128xf32>
    %c0_129 = arith.constant 0 : index
    %c0_130 = arith.constant 0 : index
    %300 = vector.load %arg6[%c0_129, %c0_130] : memref<32x256xf32, #tpu.memory_space<vmem>>, vector<32x256xf32>
    %cst_131 = arith.constant dense<0.000000e+00> : vector<8x256xf32>
    %301 = tpu.matmul %292, %300, %cst_131 {dimension_numbers = #tpu.dot_dimension_numbers<[1], [0], [0], [1], [0, 0, 1, 1], [], []>} : vector<8x32xf32>, vector<32x256xf32>, vector<8x256xf32> -> vector<8x256xf32>
    %c0_132 = arith.constant 0 : index
    %c0_133 = arith.constant 0 : index
    %302 = vector.load %arg7[%c0_132, %c0_133] : memref<1x256xf32, #tpu.memory_space<vmem>>, vector<1x256xf32>
    %303 = vector.broadcast %302 : vector<1x256xf32> to vector<8x256xf32>
    %304 = arith.addf %301, %303 : vector<8x256xf32>
    %305 = vector.extract_strided_slice %304 {offsets = [0, 0], sizes = [8, 128], strides = [1, 1]} : vector<8x256xf32> to vector<8x128xf32>
    %306 = vector.extract_strided_slice %304 {offsets = [0, 128], sizes = [8, 128], strides = [1, 1]} : vector<8x256xf32> to vector<8x128xf32>
    %307 = arith.subf %305, %306 : vector<8x128xf32>
    %308 = arith.mulf %307, %307 : vector<8x128xf32>
    %c0_134 = arith.constant 0 : index
    %c0_135 = arith.constant 0 : index
    %309 = vector.load %arg10[%c0_134, %c0_135] : memref<128x128xf32, #tpu.memory_space<vmem>>, vector<128x128xf32>
    %cst_136 = arith.constant dense<0.000000e+00> : vector<8x128xf32>
    %310 = tpu.matmul %308, %309, %cst_136 {dimension_numbers = #tpu.dot_dimension_numbers<[1], [0], [0], [1], [0, 0, 1, 1], [], []>} : vector<8x128xf32>, vector<128x128xf32>, vector<8x128xf32> -> vector<8x128xf32>
    %cst_137 = arith.constant 9.99999974E-6 : f32
    %311 = vector.broadcast %cst_137 : f32 to vector<8x128xf32>
    %312 = arith.addf %310, %311 : vector<8x128xf32>
    %313 = math.rsqrt %312 : vector<8x128xf32>
    %314 = arith.mulf %307, %313 : vector<8x128xf32>
    %c0_138 = arith.constant 0 : index
    %c0_139 = arith.constant 0 : index
    %315 = vector.load %arg8[%c0_138, %c0_139] : memref<1x128xf32, #tpu.memory_space<vmem>>, vector<1x128xf32>
    %316 = vector.broadcast %315 : vector<1x128xf32> to vector<8x128xf32>
    %317 = arith.mulf %314, %316 : vector<8x128xf32>
    %c0_140 = arith.constant 0 : index
    %c0_141 = arith.constant 0 : index
    %318 = vector.load %arg9[%c0_140, %c0_141] : memref<1x128xf32, #tpu.memory_space<vmem>>, vector<1x128xf32>
    %319 = vector.broadcast %318 : vector<1x128xf32> to vector<8x128xf32>
    %320 = arith.addf %317, %319 : vector<8x128xf32>
    %321 = arith.addf %299, %320 : vector<8x128xf32>
    %322 = vector.extract_strided_slice %321 {offsets = [0, 0], sizes = [8, 96], strides = [1, 1]} : vector<8x128xf32> to vector<8x96xf32>
    %323 = arith.negf %322 : vector<8x96xf32>
    %324 = math.exp %323 : vector<8x96xf32>
    %cst_142 = arith.constant 1.000000e+00 : f32
    %325 = vector.broadcast %cst_142 : f32 to vector<8x96xf32>
    %326 = arith.addf %325, %324 : vector<8x96xf32>
    %327 = arith.divf %325, %326 : vector<8x96xf32>
    %328 = vector.extract_strided_slice %327 {offsets = [0, 0], sizes = [8, 32], strides = [1, 1]} : vector<8x96xf32> to vector<8x32xf32>
    %329 = vector.extract_strided_slice %327 {offsets = [0, 32], sizes = [8, 32], strides = [1, 1]} : vector<8x96xf32> to vector<8x32xf32>
    %330 = vector.extract_strided_slice %327 {offsets = [0, 64], sizes = [8, 32], strides = [1, 1]} : vector<8x96xf32> to vector<8x32xf32>
    %331 = vector.extract_strided_slice %321 {offsets = [0, 96], sizes = [8, 32], strides = [1, 1]} : vector<8x128xf32> to vector<8x32xf32>
    %332 = math.tanh %331 : vector<8x32xf32>
    %333 = arith.mulf %328, %290 : vector<8x32xf32>
    %334 = arith.mulf %329, %332 : vector<8x32xf32>
    %335 = arith.addf %333, %334 : vector<8x32xf32>
    %336 = math.tanh %335 : vector<8x32xf32>
    %337 = arith.mulf %330, %336 : vector<8x32xf32>
    %338 = arith.index_cast %c6_i32 : i32 to index
    %c0_143 = arith.constant 0 : index
    %c0_144 = arith.constant 0 : index
    %339 = vector.load %arg15[%338, %c0_143, %c0_144] : memref<8x8x32xf32, #tpu.memory_space<vmem>>, vector<1x8x32xf32>
    %340 = vector.shape_cast %339 : vector<1x8x32xf32> to vector<8x32xf32>
    %341 = vector.shape_cast %337 : vector<8x32xf32> to vector<1x8x32xf32>
    tpu.vector_store %arg15[%338, %c0_143, %c0_144], %341 {strides = array<i32>} : memref<8x8x32xf32, #tpu.memory_space<vmem>>, vector<1x8x32xf32>,
    %c7_i32 = arith.constant 7 : i32
    %342 = arith.index_cast %c7_i32 : i32 to index
    %c0_145 = arith.constant 0 : index
    %c0_146 = arith.constant 0 : index
    %343 = vector.load %arg14[%342, %c0_145, %c0_146] : memref<8x8x128xf32, #tpu.memory_space<vmem>>, vector<1x8x128xf32>
    %344 = vector.shape_cast %343 : vector<1x8x128xf32> to vector<8x128xf32>
    %c0_147 = arith.constant 0 : index
    %c0_148 = arith.constant 0 : index
    %345 = vector.load %arg6[%c0_147, %c0_148] : memref<32x256xf32, #tpu.memory_space<vmem>>, vector<32x256xf32>
    %cst_149 = arith.constant dense<0.000000e+00> : vector<8x256xf32>
    %346 = tpu.matmul %337, %345, %cst_149 {dimension_numbers = #tpu.dot_dimension_numbers<[1], [0], [0], [1], [0, 0, 1, 1], [], []>} : vector<8x32xf32>, vector<32x256xf32>, vector<8x256xf32> -> vector<8x256xf32>
    %c0_150 = arith.constant 0 : index
    %c0_151 = arith.constant 0 : index
    %347 = vector.load %arg7[%c0_150, %c0_151] : memref<1x256xf32, #tpu.memory_space<vmem>>, vector<1x256xf32>
    %348 = vector.broadcast %347 : vector<1x256xf32> to vector<8x256xf32>
    %349 = arith.addf %346, %348 : vector<8x256xf32>
    %350 = vector.extract_strided_slice %349 {offsets = [0, 0], sizes = [8, 128], strides = [1, 1]} : vector<8x256xf32> to vector<8x128xf32>
    %351 = vector.extract_strided_slice %349 {offsets = [0, 128], sizes = [8, 128], strides = [1, 1]} : vector<8x256xf32> to vector<8x128xf32>
    %352 = arith.subf %350, %351 : vector<8x128xf32>
    %353 = arith.mulf %352, %352 : vector<8x128xf32>
    %c0_152 = arith.constant 0 : index
    %c0_153 = arith.constant 0 : index
    %354 = vector.load %arg10[%c0_152, %c0_153] : memref<128x128xf32, #tpu.memory_space<vmem>>, vector<128x128xf32>
    %cst_154 = arith.constant dense<0.000000e+00> : vector<8x128xf32>
    %355 = tpu.matmul %353, %354, %cst_154 {dimension_numbers = #tpu.dot_dimension_numbers<[1], [0], [0], [1], [0, 0, 1, 1], [], []>} : vector<8x128xf32>, vector<128x128xf32>, vector<8x128xf32> -> vector<8x128xf32>
    %cst_155 = arith.constant 9.99999974E-6 : f32
    %356 = vector.broadcast %cst_155 : f32 to vector<8x128xf32>
    %357 = arith.addf %355, %356 : vector<8x128xf32>
    %358 = math.rsqrt %357 : vector<8x128xf32>
    %359 = arith.mulf %352, %358 : vector<8x128xf32>
    %c0_156 = arith.constant 0 : index
    %c0_157 = arith.constant 0 : index
    %360 = vector.load %arg8[%c0_156, %c0_157] : memref<1x128xf32, #tpu.memory_space<vmem>>, vector<1x128xf32>
    %361 = vector.broadcast %360 : vector<1x128xf32> to vector<8x128xf32>
    %362 = arith.mulf %359, %361 : vector<8x128xf32>
    %c0_158 = arith.constant 0 : index
    %c0_159 = arith.constant 0 : index
    %363 = vector.load %arg9[%c0_158, %c0_159] : memref<1x128xf32, #tpu.memory_space<vmem>>, vector<1x128xf32>
    %364 = vector.broadcast %363 : vector<1x128xf32> to vector<8x128xf32>
    %365 = arith.addf %362, %364 : vector<8x128xf32>
    %366 = arith.addf %344, %365 : vector<8x128xf32>
    %367 = vector.extract_strided_slice %366 {offsets = [0, 0], sizes = [8, 96], strides = [1, 1]} : vector<8x128xf32> to vector<8x96xf32>
    %368 = arith.negf %367 : vector<8x96xf32>
    %369 = math.exp %368 : vector<8x96xf32>
    %cst_160 = arith.constant 1.000000e+00 : f32
    %370 = vector.broadcast %cst_160 : f32 to vector<8x96xf32>
    %371 = arith.addf %370, %369 : vector<8x96xf32>
    %372 = arith.divf %370, %371 : vector<8x96xf32>
    %373 = vector.extract_strided_slice %372 {offsets = [0, 0], sizes = [8, 32], strides = [1, 1]} : vector<8x96xf32> to vector<8x32xf32>
    %374 = vector.extract_strided_slice %372 {offsets = [0, 32], sizes = [8, 32], strides = [1, 1]} : vector<8x96xf32> to vector<8x32xf32>
    %375 = vector.extract_strided_slice %372 {offsets = [0, 64], sizes = [8, 32], strides = [1, 1]} : vector<8x96xf32> to vector<8x32xf32>
    %376 = vector.extract_strided_slice %366 {offsets = [0, 96], sizes = [8, 32], strides = [1, 1]} : vector<8x128xf32> to vector<8x32xf32>
    %377 = math.tanh %376 : vector<8x32xf32>
    %378 = arith.mulf %373, %335 : vector<8x32xf32>
    %379 = arith.mulf %374, %377 : vector<8x32xf32>
    %380 = arith.addf %378, %379 : vector<8x32xf32>
    %381 = math.tanh %380 : vector<8x32xf32>
    %382 = arith.mulf %375, %381 : vector<8x32xf32>
    %383 = arith.index_cast %c7_i32 : i32 to index
    %c0_161 = arith.constant 0 : index
    %c0_162 = arith.constant 0 : index
    %384 = vector.load %arg15[%383, %c0_161, %c0_162] : memref<8x8x32xf32, #tpu.memory_space<vmem>>, vector<1x8x32xf32>
    %385 = vector.shape_cast %384 : vector<1x8x32xf32> to vector<8x32xf32>
    %386 = vector.shape_cast %382 : vector<8x32xf32> to vector<1x8x32xf32>
    tpu.vector_store %arg15[%383, %c0_161, %c0_162], %386 {strides = array<i32>} : memref<8x8x32xf32, #tpu.memory_space<vmem>>, vector<1x8x32xf32>,
    %c8_i32 = arith.constant 8 : i32
    %c0_163 = arith.constant 0 : index
    %c0_164 = arith.constant 0 : index
    %c0_165 = arith.constant 0 : index
    %387 = vector.load %arg15[%c0_163, %c0_164, %c0_165] : memref<8x8x32xf32, #tpu.memory_space<vmem>>, vector<8x8x32xf32>
    %c0_166 = arith.constant 0 : index
    %c0_167 = arith.constant 0 : index
    %388 = vector.load %arg11[%c0_166, %c0_167] : memref<1x32xf32, #tpu.memory_space<vmem>>, vector<1x32xf32>
    %389 = vector.shape_cast %388 : vector<1x32xf32> to vector<1x1x32xf32>
    %390 = vector.broadcast %389 : vector<1x1x32xf32> to vector<8x8x32xf32>
    %391 = arith.mulf %387, %390 : vector<8x8x32xf32>
    %cst_168 = arith.constant dense<0.000000e+00> : vector<8x8xf32>
    %392 = vector.multi_reduction <add>, %391, %cst_168 [2] : vector<8x8x32xf32> to vector<8x8xf32>
    %c0_169 = arith.constant 0 : index
    %c0_170 = arith.constant 0 : index
    %393 = vector.load %arg12[%c0_169, %c0_170] : memref<1x1xf32, #tpu.memory_space<vmem>>, vector<1x1xf32>
    %394 = vector.broadcast %393 : vector<1x1xf32> to vector<8x8xf32>
    %395 = arith.addf %392, %394 : vector<8x8xf32>
    %cst_171 = arith.constant 1.000000e+00 : f32
    %396 = vector.broadcast %cst_171 : f32 to vector<8x8xf32>
    %397 = arith.mulf %395, %396 : vector<8x8xf32>
    %398 = arith.negf %397 : vector<8x8xf32>
    %399 = math.exp %398 : vector<8x8xf32>
    %cst_172 = arith.constant 1.000000e+00 : f32
    %400 = vector.broadcast %cst_172 : f32 to vector<8x8xf32>
    %401 = arith.addf %400, %399 : vector<8x8xf32>
    %402 = arith.divf %400, %401 : vector<8x8xf32>
    %403 = tpu.transpose %402, [1, 0] : vector<8x8xf32> -> vector<8x8xf32>
    %c0_173 = arith.constant 0 : index
    %c0_174 = arith.constant 0 : index
    %c0_175 = arith.constant 0 : index
    %404 = vector.load %arg13[%c0_173, %c0_174, %c0_175] : memref<1x8x8xf32, #tpu.memory_space<vmem>>, vector<1x8x8xf32>
    %405 = vector.shape_cast %404 : vector<1x8x8xf32> to vector<8x8xf32>
    %406 = vector.shape_cast %403 : vector<8x8xf32> to vector<1x8x8xf32>
    tpu.vector_store %arg13[%c0_173, %c0_174, %c0_175], %406 {strides = array<i32>} : memref<1x8x8xf32, #tpu.memory_space<vmem>>, vector<1x8x8xf32>,
    return
  }
  func.func @transform_0(%arg0: i32) -> (i32, i32, i32) {
    %c0_i32 = arith.constant 0 : i32
    %c0_i32_0 = arith.constant 0 : i32
    %c0_i32_1 = arith.constant 0 : i32
    return %c0_i32, %arg0, %c0_i32_0 : i32, i32, i32
  }
  func.func @transform_1(%arg0: i32) -> (i32, i32) {
    %c0_i32 = arith.constant 0 : i32
    %c0_i32_0 = arith.constant 0 : i32
    %c0_i32_1 = arith.constant 0 : i32
    return %c0_i32, %c0_i32_0 : i32, i32
  }
  func.func @transform_2(%arg0: i32) -> (i32, i32) {
    %c0_i32 = arith.constant 0 : i32
    %c0_i32_0 = arith.constant 0 : i32
    %c0_i32_1 = arith.constant 0 : i32
    return %c0_i32, %c0_i32_0 : i32, i32
  }
  func.func @transform_3(%arg0: i32) -> (i32, i32) {
    %c0_i32 = arith.constant 0 : i32
    %c0_i32_0 = arith.constant 0 : i32
    %c0_i32_1 = arith.constant 0 : i32
    return %c0_i32, %c0_i32_0 : i32, i32
  }
  func.func @transform_4(%arg0: i32) -> (i32, i32) {
    %c0_i32 = arith.constant 0 : i32
    %c0_i32_0 = arith.constant 0 : i32
    %c0_i32_1 = arith.constant 0 : i32
    return %c0_i32, %c0_i32_0 : i32, i32
  }
  func.func @transform_5(%arg0: i32) -> (i32, i32) {
    %c0_i32 = arith.constant 0 : i32
    %c0_i32_0 = arith.constant 0 : i32
    %c0_i32_1 = arith.constant 0 : i32
    return %c0_i32, %c0_i32_0 : i32, i32
  }
  func.func @transform_6(%arg0: i32) -> (i32, i32) {
    %c0_i32 = arith.constant 0 : i32
    %c0_i32_0 = arith.constant 0 : i32
    %c0_i32_1 = arith.constant 0 : i32
    return %c0_i32, %c0_i32_0 : i32, i32
  }
  func.func @transform_7(%arg0: i32) -> (i32, i32) {
    %c0_i32 = arith.constant 0 : i32
    %c0_i32_0 = arith.constant 0 : i32
    %c0_i32_1 = arith.constant 0 : i32
    return %c0_i32, %c0_i32_0 : i32, i32
  }
  func.func @transform_8(%arg0: i32) -> (i32, i32) {
    %c0_i32 = arith.constant 0 : i32
    %c0_i32_0 = arith.constant 0 : i32
    %c0_i32_1 = arith.constant 0 : i32
    return %c0_i32, %c0_i32_0 : i32, i32
  }
  func.func @transform_9(%arg0: i32) -> (i32, i32) {
    %c0_i32 = arith.constant 0 : i32
    %c0_i32_0 = arith.constant 0 : i32
    %c0_i32_1 = arith.constant 0 : i32
    return %c0_i32, %c0_i32_0 : i32, i32
  }
  func.func @transform_10(%arg0: i32) -> (i32, i32) {
    %c0_i32 = arith.constant 0 : i32
    %c0_i32_0 = arith.constant 0 : i32
    %c0_i32_1 = arith.constant 0 : i32
    return %c0_i32, %c0_i32_0 : i32, i32
  }
  func.func @transform_11(%arg0: i32) -> (i32, i32) {
    %c0_i32 = arith.constant 0 : i32
    %c0_i32_0 = arith.constant 0 : i32
    %c0_i32_1 = arith.constant 0 : i32
    return %c0_i32, %c0_i32_0 : i32, i32
  }
  func.func @transform_12(%arg0: i32) -> (i32, i32, i32) {
    %c0_i32 = arith.constant 0 : i32
    %c0_i32_0 = arith.constant 0 : i32
    %c0_i32_1 = arith.constant 0 : i32
    return %arg0, %c0_i32, %c0_i32_0 : i32, i32, i32
  }
}

</mosaic_0001>

<llo_original>
// kernel: combined_video_rnn_forward.1
$region0: #{combined_video_rnn_forward.1}
  #allocation0 [shape = 'u32[]', space=smem, size = 0x4, offset = 0x4, fixed_abs, tag = 'smem constant byte address 0x4 - core index']
  #allocation1 [shape = 'u32[144,128]{1,0:T(1,128)}', space=vmem, size = 0x12000, scoped, tag = 'internal scratch']
  #allocation2 [shape = 'f32[8,8,128]{2,1,0:T(8,128)}', space=vmem, size = 0x8000, scoped, tag = 'scratch operand']
  #allocation3 [shape = 'f32[8,8,32]{2,1,0:T(8,128)}', space=vmem, size = 0x8000, scoped, tag = 'scratch operand']
  #allocation4 [shape = 'f32[1,1]{1,0:T(1,128)S(1)}', space=vmem, size = 0x200, scoped, tag = 'scoped memory for combined_video_rnn_forward.1']
  %s0 = inlined_call_operand.vmem [shape: f32[8,8,16], index: 0, kind: input, shape index: {}]
  %s1 = inlined_call_operand.vmem [shape: f32[16,256], index: 1, kind: input, shape index: {}]
  %s2 = inlined_call_operand.vmem [shape: f32[1,256], index: 2, kind: input, shape index: {}]
  %s3 = inlined_call_operand.vmem [shape: f32[1,128], index: 3, kind: input, shape index: {}]
  %s4 = inlined_call_operand.vmem [shape: f32[1,128], index: 4, kind: input, shape index: {}]
  %s5 = inlined_call_operand.vmem [shape: f32[32,256], index: 5, kind: input, shape index: {}]
  %s6 = inlined_call_operand.vmem [shape: f32[1,256], index: 6, kind: input, shape index: {}]
  %s7 = inlined_call_operand.vmem [shape: f32[1,128], index: 7, kind: input, shape index: {}]
  %s8 = inlined_call_operand.vmem [shape: f32[1,128], index: 8, kind: input, shape index: {}]
  %s9 = inlined_call_operand.vmem [shape: f32[128,128], index: 9, kind: input, shape index: {}]
  %s10 = inlined_call_operand.vmem [shape: f32[1,32], index: 10, kind: input, shape index: {}]
  %s11 = inlined_call_operand.<no memory space> [shape: f32[1,1], index: 11, kind: input, shape index: {}]
  %s12 = inlined_call_operand.hbm [shape: f32[1,8,8], index: 12, kind: output, shape index: {}]
  %s13 = sld [smem:[#allocation0]]
  $region58: #{combined_video_rnn_forward.1} parent=0
    _
  %s15 = ssub.s32 1, %s13
  %s16 = scalar_select 0, %s15, %s13
  %v17 = vstv %s11
  %18 = vst [vmem:[#allocation4] sm:$0x1] %v17
  $region1: #{combined_video_rnn_forward.1} parent=0
    #allocation5 [shape = 'u8[4096]{0}', space=vmem, size = 0x1000, scoped, tag = 'output window, operand 0, single buffered']
    #allocation6 [shape = 's32[1]{0}', space=sflag, size = 0x4, scoped, tag = 'scoped memory for combined_video_rnn_forward.1']
    %19 = vsyncpa [#allocation6], 0
    // Predicated region
    $region2: #{combined_video_rnn_forward.1} parent=1 // pred_check
      _
    $region3: #{combined_video_rnn_forward.1} parent=1 // pred_check_branch
      %21 = sbr.rel (0) target = $region5
    $region4: #{combined_video_rnn_forward.1} parent=1 // pred_region
      _
    $region5: #{combined_video_rnn_forward.1} parent=1 // pred_fallthru
      _
    // Predicated region
    $region6: #{combined_video_rnn_forward.1} parent=1 // pred_check
      _
    $region7: #{combined_video_rnn_forward.1} parent=1 // pred_check_branch
      %23 = sbr.rel (0) target = $region9
    $region8: #{combined_video_rnn_forward.1} parent=1 // pred_region
      _
    $region9: #{combined_video_rnn_forward.1} parent=1 // pred_fallthru
      _
    // Predicated region
    $region10: #{combined_video_rnn_forward.1} parent=1 // pred_check
      _
    $region11: #{combined_video_rnn_forward.1} parent=1 // pred_check_branch
      %25 = sbr.rel (0) target = $region13
    $region12: #{combined_video_rnn_forward.1} parent=1 // pred_region
      _
    $region13: #{combined_video_rnn_forward.1} parent=1 // pred_fallthru
      _
    // Predicated region
    $region14: #{combined_video_rnn_forward.1} parent=1 // pred_check
      _
    $region15: #{combined_video_rnn_forward.1} parent=1 // pred_check_branch
      %27 = sbr.rel (0) target = $region17
    $region16: #{combined_video_rnn_forward.1} parent=1 // pred_region
      _
    $region17: #{combined_video_rnn_forward.1} parent=1 // pred_fallthru
      _
    // Predicated region
    $region18: #{combined_video_rnn_forward.1} parent=1 // pred_check
      _
    $region19: #{combined_video_rnn_forward.1} parent=1 // pred_check_branch
      %29 = sbr.rel (0) target = $region21
    $region20: #{combined_video_rnn_forward.1} parent=1 // pred_region
      _
    $region21: #{combined_video_rnn_forward.1} parent=1 // pred_fallthru
      _
    // Predicated region
    $region22: #{combined_video_rnn_forward.1} parent=1 // pred_check
      _
    $region23: #{combined_video_rnn_forward.1} parent=1 // pred_check_branch
      %31 = sbr.rel (0) target = $region25
    $region24: #{combined_video_rnn_forward.1} parent=1 // pred_region
      _
    $region25: #{combined_video_rnn_forward.1} parent=1 // pred_fallthru
      _
    // Predicated region
    $region26: #{combined_video_rnn_forward.1} parent=1 // pred_check
      _
    $region27: #{combined_video_rnn_forward.1} parent=1 // pred_check_branch
      %33 = sbr.rel (0) target = $region29
    $region28: #{combined_video_rnn_forward.1} parent=1 // pred_region
      _
    $region29: #{combined_video_rnn_forward.1} parent=1 // pred_fallthru
      _
    // Predicated region
    $region30: #{combined_video_rnn_forward.1} parent=1 // pred_check
      _
    $region31: #{combined_video_rnn_forward.1} parent=1 // pred_check_branch
      %35 = sbr.rel (0) target = $region33
    $region32: #{combined_video_rnn_forward.1} parent=1 // pred_region
      _
    $region33: #{combined_video_rnn_forward.1} parent=1 // pred_fallthru
      _
    // Predicated region
    $region34: #{combined_video_rnn_forward.1} parent=1 // pred_check
      _
    $region35: #{combined_video_rnn_forward.1} parent=1 // pred_check_branch
      %37 = sbr.rel (0) target = $region37
    $region36: #{combined_video_rnn_forward.1} parent=1 // pred_region
      _
    $region37: #{combined_video_rnn_forward.1} parent=1 // pred_fallthru
      _
    // Predicated region
    $region38: #{combined_video_rnn_forward.1} parent=1 // pred_check
      _
    $region39: #{combined_video_rnn_forward.1} parent=1 // pred_check_branch
      %39 = sbr.rel (0) target = $region41
    $region40: #{combined_video_rnn_forward.1} parent=1 // pred_region
      _
    $region41: #{combined_video_rnn_forward.1} parent=1 // pred_fallthru
      _
    // Predicated region
    $region42: #{combined_video_rnn_forward.1} parent=1 // pred_check
      _
    $region43: #{combined_video_rnn_forward.1} parent=1 // pred_check_branch
      %41 = sbr.rel (0) target = $region45
    $region44: #{combined_video_rnn_forward.1} parent=1 // pred_region
      _
    $region45: #{combined_video_rnn_forward.1} parent=1 // pred_fallthru
      _
    // Predicated region
    $region46: #{combined_video_rnn_forward.1} parent=1 // pred_check
      _
    $region47: #{combined_video_rnn_forward.1} parent=1 // pred_check_branch
      %43 = sbr.rel (0) target = $region49
    $region48: #{combined_video_rnn_forward.1} parent=1 // pred_region
      _
    $region49: #{combined_video_rnn_forward.1} parent=1 // pred_fallthru
      _
    %v44 = vld [vmem:[%s0] sm:$0xff]
    %v45 = vld [vmem:[%s0 + $0x8] sm:$0xff]
    %v46 = vld [vmem:[%s0 + $0x10] sm:$0xff]
    %v47 = vld [vmem:[%s0 + $0x18] sm:$0xff]
    %v48 = vld [vmem:[%s0 + $0x20] sm:$0xff]
    %v49 = vld [vmem:[%s0 + $0x28] sm:$0xff]
    %v50 = vld [vmem:[%s0 + $0x30] sm:$0xff]
    %v51 = vld [vmem:[%s0 + $0x38] sm:$0xff]
    %v52 = vld [vmem:[%s1] sm:$0xff]
    %v53 = vld [vmem:[%s1 + $0x8] sm:$0xff]
    %v54 = vld [vmem:[%s1 + $0x10] sm:$0xff]
    %v55 = vld [vmem:[%s1 + $0x18] sm:$0xff]
    %v56 = vld [vmem:[%s2] sm:$0x3]
    %v58 = vlaneseq
    %v59 = vshrl.u32 %v58, 7
    %v60 = vsub.s32 0, %v59
    %v61 = vrot.slane %v56, %v60
    %v62 = vlaneseq
    %v63 = vshrl.u32 %v62, 7
    %v64 = vsub.s32 1, %v63
    %v65 = vrot.slane %v56, %v64
    %vm68 = vcmask 130048
    %v70 = vsel %vm68, %v44, 0
    %v73 = vsel %vm68, %v45, 0
    %v76 = vsel %vm68, %v46, 0
    %v79 = vsel %vm68, %v47, 0
    %v82 = vsel %vm68, %v48, 0
    %v85 = vsel %vm68, %v49, 0
    %v88 = vsel %vm68, %v50, 0
    %v91 = vsel %vm68, %v51, 0
    %93 = vmatprep.subr.mxu0 %v53
    %94 = vmatpush1.msra.mxu0 %v52
    %95 = vmatprep.subr.mxu0 %v55
    %96 = vmatpush1.msra.mxu0 %v54
    %97 = vmatprep.subr.mxu0 0.0
    %98 = vmatpush1.msra.mxu0 0.0
    %99 = vmatprep.subr.mxu0 0.0
    %100 = vmatpush1.msra.mxu0 0.0
    %101 = vmatprep.subr.mxu0 0.0
    %102 = vmatpush1.msra.mxu0 0.0
    %103 = vmatprep.subr.mxu0 0.0
    %104 = vmatpush1.msra.mxu0 0.0
    %105 = vmatprep.subr.mxu0 0.0
    %106 = vmatpush1.msra.mxu0 0.0
    %107 = vmatprep.subr.mxu0 0.0
    %108 = vmatpush1.msra.mxu0 0.0
    %109 = vmatprep.subr.mxu0 0.0
    %110 = vmatpush1.msra.mxu0 0.0
    %111 = vmatprep.subr.mxu0 0.0
    %112 = vmatpush1.msra.mxu0 0.0
    %113 = vmatprep.subr.mxu0 0.0
    %114 = vmatpush1.msra.mxu0 0.0
    %115 = vmatprep.subr.mxu0 0.0
    %116 = vmatpush1.msra.mxu0 0.0
    %117 = vmatprep.subr.mxu0 0.0
    %118 = vmatpush1.msra.mxu0 0.0
    %119 = vmatprep.subr.mxu0 0.0
    %120 = vmatpush1.msra.mxu0 0.0
    %121 = vmatprep.subr.mxu0 0.0
    %122 = vmatpush1.msra.mxu0 0.0
    %123 = vmatprep.subr.mxu0 0.0
    %124 = vmatpush1.msra.mxu0 0.0
    %125 = vmatprep.subr.mxu0 0.0
    %126 = vmatpush1.msra.mxu0 0.0
    %127 = vmatprep.subr.mxu0 0.0
    %128 = vmatpush1.msra.mxu0 0.0
    %129 = vmatprep.subr.mxu0 0.0
    %130 = vmatpush1.msra.mxu0 0.0
    %131 = vmatprep.subr.mxu0 0.0
    %132 = vmatpush1.msra.mxu0 0.0
    %133 = vmatprep.subr.mxu0 0.0
    %134 = vmatpush1.msra.mxu0 0.0
    %135 = vmatprep.subr.mxu0 0.0
    %136 = vmatpush1.msra.mxu0 0.0
    %137 = vmatprep.subr.mxu0 0.0
    %138 = vmatpush1.msra.mxu0 0.0
    %139 = vmatprep.subr.mxu0 0.0
    %140 = vmatpush1.msra.mxu0 0.0
    %141 = vmatprep.subr.mxu0 0.0
    %142 = vmatpush1.msra.mxu0 0.0
    %143 = vmatprep.subr.mxu0 0.0
    %144 = vmatpush1.msra.mxu0 0.0
    %145 = vmatprep.subr.mxu0 0.0
    %146 = vmatpush1.msra.mxu0 0.0
    %147 = vmatprep.subr.mxu0 0.0
    %148 = vmatpush1.msra.mxu0 0.0
    %149 = vmatprep.subr.mxu0 0.0
    %150 = vmatpush1.msra.mxu0 0.0
    %151 = vmatprep.subr.mxu0 0.0
    %152 = vmatpush1.msra.mxu0 0.0
    %153 = vmatprep.subr.mxu0 0.0
    %154 = vmatpush1.msra.mxu0 0.0
    %155 = vmatprep.subr.mxu0 0.0
    %156 = vmatpush1.msra.mxu0 0.0
    %157 = vmatprep.mubr.f32.mxu0 0.0
    %158 = vmatmul.mubr.f32.gmra.mrb[0].mxu0 %v70
    %v159 = vpop.f32.mrb[0].mxu0
    %v160 = vadd.f32 %v61, %v159
    %v161 = vpop.f32.mrb[0].mxu0
    %v162 = vadd.f32 %v65, %v161
    %163 = vmatprep.mubr.f32.mxu0 0.0
    %164 = vmatmul.mubr.f32.gmra.mrb[0].mxu0 %v73
    %v165 = vpop.f32.mrb[0].mxu0
    %v166 = vadd.f32 %v61, %v165
    %v167 = vpop.f32.mrb[0].mxu0
    %v168 = vadd.f32 %v65, %v167
    %169 = vmatprep.mubr.f32.mxu0 0.0
    %170 = vmatmul.mubr.f32.gmra.mrb[0].mxu0 %v76
    %v171 = vpop.f32.mrb[0].mxu0
    %v172 = vadd.f32 %v61, %v171
    %v173 = vpop.f32.mrb[0].mxu0
    %v174 = vadd.f32 %v65, %v173
    %175 = vmatprep.mubr.f32.mxu0 0.0
    %176 = vmatmul.mubr.f32.gmra.mrb[0].mxu0 %v79
    %v177 = vpop.f32.mrb[0].mxu0
    %v178 = vadd.f32 %v61, %v177
    %v179 = vpop.f32.mrb[0].mxu0
    %v180 = vadd.f32 %v65, %v179
    %181 = vmatprep.mubr.f32.mxu0 0.0
    %182 = vmatmul.mubr.f32.gmra.mrb[0].mxu0 %v82
    %v183 = vpop.f32.mrb[0].mxu0
    %v184 = vadd.f32 %v61, %v183
    %v185 = vpop.f32.mrb[0].mxu0
    %v186 = vadd.f32 %v65, %v185
    %187 = vmatprep.mubr.f32.mxu0 0.0
    %188 = vmatmul.mubr.f32.gmra.mrb[0].mxu0 %v85
    %v189 = vpop.f32.mrb[0].mxu0
    %v190 = vadd.f32 %v61, %v189
    %v191 = vpop.f32.mrb[0].mxu0
    %v192 = vadd.f32 %v65, %v191
    %193 = vmatprep.mubr.f32.mxu0 0.0
    %194 = vmatmul.mubr.f32.gmra.mrb[0].mxu0 %v88
    %v195 = vpop.f32.mrb[0].mxu0
    %v196 = vadd.f32 %v61, %v195
    %v197 = vpop.f32.mrb[0].mxu0
    %v198 = vadd.f32 %v65, %v197
    %199 = vmatprep.mubr.f32.mxu0 0.0
    %200 = vmatmul.mubr.f32.gmra.mrb[0].mxu0 %v91
    %v201 = vpop.f32.mrb[0].mxu0
    %v202 = vadd.f32 %v61, %v201
    %v203 = vpop.f32.mrb[0].mxu0
    %v204 = vadd.f32 %v65, %v203
    %205 = vdwg.mxu0
    %v206 = vsub.f32 %v160, %v162
    %v207 = vsub.f32 %v166, %v168
    %v208 = vsub.f32 %v172, %v174
    %v209 = vsub.f32 %v178, %v180
    %v210 = vsub.f32 %v184, %v186
    %v211 = vsub.f32 %v190, %v192
    %v212 = vsub.f32 %v196, %v198
    %v213 = vsub.f32 %v202, %v204
    %v214 = vmul.f32 %v206, %v206
    %v215 = vmul.f32 %v207, %v207
    %v216 = vmul.f32 %v208, %v208
    %v217 = vmul.f32 %v209, %v209
    %v218 = vmul.f32 %v210, %v210
    %v219 = vmul.f32 %v211, %v211
    %v220 = vmul.f32 %v212, %v212
    %v221 = vmul.f32 %v213, %v213
    %v222 = vld [vmem:[%s9] sm:$0xff]
    %v223 = vld [vmem:[%s9 + $0x8] sm:$0xff]
    %v224 = vld [vmem:[%s9 + $0x10] sm:$0xff]
    %v225 = vld [vmem:[%s9 + $0x18] sm:$0xff]
    %v226 = vld [vmem:[%s9 + $0x20] sm:$0xff]
    %v227 = vld [vmem:[%s9 + $0x28] sm:$0xff]
    %v228 = vld [vmem:[%s9 + $0x30] sm:$0xff]
    %v229 = vld [vmem:[%s9 + $0x38] sm:$0xff]
    %v230 = vld [vmem:[%s9 + $0x40] sm:$0xff]
    %v231 = vld [vmem:[%s9 + $0x48] sm:$0xff]
    %v232 = vld [vmem:[%s9 + $0x50] sm:$0xff]
    %v233 = vld [vmem:[%s9 + $0x58] sm:$0xff]
    %v234 = vld [vmem:[%s9 + $0x60] sm:$0xff]
    %v235 = vld [vmem:[%s9 + $0x68] sm:$0xff]
    %v236 = vld [vmem:[%s9 + $0x70] sm:$0xff]
    %v237 = vld [vmem:[%s9 + $0x78] sm:$0xff]
    %238 = vmatprep.subr.mxu0 0.0
    %239 = vmatpush1.msra.mxu0 %v222
    %240 = vmatprep.subr.mxu0 0.0
    %241 = vmatpush1.msra.mxu0 %v223
    %242 = vmatprep.subr.mxu0 0.0
    %243 = vmatpush1.msra.mxu0 %v224
    %244 = vmatprep.subr.mxu0 0.0
    %245 = vmatpush1.msra.mxu0 %v225
    %246 = vmatprep.subr.mxu0 0.0
    %247 = vmatpush1.msra.mxu0 %v226
    %248 = vmatprep.subr.mxu0 0.0
    %249 = vmatpush1.msra.mxu0 %v227
    %250 = vmatprep.subr.mxu0 0.0
    %251 = vmatpush1.msra.mxu0 %v228
    %252 = vmatprep.subr.mxu0 0.0
    %253 = vmatpush1.msra.mxu0 %v229
    %254 = vmatprep.subr.mxu0 0.0
    %255 = vmatpush1.msra.mxu0 %v230
    %256 = vmatprep.subr.mxu0 0.0
    %257 = vmatpush1.msra.mxu0 %v231
    %258 = vmatprep.subr.mxu0 0.0
    %259 = vmatpush1.msra.mxu0 %v232
    %260 = vmatprep.subr.mxu0 0.0
    %261 = vmatpush1.msra.mxu0 %v233
    %262 = vmatprep.subr.mxu0 0.0
    %263 = vmatpush1.msra.mxu0 %v234
    %264 = vmatprep.subr.mxu0 0.0
    %265 = vmatpush1.msra.mxu0 %v235
    %266 = vmatprep.subr.mxu0 0.0
    %267 = vmatpush1.msra.mxu0 %v236
    %268 = vmatprep.subr.mxu0 0.0
    %269 = vmatpush1.msra.mxu0 %v237
    %270 = vmatprep.subr.mxu0 0.0
    %271 = vmatpush1.msra.mxu0 0.0
    %272 = vmatprep.subr.mxu0 0.0
    %273 = vmatpush1.msra.mxu0 0.0
    %274 = vmatprep.subr.mxu0 0.0
    %275 = vmatpush1.msra.mxu0 0.0
    %276 = vmatprep.subr.mxu0 0.0
    %277 = vmatpush1.msra.mxu0 0.0
    %278 = vmatprep.subr.mxu0 0.0
    %279 = vmatpush1.msra.mxu0 0.0
    %280 = vmatprep.subr.mxu0 0.0
    %281 = vmatpush1.msra.mxu0 0.0
    %282 = vmatprep.subr.mxu0 0.0
    %283 = vmatpush1.msra.mxu0 0.0
    %284 = vmatprep.subr.mxu0 0.0
    %285 = vmatpush1.msra.mxu0 0.0
    %286 = vmatprep.subr.mxu0 0.0
    %287 = vmatpush1.msra.mxu0 0.0
    %288 = vmatprep.subr.mxu0 0.0
    %289 = vmatpush1.msra.mxu0 0.0
    %290 = vmatprep.subr.mxu0 0.0
    %291 = vmatpush1.msra.mxu0 0.0
    %292 = vmatprep.subr.mxu0 0.0
    %293 = vmatpush1.msra.mxu0 0.0
    %294 = vmatprep.subr.mxu0 0.0
    %295 = vmatpush1.msra.mxu0 0.0
    %296 = vmatprep.subr.mxu0 0.0
    %297 = vmatpush1.msra.mxu0 0.0
    %298 = vmatprep.subr.mxu0 0.0
    %299 = vmatpush1.msra.mxu0 0.0
    %300 = vmatprep.subr.mxu0 0.0
    %301 = vmatpush1.msra.mxu0 0.0
    %302 = vmatprep.mubr.f32.mxu0 0.0
    %303 = vmatmul.mubr.f32.gmra.mrb[0].mxu0 %v214
    %v304 = vpop.f32.mrb[0].mxu0
    %v305 = vadd.f32 1e-05, %v304
    %v306 = vpop.f32.mrb[0].mxu0
    %307 = vmatprep.mubr.f32.mxu0 0.0
    %308 = vmatmul.mubr.f32.gmra.mrb[0].mxu0 %v215
    %v309 = vpop.f32.mrb[0].mxu0
    %v310 = vadd.f32 1e-05, %v309
    %v311 = vpop.f32.mrb[0].mxu0
    %312 = vmatprep.mubr.f32.mxu0 0.0
    %313 = vmatmul.mubr.f32.gmra.mrb[0].mxu0 %v216
    %v314 = vpop.f32.mrb[0].mxu0
    %v315 = vadd.f32 1e-05, %v314
    %v316 = vpop.f32.mrb[0].mxu0
    %317 = vmatprep.mubr.f32.mxu0 0.0
    %318 = vmatmul.mubr.f32.gmra.mrb[0].mxu0 %v217
    %v319 = vpop.f32.mrb[0].mxu0
    %v320 = vadd.f32 1e-05, %v319
    %v321 = vpop.f32.mrb[0].mxu0
    %322 = vmatprep.mubr.f32.mxu0 0.0
    %323 = vmatmul.mubr.f32.gmra.mrb[0].mxu0 %v218
    %v324 = vpop.f32.mrb[0].mxu0
    %v325 = vadd.f32 1e-05, %v324
    %v326 = vpop.f32.mrb[0].mxu0
    %327 = vmatprep.mubr.f32.mxu0 0.0
    %328 = vmatmul.mubr.f32.gmra.mrb[0].mxu0 %v219
    %v329 = vpop.f32.mrb[0].mxu0
    %v330 = vadd.f32 1e-05, %v329
    %v331 = vpop.f32.mrb[0].mxu0
    %332 = vmatprep.mubr.f32.mxu0 0.0
    %333 = vmatmul.mubr.f32.gmra.mrb[0].mxu0 %v220
    %v334 = vpop.f32.mrb[0].mxu0
    %v335 = vadd.f32 1e-05, %v334
    %v336 = vpop.f32.mrb[0].mxu0
    %337 = vmatprep.mubr.f32.mxu0 0.0
    %338 = vmatmul.mubr.f32.gmra.mrb[0].mxu0 %v221
    %v339 = vpop.f32.mrb[0].mxu0
    %v340 = vadd.f32 1e-05, %v339
    %v341 = vpop.f32.mrb[0].mxu0
    %342 = vdwg.mxu0
    %v343 = vrsqrt.pop %v305
    %v344 = vrsqrt.pop %v310
    %v345 = vrsqrt.pop %v315
    %v346 = vrsqrt.pop %v320
    %v347 = vrsqrt.pop %v325
    %v348 = vrsqrt.pop %v330
    %v349 = vrsqrt.pop %v335
    %v350 = vrsqrt.pop %v340
    %v351 = vmul.f32 %v206, %v343
    %v352 = vmul.f32 %v207, %v344
    %v353 = vmul.f32 %v208, %v345
    %v354 = vmul.f32 %v209, %v346
    %v355 = vmul.f32 %v210, %v347
    %v356 = vmul.f32 %v211, %v348
    %v357 = vmul.f32 %v212, %v349
    %v358 = vmul.f32 %v213, %v350
    %v359 = vld [vmem:[%s3] sm:$0x1]
    %v361 = vlaneseq
    %v362 = vshrl.u32 %v361, 7
    %v363 = vsub.s32 0, %v362
    %v364 = vrot.slane %v359, %v363
    %v366 = vmul.f32 %v351, %v364
    %v367 = vmul.f32 %v352, %v364
    %v368 = vmul.f32 %v353, %v364
    %v369 = vmul.f32 %v354, %v364
    %v370 = vmul.f32 %v355, %v364
    %v371 = vmul.f32 %v356, %v364
    %v372 = vmul.f32 %v357, %v364
    %v373 = vmul.f32 %v358, %v364
    %v374 = vld [vmem:[%s4] sm:$0x1]
    %v376 = vlaneseq
    %v377 = vshrl.u32 %v376, 7
    %v378 = vsub.s32 0, %v377
    %v379 = vrot.slane %v374, %v378
    %v381 = vadd.f32 %v366, %v379
    %v382 = vadd.f32 %v367, %v379
    %v383 = vadd.f32 %v368, %v379
    %v384 = vadd.f32 %v369, %v379
    %v385 = vadd.f32 %v370, %v379
    %v386 = vadd.f32 %v371, %v379
    %v387 = vadd.f32 %v372, %v379
    %v388 = vadd.f32 %v373, %v379
    %389 = vst [vmem:[#allocation2] sm:$0xff] %v381
    %390 = vst [vmem:[#allocation2 + $0x8] sm:$0xff] %v382
    %391 = vst [vmem:[#allocation2 + $0x10] sm:$0xff] %v383
    %392 = vst [vmem:[#allocation2 + $0x18] sm:$0xff] %v384
    %393 = vst [vmem:[#allocation2 + $0x20] sm:$0xff] %v385
    %394 = vst [vmem:[#allocation2 + $0x28] sm:$0xff] %v386
    %395 = vst [vmem:[#allocation2 + $0x30] sm:$0xff] %v387
    %396 = vst [vmem:[#allocation2 + $0x38] sm:$0xff] %v388
    %v397 = vld [vmem:[#allocation2] sm:$0xff]
    %v398 = vld [vmem:[%s5] sm:$0xff]
    %v399 = vld [vmem:[%s5 + $0x8] sm:$0xff]
    %v400 = vld [vmem:[%s5 + $0x10] sm:$0xff]
    %v401 = vld [vmem:[%s5 + $0x18] sm:$0xff]
    %v402 = vld [vmem:[%s5 + $0x20] sm:$0xff]
    %v403 = vld [vmem:[%s5 + $0x28] sm:$0xff]
    %v404 = vld [vmem:[%s5 + $0x30] sm:$0xff]
    %v405 = vld [vmem:[%s5 + $0x38] sm:$0xff]
    %v406 = vld [vmem:[%s6] sm:$0x3]
    %v408 = vlaneseq
    %v409 = vshrl.u32 %v408, 7
    %v410 = vsub.s32 0, %v409
    %v411 = vrot.slane %v406, %v410
    %v412 = vlaneseq
    %v413 = vshrl.u32 %v412, 7
    %v414 = vsub.s32 1, %v413
    %v415 = vrot.slane %v406, %v414
    %vm418 = vcmask 261120
    %v420 = vsel %vm418, 0.0, 0
    %422 = vmatprep.subr.mxu0 %v399
    %423 = vmatpush1.msra.mxu0 %v398
    %424 = vmatprep.subr.mxu0 %v401
    %425 = vmatpush1.msra.mxu0 %v400
    %426 = vmatprep.subr.mxu0 %v403
    %427 = vmatpush1.msra.mxu0 %v402
    %428 = vmatprep.subr.mxu0 %v405
    %429 = vmatpush1.msra.mxu0 %v404
    %430 = vmatprep.subr.mxu0 0.0
    %431 = vmatpush1.msra.mxu0 0.0
    %432 = vmatprep.subr.mxu0 0.0
    %433 = vmatpush1.msra.mxu0 0.0
    %434 = vmatprep.subr.mxu0 0.0
    %435 = vmatpush1.msra.mxu0 0.0
    %436 = vmatprep.subr.mxu0 0.0
    %437 = vmatpush1.msra.mxu0 0.0
    %438 = vmatprep.subr.mxu0 0.0
    %439 = vmatpush1.msra.mxu0 0.0
    %440 = vmatprep.subr.mxu0 0.0
    %441 = vmatpush1.msra.mxu0 0.0
    %442 = vmatprep.subr.mxu0 0.0
    %443 = vmatpush1.msra.mxu0 0.0
    %444 = vmatprep.subr.mxu0 0.0
    %445 = vmatpush1.msra.mxu0 0.0
    %446 = vmatprep.subr.mxu0 0.0
    %447 = vmatpush1.msra.mxu0 0.0
    %448 = vmatprep.subr.mxu0 0.0
    %449 = vmatpush1.msra.mxu0 0.0
    %450 = vmatprep.subr.mxu0 0.0
    %451 = vmatpush1.msra.mxu0 0.0
    %452 = vmatprep.subr.mxu0 0.0
    %453 = vmatpush1.msra.mxu0 0.0
    %454 = vmatprep.subr.mxu0 0.0
    %455 = vmatpush1.msra.mxu0 0.0
    %456 = vmatprep.subr.mxu0 0.0
    %457 = vmatpush1.msra.mxu0 0.0
    %458 = vmatprep.subr.mxu0 0.0
    %459 = vmatpush1.msra.mxu0 0.0
    %460 = vmatprep.subr.mxu0 0.0
    %461 = vmatpush1.msra.mxu0 0.0
    %462 = vmatprep.subr.mxu0 0.0
    %463 = vmatpush1.msra.mxu0 0.0
    %464 = vmatprep.subr.mxu0 0.0
    %465 = vmatpush1.msra.mxu0 0.0
    %466 = vmatprep.subr.mxu0 0.0
    %467 = vmatpush1.msra.mxu0 0.0
    %468 = vmatprep.subr.mxu0 0.0
    %469 = vmatpush1.msra.mxu0 0.0
    %470 = vmatprep.subr.mxu0 0.0
    %471 = vmatpush1.msra.mxu0 0.0
    %472 = vmatprep.subr.mxu0 0.0
    %473 = vmatpush1.msra.mxu0 0.0
    %474 = vmatprep.subr.mxu0 0.0
    %475 = vmatpush1.msra.mxu0 0.0
    %476 = vmatprep.subr.mxu0 0.0
    %477 = vmatpush1.msra.mxu0 0.0
    %478 = vmatprep.subr.mxu0 0.0
    %479 = vmatpush1.msra.mxu0 0.0
    %480 = vmatprep.subr.mxu0 0.0
    %481 = vmatpush1.msra.mxu0 0.0
    %482 = vmatprep.subr.mxu0 0.0
    %483 = vmatpush1.msra.mxu0 0.0
    %484 = vmatprep.subr.mxu0 0.0
    %485 = vmatpush1.msra.mxu0 0.0
    %486 = vmatprep.mubr.f32.mxu0 0.0
    %487 = vmatmul.mubr.f32.gmra.mrb[0].mxu0 %v420
    %v488 = vpop.f32.mrb[0].mxu0
    %v489 = vadd.f32 %v411, %v488
    %v490 = vpop.f32.mrb[0].mxu0
    %v491 = vadd.f32 %v415, %v490
    %492 = vdwg.mxu0
    %v493 = vsub.f32 %v489, %v491
    %v494 = vmul.f32 %v493, %v493
    %v495 = vld [vmem:[%s9] sm:$0xff]
    %v496 = vld [vmem:[%s9 + $0x8] sm:$0xff]
    %v497 = vld [vmem:[%s9 + $0x10] sm:$0xff]
    %v498 = vld [vmem:[%s9 + $0x18] sm:$0xff]
    %v499 = vld [vmem:[%s9 + $0x20] sm:$0xff]
    %v500 = vld [vmem:[%s9 + $0x28] sm:$0xff]
    %v501 = vld [vmem:[%s9 + $0x30] sm:$0xff]
    %v502 = vld [vmem:[%s9 + $0x38] sm:$0xff]
    %v503 = vld [vmem:[%s9 + $0x40] sm:$0xff]
    %v504 = vld [vmem:[%s9 + $0x48] sm:$0xff]
    %v505 = vld [vmem:[%s9 + $0x50] sm:$0xff]
    %v506 = vld [vmem:[%s9 + $0x58] sm:$0xff]
    %v507 = vld [vmem:[%s9 + $0x60] sm:$0xff]
    %v508 = vld [vmem:[%s9 + $0x68] sm:$0xff]
    %v509 = vld [vmem:[%s9 + $0x70] sm:$0xff]
    %v510 = vld [vmem:[%s9 + $0x78] sm:$0xff]
    %511 = vmatprep.subr.mxu0 0.0
    %512 = vmatpush1.msra.mxu0 %v495
    %513 = vmatprep.subr.mxu0 0.0
    %514 = vmatpush1.msra.mxu0 %v496
    %515 = vmatprep.subr.mxu0 0.0
    %516 = vmatpush1.msra.mxu0 %v497
    %517 = vmatprep.subr.mxu0 0.0
    %518 = vmatpush1.msra.mxu0 %v498
    %519 = vmatprep.subr.mxu0 0.0
    %520 = vmatpush1.msra.mxu0 %v499
    %521 = vmatprep.subr.mxu0 0.0
    %522 = vmatpush1.msra.mxu0 %v500
    %523 = vmatprep.subr.mxu0 0.0
    %524 = vmatpush1.msra.mxu0 %v501
    %525 = vmatprep.subr.mxu0 0.0
    %526 = vmatpush1.msra.mxu0 %v502
    %527 = vmatprep.subr.mxu0 0.0
    %528 = vmatpush1.msra.mxu0 %v503
    %529 = vmatprep.subr.mxu0 0.0
    %530 = vmatpush1.msra.mxu0 %v504
    %531 = vmatprep.subr.mxu0 0.0
    %532 = vmatpush1.msra.mxu0 %v505
    %533 = vmatprep.subr.mxu0 0.0
    %534 = vmatpush1.msra.mxu0 %v506
    %535 = vmatprep.subr.mxu0 0.0
    %536 = vmatpush1.msra.mxu0 %v507
    %537 = vmatprep.subr.mxu0 0.0
    %538 = vmatpush1.msra.mxu0 %v508
    %539 = vmatprep.subr.mxu0 0.0
    %540 = vmatpush1.msra.mxu0 %v509
    %541 = vmatprep.subr.mxu0 0.0
    %542 = vmatpush1.msra.mxu0 %v510
    %543 = vmatprep.subr.mxu0 0.0
    %544 = vmatpush1.msra.mxu0 0.0
    %545 = vmatprep.subr.mxu0 0.0
    %546 = vmatpush1.msra.mxu0 0.0
    %547 = vmatprep.subr.mxu0 0.0
    %548 = vmatpush1.msra.mxu0 0.0
    %549 = vmatprep.subr.mxu0 0.0
    %550 = vmatpush1.msra.mxu0 0.0
    %551 = vmatprep.subr.mxu0 0.0
    %552 = vmatpush1.msra.mxu0 0.0
    %553 = vmatprep.subr.mxu0 0.0
    %554 = vmatpush1.msra.mxu0 0.0
    %555 = vmatprep.subr.mxu0 0.0
    %556 = vmatpush1.msra.mxu0 0.0
    %557 = vmatprep.subr.mxu0 0.0
    %558 = vmatpush1.msra.mxu0 0.0
    %559 = vmatprep.subr.mxu0 0.0
    %560 = vmatpush1.msra.mxu0 0.0
    %561 = vmatprep.subr.mxu0 0.0
    %562 = vmatpush1.msra.mxu0 0.0
    %563 = vmatprep.subr.mxu0 0.0
    %564 = vmatpush1.msra.mxu0 0.0
    %565 = vmatprep.subr.mxu0 0.0
    %566 = vmatpush1.msra.mxu0 0.0
    %567 = vmatprep.subr.mxu0 0.0
    %568 = vmatpush1.msra.mxu0 0.0
    %569 = vmatprep.subr.mxu0 0.0
    %570 = vmatpush1.msra.mxu0 0.0
    %571 = vmatprep.subr.mxu0 0.0
    %572 = vmatpush1.msra.mxu0 0.0
    %573 = vmatprep.subr.mxu0 0.0
    %574 = vmatpush1.msra.mxu0 0.0
    %575 = vmatprep.mubr.f32.mxu0 0.0
    %576 = vmatmul.mubr.f32.gmra.mrb[0].mxu0 %v494
    %v577 = vpop.f32.mrb[0].mxu0
    %v578 = vadd.f32 1e-05, %v577
    %v579 = vpop.f32.mrb[0].mxu0
    %580 = vdwg.mxu0
    %v581 = vrsqrt.pop %v578
    %v582 = vmul.f32 %v493, %v581
    %v583 = vld [vmem:[%s7] sm:$0x1]
    %v585 = vlaneseq
    %v586 = vshrl.u32 %v585, 7
    %v587 = vsub.s32 0, %v586
    %v588 = vrot.slane %v583, %v587
    %v590 = vmul.f32 %v582, %v588
    %v591 = vld [vmem:[%s8] sm:$0x1]
    %v593 = vlaneseq
    %v594 = vshrl.u32 %v593, 7
    %v595 = vsub.s32 0, %v594
    %v596 = vrot.slane %v591, %v595
    %v598 = vadd.f32 %v590, %v596
    %v599 = vadd.f32 %v397, %v598
    %v600 = vxor.u32 %v599, 2147483648
    %v601 = vmul.f32 %v600, 1.442695
    %v602 = vpow.pop %v601
    %v603 = vadd.f32 %v602, 1.0
    %v604 = vrcp.pop %v603
    %v605 = vmul.f32 1.0, %v604
    %v606 = vtanh.pop %v599
    %v607 = vmul.f32 %v605, 0.0
    %609 = vrot.lane.b32.xlu0 %v606, 64
    %v610 = vpop.permute.xlu0 %609
    %v612 = vmul.f32 %v605, %v610
    %614 = vrot.lane.b32.xlu0 %v612, 96
    %v615 = vpop.permute.xlu0 %614
    %v617 = vadd.f32 %v607, %v615
    %v618 = vtanh.pop %v617
    %620 = vrot.lane.b32.xlu0 %v618, 64
    %v621 = vpop.permute.xlu0 %620
    %v623 = vmul.f32 %v605, %v621
    %625 = vrot.lane.b32.xlu0 %v623, 64
    %v626 = vpop.permute.xlu0 %625
    %628 = vst.msk [vmem:[#allocation3] sm:$0xff] %vm418, %v626
    %s629 = scalar_lea.vmem [#allocation2], 8
    %v630 = vld [vmem:[%s629] sm:$0xff]
    %v631 = vld [vmem:[%s5] sm:$0xff]
    %v632 = vld [vmem:[%s5 + $0x8] sm:$0xff]
    %v633 = vld [vmem:[%s5 + $0x10] sm:$0xff]
    %v634 = vld [vmem:[%s5 + $0x18] sm:$0xff]
    %v635 = vld [vmem:[%s5 + $0x20] sm:$0xff]
    %v636 = vld [vmem:[%s5 + $0x28] sm:$0xff]
    %v637 = vld [vmem:[%s5 + $0x30] sm:$0xff]
    %v638 = vld [vmem:[%s5 + $0x38] sm:$0xff]
    %v639 = vld [vmem:[%s6] sm:$0x3]
    %v641 = vlaneseq
    %v642 = vshrl.u32 %v641, 7
    %v643 = vsub.s32 0, %v642
    %v644 = vrot.slane %v639, %v643
    %v645 = vlaneseq
    %v646 = vshrl.u32 %v645, 7
    %v647 = vsub.s32 1, %v646
    %v648 = vrot.slane %v639, %v647
    %v651 = vsel %vm418, %v626, 0
    %653 = vmatprep.subr.mxu0 %v632
    %654 = vmatpush1.msra.mxu0 %v631
    %655 = vmatprep.subr.mxu0 %v634
    %656 = vmatpush1.msra.mxu0 %v633
    %657 = vmatprep.subr.mxu0 %v636
    %658 = vmatpush1.msra.mxu0 %v635
    %659 = vmatprep.subr.mxu0 %v638
    %660 = vmatpush1.msra.mxu0 %v637
    %661 = vmatprep.subr.mxu0 0.0
    %662 = vmatpush1.msra.mxu0 0.0
    %663 = vmatprep.subr.mxu0 0.0
    %664 = vmatpush1.msra.mxu0 0.0
    %665 = vmatprep.subr.mxu0 0.0
    %666 = vmatpush1.msra.mxu0 0.0
    %667 = vmatprep.subr.mxu0 0.0
    %668 = vmatpush1.msra.mxu0 0.0
    %669 = vmatprep.subr.mxu0 0.0
    %670 = vmatpush1.msra.mxu0 0.0
    %671 = vmatprep.subr.mxu0 0.0
    %672 = vmatpush1.msra.mxu0 0.0
    %673 = vmatprep.subr.mxu0 0.0
    %674 = vmatpush1.msra.mxu0 0.0
    %675 = vmatprep.subr.mxu0 0.0
    %676 = vmatpush1.msra.mxu0 0.0
    %677 = vmatprep.subr.mxu0 0.0
    %678 = vmatpush1.msra.mxu0 0.0
    %679 = vmatprep.subr.mxu0 0.0
    %680 = vmatpush1.msra.mxu0 0.0
    %681 = vmatprep.subr.mxu0 0.0
    %682 = vmatpush1.msra.mxu0 0.0
    %683 = vmatprep.subr.mxu0 0.0
    %684 = vmatpush1.msra.mxu0 0.0
    %685 = vmatprep.subr.mxu0 0.0
    %686 = vmatpush1.msra.mxu0 0.0
    %687 = vmatprep.subr.mxu0 0.0
    %688 = vmatpush1.msra.mxu0 0.0
    %689 = vmatprep.subr.mxu0 0.0
    %690 = vmatpush1.msra.mxu0 0.0
    %691 = vmatprep.subr.mxu0 0.0
    %692 = vmatpush1.msra.mxu0 0.0
    %693 = vmatprep.subr.mxu0 0.0
    %694 = vmatpush1.msra.mxu0 0.0
    %695 = vmatprep.subr.mxu0 0.0
    %696 = vmatpush1.msra.mxu0 0.0
    %697 = vmatprep.subr.mxu0 0.0
    %698 = vmatpush1.msra.mxu0 0.0
    %699 = vmatprep.subr.mxu0 0.0
    %700 = vmatpush1.msra.mxu0 0.0
    %701 = vmatprep.subr.mxu0 0.0
    %702 = vmatpush1.msra.mxu0 0.0
    %703 = vmatprep.subr.mxu0 0.0
    %704 = vmatpush1.msra.mxu0 0.0
    %705 = vmatprep.subr.mxu0 0.0
    %706 = vmatpush1.msra.mxu0 0.0
    %707 = vmatprep.subr.mxu0 0.0
    %708 = vmatpush1.msra.mxu0 0.0
    %709 = vmatprep.subr.mxu0 0.0
    %710 = vmatpush1.msra.mxu0 0.0
    %711 = vmatprep.subr.mxu0 0.0
    %712 = vmatpush1.msra.mxu0 0.0
    %713 = vmatprep.subr.mxu0 0.0
    %714 = vmatpush1.msra.mxu0 0.0
    %715 = vmatprep.subr.mxu0 0.0
    %716 = vmatpush1.msra.mxu0 0.0
    %717 = vmatprep.mubr.f32.mxu0 0.0
    %718 = vmatmul.mubr.f32.gmra.mrb[0].mxu0 %v651
    %v719 = vpop.f32.mrb[0].mxu0
    %v720 = vadd.f32 %v644, %v719
    %v721 = vpop.f32.mrb[0].mxu0
    %v722 = vadd.f32 %v648, %v721
    %723 = vdwg.mxu0
    %v724 = vsub.f32 %v720, %v722
    %v725 = vmul.f32 %v724, %v724
    %v726 = vld [vmem:[%s9] sm:$0xff]
    %v727 = vld [vmem:[%s9 + $0x8] sm:$0xff]
    %v728 = vld [vmem:[%s9 + $0x10] sm:$0xff]
    %v729 = vld [vmem:[%s9 + $0x18] sm:$0xff]
    %v730 = vld [vmem:[%s9 + $0x20] sm:$0xff]
    %v731 = vld [vmem:[%s9 + $0x28] sm:$0xff]
    %v732 = vld [vmem:[%s9 + $0x30] sm:$0xff]
    %v733 = vld [vmem:[%s9 + $0x38] sm:$0xff]
    %v734 = vld [vmem:[%s9 + $0x40] sm:$0xff]
    %v735 = vld [vmem:[%s9 + $0x48] sm:$0xff]
    %v736 = vld [vmem:[%s9 + $0x50] sm:$0xff]
    %v737 = vld [vmem:[%s9 + $0x58] sm:$0xff]
    %v738 = vld [vmem:[%s9 + $0x60] sm:$0xff]
    %v739 = vld [vmem:[%s9 + $0x68] sm:$0xff]
    %v740 = vld [vmem:[%s9 + $0x70] sm:$0xff]
    %v741 = vld [vmem:[%s9 + $0x78] sm:$0xff]
    %742 = vmatprep.subr.mxu0 0.0
    %743 = vmatpush1.msra.mxu0 %v726
    %744 = vmatprep.subr.mxu0 0.0
    %745 = vmatpush1.msra.mxu0 %v727
    %746 = vmatprep.subr.mxu0 0.0
    %747 = vmatpush1.msra.mxu0 %v728
    %748 = vmatprep.subr.mxu0 0.0
    %749 = vmatpush1.msra.mxu0 %v729
    %750 = vmatprep.subr.mxu0 0.0
    %751 = vmatpush1.msra.mxu0 %v730
    %752 = vmatprep.subr.mxu0 0.0
    %753 = vmatpush1.msra.mxu0 %v731
    %754 = vmatprep.subr.mxu0 0.0
    %755 = vmatpush1.msra.mxu0 %v732
    %756 = vmatprep.subr.mxu0 0.0
    %757 = vmatpush1.msra.mxu0 %v733
    %758 = vmatprep.subr.mxu0 0.0
    %759 = vmatpush1.msra.mxu0 %v734
    %760 = vmatprep.subr.mxu0 0.0
    %761 = vmatpush1.msra.mxu0 %v735
    %762 = vmatprep.subr.mxu0 0.0
    %763 = vmatpush1.msra.mxu0 %v736
    %764 = vmatprep.subr.mxu0 0.0
    %765 = vmatpush1.msra.mxu0 %v737
    %766 = vmatprep.subr.mxu0 0.0
    %767 = vmatpush1.msra.mxu0 %v738
    %768 = vmatprep.subr.mxu0 0.0
    %769 = vmatpush1.msra.mxu0 %v739
    %770 = vmatprep.subr.mxu0 0.0
    %771 = vmatpush1.msra.mxu0 %v740
    %772 = vmatprep.subr.mxu0 0.0
    %773 = vmatpush1.msra.mxu0 %v741
    %774 = vmatprep.subr.mxu0 0.0
    %775 = vmatpush1.msra.mxu0 0.0
    %776 = vmatprep.subr.mxu0 0.0
    %777 = vmatpush1.msra.mxu0 0.0
    %778 = vmatprep.subr.mxu0 0.0
    %779 = vmatpush1.msra.mxu0 0.0
    %780 = vmatprep.subr.mxu0 0.0
    %781 = vmatpush1.msra.mxu0 0.0
    %782 = vmatprep.subr.mxu0 0.0
    %783 = vmatpush1.msra.mxu0 0.0
    %784 = vmatprep.subr.mxu0 0.0
    %785 = vmatpush1.msra.mxu0 0.0
    %786 = vmatprep.subr.mxu0 0.0
    %787 = vmatpush1.msra.mxu0 0.0
    %788 = vmatprep.subr.mxu0 0.0
    %789 = vmatpush1.msra.mxu0 0.0
    %790 = vmatprep.subr.mxu0 0.0
    %791 = vmatpush1.msra.mxu0 0.0
    %792 = vmatprep.subr.mxu0 0.0
    %793 = vmatpush1.msra.mxu0 0.0
    %794 = vmatprep.subr.mxu0 0.0
    %795 = vmatpush1.msra.mxu0 0.0
    %796 = vmatprep.subr.mxu0 0.0
    %797 = vmatpush1.msra.mxu0 0.0
    %798 = vmatprep.subr.mxu0 0.0
    %799 = vmatpush1.msra.mxu0 0.0
    %800 = vmatprep.subr.mxu0 0.0
    %801 = vmatpush1.msra.mxu0 0.0
    %802 = vmatprep.subr.mxu0 0.0
    %803 = vmatpush1.msra.mxu0 0.0
    %804 = vmatprep.subr.mxu0 0.0
    %805 = vmatpush1.msra.mxu0 0.0
    %806 = vmatprep.mubr.f32.mxu0 0.0
    %807 = vmatmul.mubr.f32.gmra.mrb[0].mxu0 %v725
    %v808 = vpop.f32.mrb[0].mxu0
    %v809 = vadd.f32 1e-05, %v808
    %v810 = vpop.f32.mrb[0].mxu0
    %811 = vdwg.mxu0
    %v812 = vrsqrt.pop %v809
    %v813 = vmul.f32 %v724, %v812
    %v814 = vld [vmem:[%s7] sm:$0x1]
    %v816 = vlaneseq
    %v817 = vshrl.u32 %v816, 7
    %v818 = vsub.s32 0, %v817
    %v819 = vrot.slane %v814, %v818
    %v821 = vmul.f32 %v813, %v819
    %v822 = vld [vmem:[%s8] sm:$0x1]
    %v824 = vlaneseq
    %v825 = vshrl.u32 %v824, 7
    %v826 = vsub.s32 0, %v825
    %v827 = vrot.slane %v822, %v826
    %v829 = vadd.f32 %v821, %v827
    %v830 = vadd.f32 %v630, %v829
    %v831 = vxor.u32 %v830, 2147483648
    %v832 = vmul.f32 %v831, 1.442695
    %v833 = vpow.pop %v832
    %v834 = vadd.f32 %v833, 1.0
    %v835 = vrcp.pop %v834
    %v836 = vmul.f32 1.0, %v835
    %v837 = vtanh.pop %v830
    %v838 = vmul.f32 %v836, %v617
    %840 = vrot.lane.b32.xlu0 %v837, 64
    %v841 = vpop.permute.xlu0 %840
    %v843 = vmul.f32 %v836, %v841
    %845 = vrot.lane.b32.xlu0 %v843, 96
    %v846 = vpop.permute.xlu0 %845
    %v848 = vadd.f32 %v838, %v846
    %v849 = vtanh.pop %v848
    %851 = vrot.lane.b32.xlu0 %v849, 64
    %v852 = vpop.permute.xlu0 %851
    %v854 = vmul.f32 %v836, %v852
    %856 = vrot.lane.b32.xlu0 %v854, 64
    %v857 = vpop.permute.xlu0 %856
    %s859 = scalar_lea.vmem [#allocation3], 8
    %860 = vst.msk [vmem:[%s859] sm:$0xff] %vm418, %v857
    %s861 = scalar_lea.vmem [#allocation2], 16
    %v862 = vld [vmem:[%s861] sm:$0xff]
    %v863 = vld [vmem:[%s5] sm:$0xff]
    %v864 = vld [vmem:[%s5 + $0x8] sm:$0xff]
    %v865 = vld [vmem:[%s5 + $0x10] sm:$0xff]
    %v866 = vld [vmem:[%s5 + $0x18] sm:$0xff]
    %v867 = vld [vmem:[%s5 + $0x20] sm:$0xff]
    %v868 = vld [vmem:[%s5 + $0x28] sm:$0xff]
    %v869 = vld [vmem:[%s5 + $0x30] sm:$0xff]
    %v870 = vld [vmem:[%s5 + $0x38] sm:$0xff]
    %v871 = vld [vmem:[%s6] sm:$0x3]
    %v873 = vlaneseq
    %v874 = vshrl.u32 %v873, 7
    %v875 = vsub.s32 0, %v874
    %v876 = vrot.slane %v871, %v875
    %v877 = vlaneseq
    %v878 = vshrl.u32 %v877, 7
    %v879 = vsub.s32 1, %v878
    %v880 = vrot.slane %v871, %v879
    %v883 = vsel %vm418, %v857, 0
    %885 = vmatprep.subr.mxu0 %v864
    %886 = vmatpush1.msra.mxu0 %v863
    %887 = vmatprep.subr.mxu0 %v866
    %888 = vmatpush1.msra.mxu0 %v865
    %889 = vmatprep.subr.mxu0 %v868
    %890 = vmatpush1.msra.mxu0 %v867
    %891 = vmatprep.subr.mxu0 %v870
    %892 = vmatpush1.msra.mxu0 %v869
    %893 = vmatprep.subr.mxu0 0.0
    %894 = vmatpush1.msra.mxu0 0.0
    %895 = vmatprep.subr.mxu0 0.0
    %896 = vmatpush1.msra.mxu0 0.0
    %897 = vmatprep.subr.mxu0 0.0
    %898 = vmatpush1.msra.mxu0 0.0
    %899 = vmatprep.subr.mxu0 0.0
    %900 = vmatpush1.msra.mxu0 0.0
    %901 = vmatprep.subr.mxu0 0.0
    %902 = vmatpush1.msra.mxu0 0.0
    %903 = vmatprep.subr.mxu0 0.0
    %904 = vmatpush1.msra.mxu0 0.0
    %905 = vmatprep.subr.mxu0 0.0
    %906 = vmatpush1.msra.mxu0 0.0
    %907 = vmatprep.subr.mxu0 0.0
    %908 = vmatpush1.msra.mxu0 0.0
    %909 = vmatprep.subr.mxu0 0.0
    %910 = vmatpush1.msra.mxu0 0.0
    %911 = vmatprep.subr.mxu0 0.0
    %912 = vmatpush1.msra.mxu0 0.0
    %913 = vmatprep.subr.mxu0 0.0
    %914 = vmatpush1.msra.mxu0 0.0
    %915 = vmatprep.subr.mxu0 0.0
    %916 = vmatpush1.msra.mxu0 0.0
    %917 = vmatprep.subr.mxu0 0.0
    %918 = vmatpush1.msra.mxu0 0.0
    %919 = vmatprep.subr.mxu0 0.0
    %920 = vmatpush1.msra.mxu0 0.0
    %921 = vmatprep.subr.mxu0 0.0
    %922 = vmatpush1.msra.mxu0 0.0
    %923 = vmatprep.subr.mxu0 0.0
    %924 = vmatpush1.msra.mxu0 0.0
    %925 = vmatprep.subr.mxu0 0.0
    %926 = vmatpush1.msra.mxu0 0.0
    %927 = vmatprep.subr.mxu0 0.0
    %928 = vmatpush1.msra.mxu0 0.0
    %929 = vmatprep.subr.mxu0 0.0
    %930 = vmatpush1.msra.mxu0 0.0
    %931 = vmatprep.subr.mxu0 0.0
    %932 = vmatpush1.msra.mxu0 0.0
    %933 = vmatprep.subr.mxu0 0.0
    %934 = vmatpush1.msra.mxu0 0.0
    %935 = vmatprep.subr.mxu0 0.0
    %936 = vmatpush1.msra.mxu0 0.0
    %937 = vmatprep.subr.mxu0 0.0
    %938 = vmatpush1.msra.mxu0 0.0
    %939 = vmatprep.subr.mxu0 0.0
    %940 = vmatpush1.msra.mxu0 0.0
    %941 = vmatprep.subr.mxu0 0.0
    %942 = vmatpush1.msra.mxu0 0.0
    %943 = vmatprep.subr.mxu0 0.0
    %944 = vmatpush1.msra.mxu0 0.0
    %945 = vmatprep.subr.mxu0 0.0
    %946 = vmatpush1.msra.mxu0 0.0
    %947 = vmatprep.subr.mxu0 0.0
    %948 = vmatpush1.msra.mxu0 0.0
    %949 = vmatprep.mubr.f32.mxu0 0.0
    %950 = vmatmul.mubr.f32.gmra.mrb[0].mxu0 %v883
    %v951 = vpop.f32.mrb[0].mxu0
    %v952 = vadd.f32 %v876, %v951
    %v953 = vpop.f32.mrb[0].mxu0
    %v954 = vadd.f32 %v880, %v953
    %955 = vdwg.mxu0
    %v956 = vsub.f32 %v952, %v954
    %v957 = vmul.f32 %v956, %v956
    %v958 = vld [vmem:[%s9] sm:$0xff]
    %v959 = vld [vmem:[%s9 + $0x8] sm:$0xff]
    %v960 = vld [vmem:[%s9 + $0x10] sm:$0xff]
    %v961 = vld [vmem:[%s9 + $0x18] sm:$0xff]
    %v962 = vld [vmem:[%s9 + $0x20] sm:$0xff]
    %v963 = vld [vmem:[%s9 + $0x28] sm:$0xff]
    %v964 = vld [vmem:[%s9 + $0x30] sm:$0xff]
    %v965 = vld [vmem:[%s9 + $0x38] sm:$0xff]
    %v966 = vld [vmem:[%s9 + $0x40] sm:$0xff]
    %v967 = vld [vmem:[%s9 + $0x48] sm:$0xff]
    %v968 = vld [vmem:[%s9 + $0x50] sm:$0xff]
    %v969 = vld [vmem:[%s9 + $0x58] sm:$0xff]
    %v970 = vld [vmem:[%s9 + $0x60] sm:$0xff]
    %v971 = vld [vmem:[%s9 + $0x68] sm:$0xff]
    %v972 = vld [vmem:[%s9 + $0x70] sm:$0xff]
    %v973 = vld [vmem:[%s9 + $0x78] sm:$0xff]
    %974 = vmatprep.subr.mxu0 0.0
    %975 = vmatpush1.msra.mxu0 %v958
    %976 = vmatprep.subr.mxu0 0.0
    %977 = vmatpush1.msra.mxu0 %v959
    %978 = vmatprep.subr.mxu0 0.0
    %979 = vmatpush1.msra.mxu0 %v960
    %980 = vmatprep.subr.mxu0 0.0
    %981 = vmatpush1.msra.mxu0 %v961
    %982 = vmatprep.subr.mxu0 0.0
    %983 = vmatpush1.msra.mxu0 %v962
    %984 = vmatprep.subr.mxu0 0.0
    %985 = vmatpush1.msra.mxu0 %v963
    %986 = vmatprep.subr.mxu0 0.0
    %987 = vmatpush1.msra.mxu0 %v964
    %988 = vmatprep.subr.mxu0 0.0
    %989 = vmatpush1.msra.mxu0 %v965
    %990 = vmatprep.subr.mxu0 0.0
    %991 = vmatpush1.msra.mxu0 %v966
    %992 = vmatprep.subr.mxu0 0.0
    %993 = vmatpush1.msra.mxu0 %v967
    %994 = vmatprep.subr.mxu0 0.0
    %995 = vmatpush1.msra.mxu0 %v968
    %996 = vmatprep.subr.mxu0 0.0
    %997 = vmatpush1.msra.mxu0 %v969
    %998 = vmatprep.subr.mxu0 0.0
    %999 = vmatpush1.msra.mxu0 %v970
    %1000 = vmatprep.subr.mxu0 0.0
    %1001 = vmatpush1.msra.mxu0 %v971
    %1002 = vmatprep.subr.mxu0 0.0
    %1003 = vmatpush1.msra.mxu0 %v972
    %1004 = vmatprep.subr.mxu0 0.0
    %1005 = vmatpush1.msra.mxu0 %v973
    %1006 = vmatprep.subr.mxu0 0.0
    %1007 = vmatpush1.msra.mxu0 0.0
    %1008 = vmatprep.subr.mxu0 0.0
    %1009 = vmatpush1.msra.mxu0 0.0
    %1010 = vmatprep.subr.mxu0 0.0
    %1011 = vmatpush1.msra.mxu0 0.0
    %1012 = vmatprep.subr.mxu0 0.0
    %1013 = vmatpush1.msra.mxu0 0.0
    %1014 = vmatprep.subr.mxu0 0.0
    %1015 = vmatpush1.msra.mxu0 0.0
    %1016 = vmatprep.subr.mxu0 0.0
    %1017 = vmatpush1.msra.mxu0 0.0
    %1018 = vmatprep.subr.mxu0 0.0
    %1019 = vmatpush1.msra.mxu0 0.0
    %1020 = vmatprep.subr.mxu0 0.0
    %1021 = vmatpush1.msra.mxu0 0.0
    %1022 = vmatprep.subr.mxu0 0.0
    %1023 = vmatpush1.msra.mxu0 0.0
    %1024 = vmatprep.subr.mxu0 0.0
    %1025 = vmatpush1.msra.mxu0 0.0
    %1026 = vmatprep.subr.mxu0 0.0
    %1027 = vmatpush1.msra.mxu0 0.0
    %1028 = vmatprep.subr.mxu0 0.0
    %1029 = vmatpush1.msra.mxu0 0.0
    %1030 = vmatprep.subr.mxu0 0.0
    %1031 = vmatpush1.msra.mxu0 0.0
    %1032 = vmatprep.subr.mxu0 0.0
    %1033 = vmatpush1.msra.mxu0 0.0
    %1034 = vmatprep.subr.mxu0 0.0
    %1035 = vmatpush1.msra.mxu0 0.0
    %1036 = vmatprep.subr.mxu0 0.0
    %1037 = vmatpush1.msra.mxu0 0.0
    %1038 = vmatprep.mubr.f32.mxu0 0.0
    %1039 = vmatmul.mubr.f32.gmra.mrb[0].mxu0 %v957
    %v1040 = vpop.f32.mrb[0].mxu0
    %v1041 = vadd.f32 1e-05, %v1040
    %v1042 = vpop.f32.mrb[0].mxu0
    %1043 = vdwg.mxu0
    %v1044 = vrsqrt.pop %v1041
    %v1045 = vmul.f32 %v956, %v1044
    %v1046 = vld [vmem:[%s7] sm:$0x1]
    %v1048 = vlaneseq
    %v1049 = vshrl.u32 %v1048, 7
    %v1050 = vsub.s32 0, %v1049
    %v1051 = vrot.slane %v1046, %v1050
    %v1053 = vmul.f32 %v1045, %v1051
    %v1054 = vld [vmem:[%s8] sm:$0x1]
    %v1056 = vlaneseq
    %v1057 = vshrl.u32 %v1056, 7
    %v1058 = vsub.s32 0, %v1057
    %v1059 = vrot.slane %v1054, %v1058
    %v1061 = vadd.f32 %v1053, %v1059
    %v1062 = vadd.f32 %v862, %v1061
    %v1063 = vxor.u32 %v1062, 2147483648
    %v1064 = vmul.f32 %v1063, 1.442695
    %v1065 = vpow.pop %v1064
    %v1066 = vadd.f32 %v1065, 1.0
    %v1067 = vrcp.pop %v1066
    %v1068 = vmul.f32 1.0, %v1067
    %v1069 = vtanh.pop %v1062
    %v1070 = vmul.f32 %v1068, %v848
    %1072 = vrot.lane.b32.xlu0 %v1069, 64
    %v1073 = vpop.permute.xlu0 %1072
    %v1075 = vmul.f32 %v1068, %v1073
    %1077 = vrot.lane.b32.xlu0 %v1075, 96
    %v1078 = vpop.permute.xlu0 %1077
    %v1080 = vadd.f32 %v1070, %v1078
    %v1081 = vtanh.pop %v1080
    %1083 = vrot.lane.b32.xlu0 %v1081, 64
    %v1084 = vpop.permute.xlu0 %1083
    %v1086 = vmul.f32 %v1068, %v1084
    %1088 = vrot.lane.b32.xlu0 %v1086, 64
    %v1089 = vpop.permute.xlu0 %1088
    %s1091 = scalar_lea.vmem [#allocation3], 16
    %1092 = vst.msk [vmem:[%s1091] sm:$0xff] %vm418, %v1089
    %s1093 = scalar_lea.vmem [#allocation2], 24
    %v1094 = vld [vmem:[%s1093] sm:$0xff]
    %v1095 = vld [vmem:[%s5] sm:$0xff]
    %v1096 = vld [vmem:[%s5 + $0x8] sm:$0xff]
    %v1097 = vld [vmem:[%s5 + $0x10] sm:$0xff]
    %v1098 = vld [vmem:[%s5 + $0x18] sm:$0xff]
    %v1099 = vld [vmem:[%s5 + $0x20] sm:$0xff]
    %v1100 = vld [vmem:[%s5 + $0x28] sm:$0xff]
    %v1101 = vld [vmem:[%s5 + $0x30] sm:$0xff]
    %v1102 = vld [vmem:[%s5 + $0x38] sm:$0xff]
    %v1103 = vld [vmem:[%s6] sm:$0x3]
    %v1105 = vlaneseq
    %v1106 = vshrl.u32 %v1105, 7
    %v1107 = vsub.s32 0, %v1106
    %v1108 = vrot.slane %v1103, %v1107
    %v1109 = vlaneseq
    %v1110 = vshrl.u32 %v1109, 7
    %v1111 = vsub.s32 1, %v1110
    %v1112 = vrot.slane %v1103, %v1111
    %v1115 = vsel %vm418, %v1089, 0
    %1117 = vmatprep.subr.mxu0 %v1096
    %1118 = vmatpush1.msra.mxu0 %v1095
    %1119 = vmatprep.subr.mxu0 %v1098
    %1120 = vmatpush1.msra.mxu0 %v1097
    %1121 = vmatprep.subr.mxu0 %v1100
    %1122 = vmatpush1.msra.mxu0 %v1099
    %1123 = vmatprep.subr.mxu0 %v1102
    %1124 = vmatpush1.msra.mxu0 %v1101
    %1125 = vmatprep.subr.mxu0 0.0
    %1126 = vmatpush1.msra.mxu0 0.0
    %1127 = vmatprep.subr.mxu0 0.0
    %1128 = vmatpush1.msra.mxu0 0.0
    %1129 = vmatprep.subr.mxu0 0.0
    %1130 = vmatpush1.msra.mxu0 0.0
    %1131 = vmatprep.subr.mxu0 0.0
    %1132 = vmatpush1.msra.mxu0 0.0
    %1133 = vmatprep.subr.mxu0 0.0
    %1134 = vmatpush1.msra.mxu0 0.0
    %1135 = vmatprep.subr.mxu0 0.0
    %1136 = vmatpush1.msra.mxu0 0.0
    %1137 = vmatprep.subr.mxu0 0.0
    %1138 = vmatpush1.msra.mxu0 0.0
    %1139 = vmatprep.subr.mxu0 0.0
    %1140 = vmatpush1.msra.mxu0 0.0
    %1141 = vmatprep.subr.mxu0 0.0
    %1142 = vmatpush1.msra.mxu0 0.0
    %1143 = vmatprep.subr.mxu0 0.0
    %1144 = vmatpush1.msra.mxu0 0.0
    %1145 = vmatprep.subr.mxu0 0.0
    %1146 = vmatpush1.msra.mxu0 0.0
    %1147 = vmatprep.subr.mxu0 0.0
    %1148 = vmatpush1.msra.mxu0 0.0
    %1149 = vmatprep.subr.mxu0 0.0
    %1150 = vmatpush1.msra.mxu0 0.0
    %1151 = vmatprep.subr.mxu0 0.0
    %1152 = vmatpush1.msra.mxu0 0.0
    %1153 = vmatprep.subr.mxu0 0.0
    %1154 = vmatpush1.msra.mxu0 0.0
    %1155 = vmatprep.subr.mxu0 0.0
    %1156 = vmatpush1.msra.mxu0 0.0
    %1157 = vmatprep.subr.mxu0 0.0
    %1158 = vmatpush1.msra.mxu0 0.0
    %1159 = vmatprep.subr.mxu0 0.0
    %1160 = vmatpush1.msra.mxu0 0.0
    %1161 = vmatprep.subr.mxu0 0.0
    %1162 = vmatpush1.msra.mxu0 0.0
    %1163 = vmatprep.subr.mxu0 0.0
    %1164 = vmatpush1.msra.mxu0 0.0
    %1165 = vmatprep.subr.mxu0 0.0
    %1166 = vmatpush1.msra.mxu0 0.0
    %1167 = vmatprep.subr.mxu0 0.0
    %1168 = vmatpush1.msra.mxu0 0.0
    %1169 = vmatprep.subr.mxu0 0.0
    %1170 = vmatpush1.msra.mxu0 0.0
    %1171 = vmatprep.subr.mxu0 0.0
    %1172 = vmatpush1.msra.mxu0 0.0
    %1173 = vmatprep.subr.mxu0 0.0
    %1174 = vmatpush1.msra.mxu0 0.0
    %1175 = vmatprep.subr.mxu0 0.0
    %1176 = vmatpush1.msra.mxu0 0.0
    %1177 = vmatprep.subr.mxu0 0.0
    %1178 = vmatpush1.msra.mxu0 0.0
    %1179 = vmatprep.subr.mxu0 0.0
    %1180 = vmatpush1.msra.mxu0 0.0
    %1181 = vmatprep.mubr.f32.mxu0 0.0
    %1182 = vmatmul.mubr.f32.gmra.mrb[0].mxu0 %v1115
    %v1183 = vpop.f32.mrb[0].mxu0
    %v1184 = vadd.f32 %v1108, %v1183
    %v1185 = vpop.f32.mrb[0].mxu0
    %v1186 = vadd.f32 %v1112, %v1185
    %1187 = vdwg.mxu0
    %v1188 = vsub.f32 %v1184, %v1186
    %v1189 = vmul.f32 %v1188, %v1188
    %v1190 = vld [vmem:[%s9] sm:$0xff]
    %v1191 = vld [vmem:[%s9 + $0x8] sm:$0xff]
    %v1192 = vld [vmem:[%s9 + $0x10] sm:$0xff]
    %v1193 = vld [vmem:[%s9 + $0x18] sm:$0xff]
    %v1194 = vld [vmem:[%s9 + $0x20] sm:$0xff]
    %v1195 = vld [vmem:[%s9 + $0x28] sm:$0xff]
    %v1196 = vld [vmem:[%s9 + $0x30] sm:$0xff]
    %v1197 = vld [vmem:[%s9 + $0x38] sm:$0xff]
    %v1198 = vld [vmem:[%s9 + $0x40] sm:$0xff]
    %v1199 = vld [vmem:[%s9 + $0x48] sm:$0xff]
    %v1200 = vld [vmem:[%s9 + $0x50] sm:$0xff]
    %v1201 = vld [vmem:[%s9 + $0x58] sm:$0xff]
    %v1202 = vld [vmem:[%s9 + $0x60] sm:$0xff]
    %v1203 = vld [vmem:[%s9 + $0x68] sm:$0xff]
    %v1204 = vld [vmem:[%s9 + $0x70] sm:$0xff]
    %v1205 = vld [vmem:[%s9 + $0x78] sm:$0xff]
    %1206 = vmatprep.subr.mxu0 0.0
    %1207 = vmatpush1.msra.mxu0 %v1190
    %1208 = vmatprep.subr.mxu0 0.0
    %1209 = vmatpush1.msra.mxu0 %v1191
    %1210 = vmatprep.subr.mxu0 0.0
    %1211 = vmatpush1.msra.mxu0 %v1192
    %1212 = vmatprep.subr.mxu0 0.0
    %1213 = vmatpush1.msra.mxu0 %v1193
    %1214 = vmatprep.subr.mxu0 0.0
    %1215 = vmatpush1.msra.mxu0 %v1194
    %1216 = vmatprep.subr.mxu0 0.0
    %1217 = vmatpush1.msra.mxu0 %v1195
    %1218 = vmatprep.subr.mxu0 0.0
    %1219 = vmatpush1.msra.mxu0 %v1196
    %1220 = vmatprep.subr.mxu0 0.0
    %1221 = vmatpush1.msra.mxu0 %v1197
    %1222 = vmatprep.subr.mxu0 0.0
    %1223 = vmatpush1.msra.mxu0 %v1198
    %1224 = vmatprep.subr.mxu0 0.0
    %1225 = vmatpush1.msra.mxu0 %v1199
    %1226 = vmatprep.subr.mxu0 0.0
    %1227 = vmatpush1.msra.mxu0 %v1200
    %1228 = vmatprep.subr.mxu0 0.0
    %1229 = vmatpush1.msra.mxu0 %v1201
    %1230 = vmatprep.subr.mxu0 0.0
    %1231 = vmatpush1.msra.mxu0 %v1202
    %1232 = vmatprep.subr.mxu0 0.0
    %1233 = vmatpush1.msra.mxu0 %v1203
    %1234 = vmatprep.subr.mxu0 0.0
    %1235 = vmatpush1.msra.mxu0 %v1204
    %1236 = vmatprep.subr.mxu0 0.0
    %1237 = vmatpush1.msra.mxu0 %v1205
    %1238 = vmatprep.subr.mxu0 0.0
    %1239 = vmatpush1.msra.mxu0 0.0
    %1240 = vmatprep.subr.mxu0 0.0
    %1241 = vmatpush1.msra.mxu0 0.0
    %1242 = vmatprep.subr.mxu0 0.0
    %1243 = vmatpush1.msra.mxu0 0.0
    %1244 = vmatprep.subr.mxu0 0.0
    %1245 = vmatpush1.msra.mxu0 0.0
    %1246 = vmatprep.subr.mxu0 0.0
    %1247 = vmatpush1.msra.mxu0 0.0
    %1248 = vmatprep.subr.mxu0 0.0
    %1249 = vmatpush1.msra.mxu0 0.0
    %1250 = vmatprep.subr.mxu0 0.0
    %1251 = vmatpush1.msra.mxu0 0.0
    %1252 = vmatprep.subr.mxu0 0.0
    %1253 = vmatpush1.msra.mxu0 0.0
    %1254 = vmatprep.subr.mxu0 0.0
    %1255 = vmatpush1.msra.mxu0 0.0
    %1256 = vmatprep.subr.mxu0 0.0
    %1257 = vmatpush1.msra.mxu0 0.0
    %1258 = vmatprep.subr.mxu0 0.0
    %1259 = vmatpush1.msra.mxu0 0.0
    %1260 = vmatprep.subr.mxu0 0.0
    %1261 = vmatpush1.msra.mxu0 0.0
    %1262 = vmatprep.subr.mxu0 0.0
    %1263 = vmatpush1.msra.mxu0 0.0
    %1264 = vmatprep.subr.mxu0 0.0
    %1265 = vmatpush1.msra.mxu0 0.0
    %1266 = vmatprep.subr.mxu0 0.0
    %1267 = vmatpush1.msra.mxu0 0.0
    %1268 = vmatprep.subr.mxu0 0.0
    %1269 = vmatpush1.msra.mxu0 0.0
    %1270 = vmatprep.mubr.f32.mxu0 0.0
    %1271 = vmatmul.mubr.f32.gmra.mrb[0].mxu0 %v1189
    %v1272 = vpop.f32.mrb[0].mxu0
    %v1273 = vadd.f32 1e-05, %v1272
    %v1274 = vpop.f32.mrb[0].mxu0
    %1275 = vdwg.mxu0
    %v1276 = vrsqrt.pop %v1273
    %v1277 = vmul.f32 %v1188, %v1276
    %v1278 = vld [vmem:[%s7] sm:$0x1]
    %v1280 = vlaneseq
    %v1281 = vshrl.u32 %v1280, 7
    %v1282 = vsub.s32 0, %v1281
    %v1283 = vrot.slane %v1278, %v1282
    %v1285 = vmul.f32 %v1277, %v1283
    %v1286 = vld [vmem:[%s8] sm:$0x1]
    %v1288 = vlaneseq
    %v1289 = vshrl.u32 %v1288, 7
    %v1290 = vsub.s32 0, %v1289
    %v1291 = vrot.slane %v1286, %v1290
    %v1293 = vadd.f32 %v1285, %v1291
    %v1294 = vadd.f32 %v1094, %v1293
    %v1295 = vxor.u32 %v1294, 2147483648
    %v1296 = vmul.f32 %v1295, 1.442695
    %v1297 = vpow.pop %v1296
    %v1298 = vadd.f32 %v1297, 1.0
    %v1299 = vrcp.pop %v1298
    %v1300 = vmul.f32 1.0, %v1299
    %v1301 = vtanh.pop %v1294
    %v1302 = vmul.f32 %v1300, %v1080
    %1304 = vrot.lane.b32.xlu0 %v1301, 64
    %v1305 = vpop.permute.xlu0 %1304
    %v1307 = vmul.f32 %v1300, %v1305
    %1309 = vrot.lane.b32.xlu0 %v1307, 96
    %v1310 = vpop.permute.xlu0 %1309
    %v1312 = vadd.f32 %v1302, %v1310
    %v1313 = vtanh.pop %v1312
    %1315 = vrot.lane.b32.xlu0 %v1313, 64
    %v1316 = vpop.permute.xlu0 %1315
    %v1318 = vmul.f32 %v1300, %v1316
    %1320 = vrot.lane.b32.xlu0 %v1318, 64
    %v1321 = vpop.permute.xlu0 %1320
    %s1323 = scalar_lea.vmem [#allocation3], 24
    %1324 = vst.msk [vmem:[%s1323] sm:$0xff] %vm418, %v1321
    %s1325 = scalar_lea.vmem [#allocation2], 32
    %v1326 = vld [vmem:[%s1325] sm:$0xff]
    %v1327 = vld [vmem:[%s5] sm:$0xff]
    %v1328 = vld [vmem:[%s5 + $0x8] sm:$0xff]
    %v1329 = vld [vmem:[%s5 + $0x10] sm:$0xff]
    %v1330 = vld [vmem:[%s5 + $0x18] sm:$0xff]
    %v1331 = vld [vmem:[%s5 + $0x20] sm:$0xff]
    %v1332 = vld [vmem:[%s5 + $0x28] sm:$0xff]
    %v1333 = vld [vmem:[%s5 + $0x30] sm:$0xff]
    %v1334 = vld [vmem:[%s5 + $0x38] sm:$0xff]
    %v1335 = vld [vmem:[%s6] sm:$0x3]
    %v1337 = vlaneseq
    %v1338 = vshrl.u32 %v1337, 7
    %v1339 = vsub.s32 0, %v1338
    %v1340 = vrot.slane %v1335, %v1339
    %v1341 = vlaneseq
    %v1342 = vshrl.u32 %v1341, 7
    %v1343 = vsub.s32 1, %v1342
    %v1344 = vrot.slane %v1335, %v1343
    %v1347 = vsel %vm418, %v1321, 0
    %1349 = vmatprep.subr.mxu0 %v1328
    %1350 = vmatpush1.msra.mxu0 %v1327
    %1351 = vmatprep.subr.mxu0 %v1330
    %1352 = vmatpush1.msra.mxu0 %v1329
    %1353 = vmatprep.subr.mxu0 %v1332
    %1354 = vmatpush1.msra.mxu0 %v1331
    %1355 = vmatprep.subr.mxu0 %v1334
    %1356 = vmatpush1.msra.mxu0 %v1333
    %1357 = vmatprep.subr.mxu0 0.0
    %1358 = vmatpush1.msra.mxu0 0.0
    %1359 = vmatprep.subr.mxu0 0.0
    %1360 = vmatpush1.msra.mxu0 0.0
    %1361 = vmatprep.subr.mxu0 0.0
    %1362 = vmatpush1.msra.mxu0 0.0
    %1363 = vmatprep.subr.mxu0 0.0
    %1364 = vmatpush1.msra.mxu0 0.0
    %1365 = vmatprep.subr.mxu0 0.0
    %1366 = vmatpush1.msra.mxu0 0.0
    %1367 = vmatprep.subr.mxu0 0.0
    %1368 = vmatpush1.msra.mxu0 0.0
    %1369 = vmatprep.subr.mxu0 0.0
    %1370 = vmatpush1.msra.mxu0 0.0
    %1371 = vmatprep.subr.mxu0 0.0
    %1372 = vmatpush1.msra.mxu0 0.0
    %1373 = vmatprep.subr.mxu0 0.0
    %1374 = vmatpush1.msra.mxu0 0.0
    %1375 = vmatprep.subr.mxu0 0.0
    %1376 = vmatpush1.msra.mxu0 0.0
    %1377 = vmatprep.subr.mxu0 0.0
    %1378 = vmatpush1.msra.mxu0 0.0
    %1379 = vmatprep.subr.mxu0 0.0
    %1380 = vmatpush1.msra.mxu0 0.0
    %1381 = vmatprep.subr.mxu0 0.0
    %1382 = vmatpush1.msra.mxu0 0.0
    %1383 = vmatprep.subr.mxu0 0.0
    %1384 = vmatpush1.msra.mxu0 0.0
    %1385 = vmatprep.subr.mxu0 0.0
    %1386 = vmatpush1.msra.mxu0 0.0
    %1387 = vmatprep.subr.mxu0 0.0
    %1388 = vmatpush1.msra.mxu0 0.0
    %1389 = vmatprep.subr.mxu0 0.0
    %1390 = vmatpush1.msra.mxu0 0.0
    %1391 = vmatprep.subr.mxu0 0.0
    %1392 = vmatpush1.msra.mxu0 0.0
    %1393 = vmatprep.subr.mxu0 0.0
    %1394 = vmatpush1.msra.mxu0 0.0
    %1395 = vmatprep.subr.mxu0 0.0
    %1396 = vmatpush1.msra.mxu0 0.0
    %1397 = vmatprep.subr.mxu0 0.0
    %1398 = vmatpush1.msra.mxu0 0.0
    %1399 = vmatprep.subr.mxu0 0.0
    %1400 = vmatpush1.msra.mxu0 0.0
    %1401 = vmatprep.subr.mxu0 0.0
    %1402 = vmatpush1.msra.mxu0 0.0
    %1403 = vmatprep.subr.mxu0 0.0
    %1404 = vmatpush1.msra.mxu0 0.0
    %1405 = vmatprep.subr.mxu0 0.0
    %1406 = vmatpush1.msra.mxu0 0.0
    %1407 = vmatprep.subr.mxu0 0.0
    %1408 = vmatpush1.msra.mxu0 0.0
    %1409 = vmatprep.subr.mxu0 0.0
    %1410 = vmatpush1.msra.mxu0 0.0
    %1411 = vmatprep.subr.mxu0 0.0
    %1412 = vmatpush1.msra.mxu0 0.0
    %1413 = vmatprep.mubr.f32.mxu0 0.0
    %1414 = vmatmul.mubr.f32.gmra.mrb[0].mxu0 %v1347
    %v1415 = vpop.f32.mrb[0].mxu0
    %v1416 = vadd.f32 %v1340, %v1415
    %v1417 = vpop.f32.mrb[0].mxu0
    %v1418 = vadd.f32 %v1344, %v1417
    %1419 = vdwg.mxu0
    %v1420 = vsub.f32 %v1416, %v1418
    %v1421 = vmul.f32 %v1420, %v1420
    %v1422 = vld [vmem:[%s9] sm:$0xff]
    %v1423 = vld [vmem:[%s9 + $0x8] sm:$0xff]
    %v1424 = vld [vmem:[%s9 + $0x10] sm:$0xff]
    %v1425 = vld [vmem:[%s9 + $0x18] sm:$0xff]
    %v1426 = vld [vmem:[%s9 + $0x20] sm:$0xff]
    %v1427 = vld [vmem:[%s9 + $0x28] sm:$0xff]
    %v1428 = vld [vmem:[%s9 + $0x30] sm:$0xff]
    %v1429 = vld [vmem:[%s9 + $0x38] sm:$0xff]
    %v1430 = vld [vmem:[%s9 + $0x40] sm:$0xff]
    %v1431 = vld [vmem:[%s9 + $0x48] sm:$0xff]
    %v1432 = vld [vmem:[%s9 + $0x50] sm:$0xff]
    %v1433 = vld [vmem:[%s9 + $0x58] sm:$0xff]
    %v1434 = vld [vmem:[%s9 + $0x60] sm:$0xff]
    %v1435 = vld [vmem:[%s9 + $0x68] sm:$0xff]
    %v1436 = vld [vmem:[%s9 + $0x70] sm:$0xff]
    %v1437 = vld [vmem:[%s9 + $0x78] sm:$0xff]
    %1438 = vmatprep.subr.mxu0 0.0
    %1439 = vmatpush1.msra.mxu0 %v1422
    %1440 = vmatprep.subr.mxu0 0.0
    %1441 = vmatpush1.msra.mxu0 %v1423
    %1442 = vmatprep.subr.mxu0 0.0
    %1443 = vmatpush1.msra.mxu0 %v1424
    %1444 = vmatprep.subr.mxu0 0.0
    %1445 = vmatpush1.msra.mxu0 %v1425
    %1446 = vmatprep.subr.mxu0 0.0
    %1447 = vmatpush1.msra.mxu0 %v1426
    %1448 = vmatprep.subr.mxu0 0.0
    %1449 = vmatpush1.msra.mxu0 %v1427
    %1450 = vmatprep.subr.mxu0 0.0
    %1451 = vmatpush1.msra.mxu0 %v1428
    %1452 = vmatprep.subr.mxu0 0.0
    %1453 = vmatpush1.msra.mxu0 %v1429
    %1454 = vmatprep.subr.mxu0 0.0
    %1455 = vmatpush1.msra.mxu0 %v1430
    %1456 = vmatprep.subr.mxu0 0.0
    %1457 = vmatpush1.msra.mxu0 %v1431
    %1458 = vmatprep.subr.mxu0 0.0
    %1459 = vmatpush1.msra.mxu0 %v1432
    %1460 = vmatprep.subr.mxu0 0.0
    %1461 = vmatpush1.msra.mxu0 %v1433
    %1462 = vmatprep.subr.mxu0 0.0
    %1463 = vmatpush1.msra.mxu0 %v1434
    %1464 = vmatprep.subr.mxu0 0.0
    %1465 = vmatpush1.msra.mxu0 %v1435
    %1466 = vmatprep.subr.mxu0 0.0
    %1467 = vmatpush1.msra.mxu0 %v1436
    %1468 = vmatprep.subr.mxu0 0.0
    %1469 = vmatpush1.msra.mxu0 %v1437
    %1470 = vmatprep.subr.mxu0 0.0
    %1471 = vmatpush1.msra.mxu0 0.0
    %1472 = vmatprep.subr.mxu0 0.0
    %1473 = vmatpush1.msra.mxu0 0.0
    %1474 = vmatprep.subr.mxu0 0.0
    %1475 = vmatpush1.msra.mxu0 0.0
    %1476 = vmatprep.subr.mxu0 0.0
    %1477 = vmatpush1.msra.mxu0 0.0
    %1478 = vmatprep.subr.mxu0 0.0
    %1479 = vmatpush1.msra.mxu0 0.0
    %1480 = vmatprep.subr.mxu0 0.0
    %1481 = vmatpush1.msra.mxu0 0.0
    %1482 = vmatprep.subr.mxu0 0.0
    %1483 = vmatpush1.msra.mxu0 0.0
    %1484 = vmatprep.subr.mxu0 0.0
    %1485 = vmatpush1.msra.mxu0 0.0
    %1486 = vmatprep.subr.mxu0 0.0
    %1487 = vmatpush1.msra.mxu0 0.0
    %1488 = vmatprep.subr.mxu0 0.0
    %1489 = vmatpush1.msra.mxu0 0.0
    %1490 = vmatprep.subr.mxu0 0.0
    %1491 = vmatpush1.msra.mxu0 0.0
    %1492 = vmatprep.subr.mxu0 0.0
    %1493 = vmatpush1.msra.mxu0 0.0
    %1494 = vmatprep.subr.mxu0 0.0
    %1495 = vmatpush1.msra.mxu0 0.0
    %1496 = vmatprep.subr.mxu0 0.0
    %1497 = vmatpush1.msra.mxu0 0.0
    %1498 = vmatprep.subr.mxu0 0.0
    %1499 = vmatpush1.msra.mxu0 0.0
    %1500 = vmatprep.subr.mxu0 0.0
    %1501 = vmatpush1.msra.mxu0 0.0
    %1502 = vmatprep.mubr.f32.mxu0 0.0
    %1503 = vmatmul.mubr.f32.gmra.mrb[0].mxu0 %v1421
    %v1504 = vpop.f32.mrb[0].mxu0
    %v1505 = vadd.f32 1e-05, %v1504
    %v1506 = vpop.f32.mrb[0].mxu0
    %1507 = vdwg.mxu0
    %v1508 = vrsqrt.pop %v1505
    %v1509 = vmul.f32 %v1420, %v1508
    %v1510 = vld [vmem:[%s7] sm:$0x1]
    %v1512 = vlaneseq
    %v1513 = vshrl.u32 %v1512, 7
    %v1514 = vsub.s32 0, %v1513
    %v1515 = vrot.slane %v1510, %v1514
    %v1517 = vmul.f32 %v1509, %v1515
    %v1518 = vld [vmem:[%s8] sm:$0x1]
    %v1520 = vlaneseq
    %v1521 = vshrl.u32 %v1520, 7
    %v1522 = vsub.s32 0, %v1521
    %v1523 = vrot.slane %v1518, %v1522
    %v1525 = vadd.f32 %v1517, %v1523
    %v1526 = vadd.f32 %v1326, %v1525
    %v1527 = vxor.u32 %v1526, 2147483648
    %v1528 = vmul.f32 %v1527, 1.442695
    %v1529 = vpow.pop %v1528
    %v1530 = vadd.f32 %v1529, 1.0
    %v1531 = vrcp.pop %v1530
    %v1532 = vmul.f32 1.0, %v1531
    %v1533 = vtanh.pop %v1526
    %v1534 = vmul.f32 %v1532, %v1312
    %1536 = vrot.lane.b32.xlu0 %v1533, 64
    %v1537 = vpop.permute.xlu0 %1536
    %v1539 = vmul.f32 %v1532, %v1537
    %1541 = vrot.lane.b32.xlu0 %v1539, 96
    %v1542 = vpop.permute.xlu0 %1541
    %v1544 = vadd.f32 %v1534, %v1542
    %v1545 = vtanh.pop %v1544
    %1547 = vrot.lane.b32.xlu0 %v1545, 64
    %v1548 = vpop.permute.xlu0 %1547
    %v1550 = vmul.f32 %v1532, %v1548
    %1552 = vrot.lane.b32.xlu0 %v1550, 64
    %v1553 = vpop.permute.xlu0 %1552
    %s1555 = scalar_lea.vmem [#allocation3], 32
    %1556 = vst.msk [vmem:[%s1555] sm:$0xff] %vm418, %v1553
    %s1557 = scalar_lea.vmem [#allocation2], 40
    %v1558 = vld [vmem:[%s1557] sm:$0xff]
    %v1559 = vld [vmem:[%s5] sm:$0xff]
    %v1560 = vld [vmem:[%s5 + $0x8] sm:$0xff]
    %v1561 = vld [vmem:[%s5 + $0x10] sm:$0xff]
    %v1562 = vld [vmem:[%s5 + $0x18] sm:$0xff]
    %v1563 = vld [vmem:[%s5 + $0x20] sm:$0xff]
    %v1564 = vld [vmem:[%s5 + $0x28] sm:$0xff]
    %v1565 = vld [vmem:[%s5 + $0x30] sm:$0xff]
    %v1566 = vld [vmem:[%s5 + $0x38] sm:$0xff]
    %v1567 = vld [vmem:[%s6] sm:$0x3]
    %v1569 = vlaneseq
    %v1570 = vshrl.u32 %v1569, 7
    %v1571 = vsub.s32 0, %v1570
    %v1572 = vrot.slane %v1567, %v1571
    %v1573 = vlaneseq
    %v1574 = vshrl.u32 %v1573, 7
    %v1575 = vsub.s32 1, %v1574
    %v1576 = vrot.slane %v1567, %v1575
    %v1579 = vsel %vm418, %v1553, 0
    %1581 = vmatprep.subr.mxu0 %v1560
    %1582 = vmatpush1.msra.mxu0 %v1559
    %1583 = vmatprep.subr.mxu0 %v1562
    %1584 = vmatpush1.msra.mxu0 %v1561
    %1585 = vmatprep.subr.mxu0 %v1564
    %1586 = vmatpush1.msra.mxu0 %v1563
    %1587 = vmatprep.subr.mxu0 %v1566
    %1588 = vmatpush1.msra.mxu0 %v1565
    %1589 = vmatprep.subr.mxu0 0.0
    %1590 = vmatpush1.msra.mxu0 0.0
    %1591 = vmatprep.subr.mxu0 0.0
    %1592 = vmatpush1.msra.mxu0 0.0
    %1593 = vmatprep.subr.mxu0 0.0
    %1594 = vmatpush1.msra.mxu0 0.0
    %1595 = vmatprep.subr.mxu0 0.0
    %1596 = vmatpush1.msra.mxu0 0.0
    %1597 = vmatprep.subr.mxu0 0.0
    %1598 = vmatpush1.msra.mxu0 0.0
    %1599 = vmatprep.subr.mxu0 0.0
    %1600 = vmatpush1.msra.mxu0 0.0
    %1601 = vmatprep.subr.mxu0 0.0
    %1602 = vmatpush1.msra.mxu0 0.0
    %1603 = vmatprep.subr.mxu0 0.0
    %1604 = vmatpush1.msra.mxu0 0.0
    %1605 = vmatprep.subr.mxu0 0.0
    %1606 = vmatpush1.msra.mxu0 0.0
    %1607 = vmatprep.subr.mxu0 0.0
    %1608 = vmatpush1.msra.mxu0 0.0
    %1609 = vmatprep.subr.mxu0 0.0
    %1610 = vmatpush1.msra.mxu0 0.0
    %1611 = vmatprep.subr.mxu0 0.0
    %1612 = vmatpush1.msra.mxu0 0.0
    %1613 = vmatprep.subr.mxu0 0.0
    %1614 = vmatpush1.msra.mxu0 0.0
    %1615 = vmatprep.subr.mxu0 0.0
    %1616 = vmatpush1.msra.mxu0 0.0
    %1617 = vmatprep.subr.mxu0 0.0
    %1618 = vmatpush1.msra.mxu0 0.0
    %1619 = vmatprep.subr.mxu0 0.0
    %1620 = vmatpush1.msra.mxu0 0.0
    %1621 = vmatprep.subr.mxu0 0.0
    %1622 = vmatpush1.msra.mxu0 0.0
    %1623 = vmatprep.subr.mxu0 0.0
    %1624 = vmatpush1.msra.mxu0 0.0
    %1625 = vmatprep.subr.mxu0 0.0
    %1626 = vmatpush1.msra.mxu0 0.0
    %1627 = vmatprep.subr.mxu0 0.0
    %1628 = vmatpush1.msra.mxu0 0.0
    %1629 = vmatprep.subr.mxu0 0.0
    %1630 = vmatpush1.msra.mxu0 0.0
    %1631 = vmatprep.subr.mxu0 0.0
    %1632 = vmatpush1.msra.mxu0 0.0
    %1633 = vmatprep.subr.mxu0 0.0
    %1634 = vmatpush1.msra.mxu0 0.0
    %1635 = vmatprep.subr.mxu0 0.0
    %1636 = vmatpush1.msra.mxu0 0.0
    %1637 = vmatprep.subr.mxu0 0.0
    %1638 = vmatpush1.msra.mxu0 0.0
    %1639 = vmatprep.subr.mxu0 0.0
    %1640 = vmatpush1.msra.mxu0 0.0
    %1641 = vmatprep.subr.mxu0 0.0
    %1642 = vmatpush1.msra.mxu0 0.0
    %1643 = vmatprep.subr.mxu0 0.0
    %1644 = vmatpush1.msra.mxu0 0.0
    %1645 = vmatprep.mubr.f32.mxu0 0.0
    %1646 = vmatmul.mubr.f32.gmra.mrb[0].mxu0 %v1579
    %v1647 = vpop.f32.mrb[0].mxu0
    %v1648 = vadd.f32 %v1572, %v1647
    %v1649 = vpop.f32.mrb[0].mxu0
    %v1650 = vadd.f32 %v1576, %v1649
    %1651 = vdwg.mxu0
    %v1652 = vsub.f32 %v1648, %v1650
    %v1653 = vmul.f32 %v1652, %v1652
    %v1654 = vld [vmem:[%s9] sm:$0xff]
    %v1655 = vld [vmem:[%s9 + $0x8] sm:$0xff]
    %v1656 = vld [vmem:[%s9 + $0x10] sm:$0xff]
    %v1657 = vld [vmem:[%s9 + $0x18] sm:$0xff]
    %v1658 = vld [vmem:[%s9 + $0x20] sm:$0xff]
    %v1659 = vld [vmem:[%s9 + $0x28] sm:$0xff]
    %v1660 = vld [vmem:[%s9 + $0x30] sm:$0xff]
    %v1661 = vld [vmem:[%s9 + $0x38] sm:$0xff]
    %v1662 = vld [vmem:[%s9 + $0x40] sm:$0xff]
    %v1663 = vld [vmem:[%s9 + $0x48] sm:$0xff]
    %v1664 = vld [vmem:[%s9 + $0x50] sm:$0xff]
    %v1665 = vld [vmem:[%s9 + $0x58] sm:$0xff]
    %v1666 = vld [vmem:[%s9 + $0x60] sm:$0xff]
    %v1667 = vld [vmem:[%s9 + $0x68] sm:$0xff]
    %v1668 = vld [vmem:[%s9 + $0x70] sm:$0xff]
    %v1669 = vld [vmem:[%s9 + $0x78] sm:$0xff]
    %1670 = vmatprep.subr.mxu0 0.0
    %1671 = vmatpush1.msra.mxu0 %v1654
    %1672 = vmatprep.subr.mxu0 0.0
    %1673 = vmatpush1.msra.mxu0 %v1655
    %1674 = vmatprep.subr.mxu0 0.0
    %1675 = vmatpush1.msra.mxu0 %v1656
    %1676 = vmatprep.subr.mxu0 0.0
    %1677 = vmatpush1.msra.mxu0 %v1657
    %1678 = vmatprep.subr.mxu0 0.0
    %1679 = vmatpush1.msra.mxu0 %v1658
    %1680 = vmatprep.subr.mxu0 0.0
    %1681 = vmatpush1.msra.mxu0 %v1659
    %1682 = vmatprep.subr.mxu0 0.0
    %1683 = vmatpush1.msra.mxu0 %v1660
    %1684 = vmatprep.subr.mxu0 0.0
    %1685 = vmatpush1.msra.mxu0 %v1661
    %1686 = vmatprep.subr.mxu0 0.0
    %1687 = vmatpush1.msra.mxu0 %v1662
    %1688 = vmatprep.subr.mxu0 0.0
    %1689 = vmatpush1.msra.mxu0 %v1663
    %1690 = vmatprep.subr.mxu0 0.0
    %1691 = vmatpush1.msra.mxu0 %v1664
    %1692 = vmatprep.subr.mxu0 0.0
    %1693 = vmatpush1.msra.mxu0 %v1665
    %1694 = vmatprep.subr.mxu0 0.0
    %1695 = vmatpush1.msra.mxu0 %v1666
    %1696 = vmatprep.subr.mxu0 0.0
    %1697 = vmatpush1.msra.mxu0 %v1667
    %1698 = vmatprep.subr.mxu0 0.0
    %1699 = vmatpush1.msra.mxu0 %v1668
    %1700 = vmatprep.subr.mxu0 0.0
    %1701 = vmatpush1.msra.mxu0 %v1669
    %1702 = vmatprep.subr.mxu0 0.0
    %1703 = vmatpush1.msra.mxu0 0.0
    %1704 = vmatprep.subr.mxu0 0.0
    %1705 = vmatpush1.msra.mxu0 0.0
    %1706 = vmatprep.subr.mxu0 0.0
    %1707 = vmatpush1.msra.mxu0 0.0
    %1708 = vmatprep.subr.mxu0 0.0
    %1709 = vmatpush1.msra.mxu0 0.0
    %1710 = vmatprep.subr.mxu0 0.0
    %1711 = vmatpush1.msra.mxu0 0.0
    %1712 = vmatprep.subr.mxu0 0.0
    %1713 = vmatpush1.msra.mxu0 0.0
    %1714 = vmatprep.subr.mxu0 0.0
    %1715 = vmatpush1.msra.mxu0 0.0
    %1716 = vmatprep.subr.mxu0 0.0
    %1717 = vmatpush1.msra.mxu0 0.0
    %1718 = vmatprep.subr.mxu0 0.0
    %1719 = vmatpush1.msra.mxu0 0.0
    %1720 = vmatprep.subr.mxu0 0.0
    %1721 = vmatpush1.msra.mxu0 0.0
    %1722 = vmatprep.subr.mxu0 0.0
    %1723 = vmatpush1.msra.mxu0 0.0
    %1724 = vmatprep.subr.mxu0 0.0
    %1725 = vmatpush1.msra.mxu0 0.0
    %1726 = vmatprep.subr.mxu0 0.0
    %1727 = vmatpush1.msra.mxu0 0.0
    %1728 = vmatprep.subr.mxu0 0.0
    %1729 = vmatpush1.msra.mxu0 0.0
    %1730 = vmatprep.subr.mxu0 0.0
    %1731 = vmatpush1.msra.mxu0 0.0
    %1732 = vmatprep.subr.mxu0 0.0
    %1733 = vmatpush1.msra.mxu0 0.0
    %1734 = vmatprep.mubr.f32.mxu0 0.0
    %1735 = vmatmul.mubr.f32.gmra.mrb[0].mxu0 %v1653
    %v1736 = vpop.f32.mrb[0].mxu0
    %v1737 = vadd.f32 1e-05, %v1736
    %v1738 = vpop.f32.mrb[0].mxu0
    %1739 = vdwg.mxu0
    %v1740 = vrsqrt.pop %v1737
    %v1741 = vmul.f32 %v1652, %v1740
    %v1742 = vld [vmem:[%s7] sm:$0x1]
    %v1744 = vlaneseq
    %v1745 = vshrl.u32 %v1744, 7
    %v1746 = vsub.s32 0, %v1745
    %v1747 = vrot.slane %v1742, %v1746
    %v1749 = vmul.f32 %v1741, %v1747
    %v1750 = vld [vmem:[%s8] sm:$0x1]
    %v1752 = vlaneseq
    %v1753 = vshrl.u32 %v1752, 7
    %v1754 = vsub.s32 0, %v1753
    %v1755 = vrot.slane %v1750, %v1754
    %v1757 = vadd.f32 %v1749, %v1755
    %v1758 = vadd.f32 %v1558, %v1757
    %v1759 = vxor.u32 %v1758, 2147483648
    %v1760 = vmul.f32 %v1759, 1.442695
    %v1761 = vpow.pop %v1760
    %v1762 = vadd.f32 %v1761, 1.0
    %v1763 = vrcp.pop %v1762
    %v1764 = vmul.f32 1.0, %v1763
    %v1765 = vtanh.pop %v1758
    %v1766 = vmul.f32 %v1764, %v1544
    %1768 = vrot.lane.b32.xlu0 %v1765, 64
    %v1769 = vpop.permute.xlu0 %1768
    %v1771 = vmul.f32 %v1764, %v1769
    %1773 = vrot.lane.b32.xlu0 %v1771, 96
    %v1774 = vpop.permute.xlu0 %1773
    %v1776 = vadd.f32 %v1766, %v1774
    %v1777 = vtanh.pop %v1776
    %1779 = vrot.lane.b32.xlu0 %v1777, 64
    %v1780 = vpop.permute.xlu0 %1779
    %v1782 = vmul.f32 %v1764, %v1780
    %1784 = vrot.lane.b32.xlu0 %v1782, 64
    %v1785 = vpop.permute.xlu0 %1784
    %s1787 = scalar_lea.vmem [#allocation3], 40
    %1788 = vst.msk [vmem:[%s1787] sm:$0xff] %vm418, %v1785
    %s1789 = scalar_lea.vmem [#allocation2], 48
    %v1790 = vld [vmem:[%s1789] sm:$0xff]
    %v1791 = vld [vmem:[%s5] sm:$0xff]
    %v1792 = vld [vmem:[%s5 + $0x8] sm:$0xff]
    %v1793 = vld [vmem:[%s5 + $0x10] sm:$0xff]
    %v1794 = vld [vmem:[%s5 + $0x18] sm:$0xff]
    %v1795 = vld [vmem:[%s5 + $0x20] sm:$0xff]
    %v1796 = vld [vmem:[%s5 + $0x28] sm:$0xff]
    %v1797 = vld [vmem:[%s5 + $0x30] sm:$0xff]
    %v1798 = vld [vmem:[%s5 + $0x38] sm:$0xff]
    %v1799 = vld [vmem:[%s6] sm:$0x3]
    %v1801 = vlaneseq
    %v1802 = vshrl.u32 %v1801, 7
    %v1803 = vsub.s32 0, %v1802
    %v1804 = vrot.slane %v1799, %v1803
    %v1805 = vlaneseq
    %v1806 = vshrl.u32 %v1805, 7
    %v1807 = vsub.s32 1, %v1806
    %v1808 = vrot.slane %v1799, %v1807
    %v1811 = vsel %vm418, %v1785, 0
    %1813 = vmatprep.subr.mxu0 %v1792
    %1814 = vmatpush1.msra.mxu0 %v1791
    %1815 = vmatprep.subr.mxu0 %v1794
    %1816 = vmatpush1.msra.mxu0 %v1793
    %1817 = vmatprep.subr.mxu0 %v1796
    %1818 = vmatpush1.msra.mxu0 %v1795
    %1819 = vmatprep.subr.mxu0 %v1798
    %1820 = vmatpush1.msra.mxu0 %v1797
    %1821 = vmatprep.subr.mxu0 0.0
    %1822 = vmatpush1.msra.mxu0 0.0
    %1823 = vmatprep.subr.mxu0 0.0
    %1824 = vmatpush1.msra.mxu0 0.0
    %1825 = vmatprep.subr.mxu0 0.0
    %1826 = vmatpush1.msra.mxu0 0.0
    %1827 = vmatprep.subr.mxu0 0.0
    %1828 = vmatpush1.msra.mxu0 0.0
    %1829 = vmatprep.subr.mxu0 0.0
    %1830 = vmatpush1.msra.mxu0 0.0
    %1831 = vmatprep.subr.mxu0 0.0
    %1832 = vmatpush1.msra.mxu0 0.0
    %1833 = vmatprep.subr.mxu0 0.0
    %1834 = vmatpush1.msra.mxu0 0.0
    %1835 = vmatprep.subr.mxu0 0.0
    %1836 = vmatpush1.msra.mxu0 0.0
    %1837 = vmatprep.subr.mxu0 0.0
    %1838 = vmatpush1.msra.mxu0 0.0
    %1839 = vmatprep.subr.mxu0 0.0
    %1840 = vmatpush1.msra.mxu0 0.0
    %1841 = vmatprep.subr.mxu0 0.0
    %1842 = vmatpush1.msra.mxu0 0.0
    %1843 = vmatprep.subr.mxu0 0.0
    %1844 = vmatpush1.msra.mxu0 0.0
    %1845 = vmatprep.subr.mxu0 0.0
    %1846 = vmatpush1.msra.mxu0 0.0
    %1847 = vmatprep.subr.mxu0 0.0
    %1848 = vmatpush1.msra.mxu0 0.0
    %1849 = vmatprep.subr.mxu0 0.0
    %1850 = vmatpush1.msra.mxu0 0.0
    %1851 = vmatprep.subr.mxu0 0.0
    %1852 = vmatpush1.msra.mxu0 0.0
    %1853 = vmatprep.subr.mxu0 0.0
    %1854 = vmatpush1.msra.mxu0 0.0
    %1855 = vmatprep.subr.mxu0 0.0
    %1856 = vmatpush1.msra.mxu0 0.0
    %1857 = vmatprep.subr.mxu0 0.0
    %1858 = vmatpush1.msra.mxu0 0.0
    %1859 = vmatprep.subr.mxu0 0.0
    %1860 = vmatpush1.msra.mxu0 0.0
    %1861 = vmatprep.subr.mxu0 0.0
    %1862 = vmatpush1.msra.mxu0 0.0
    %1863 = vmatprep.subr.mxu0 0.0
    %1864 = vmatpush1.msra.mxu0 0.0
    %1865 = vmatprep.subr.mxu0 0.0
    %1866 = vmatpush1.msra.mxu0 0.0
    %1867 = vmatprep.subr.mxu0 0.0
    %1868 = vmatpush1.msra.mxu0 0.0
    %1869 = vmatprep.subr.mxu0 0.0
    %1870 = vmatpush1.msra.mxu0 0.0
    %1871 = vmatprep.subr.mxu0 0.0
    %1872 = vmatpush1.msra.mxu0 0.0
    %1873 = vmatprep.subr.mxu0 0.0
    %1874 = vmatpush1.msra.mxu0 0.0
    %1875 = vmatprep.subr.mxu0 0.0
    %1876 = vmatpush1.msra.mxu0 0.0
    %1877 = vmatprep.mubr.f32.mxu0 0.0
    %1878 = vmatmul.mubr.f32.gmra.mrb[0].mxu0 %v1811
    %v1879 = vpop.f32.mrb[0].mxu0
    %v1880 = vadd.f32 %v1804, %v1879
    %v1881 = vpop.f32.mrb[0].mxu0
    %v1882 = vadd.f32 %v1808, %v1881
    %1883 = vdwg.mxu0
    %v1884 = vsub.f32 %v1880, %v1882
    %v1885 = vmul.f32 %v1884, %v1884
    %v1886 = vld [vmem:[%s9] sm:$0xff]
    %v1887 = vld [vmem:[%s9 + $0x8] sm:$0xff]
    %v1888 = vld [vmem:[%s9 + $0x10] sm:$0xff]
    %v1889 = vld [vmem:[%s9 + $0x18] sm:$0xff]
    %v1890 = vld [vmem:[%s9 + $0x20] sm:$0xff]
    %v1891 = vld [vmem:[%s9 + $0x28] sm:$0xff]
    %v1892 = vld [vmem:[%s9 + $0x30] sm:$0xff]
    %v1893 = vld [vmem:[%s9 + $0x38] sm:$0xff]
    %v1894 = vld [vmem:[%s9 + $0x40] sm:$0xff]
    %v1895 = vld [vmem:[%s9 + $0x48] sm:$0xff]
    %v1896 = vld [vmem:[%s9 + $0x50] sm:$0xff]
    %v1897 = vld [vmem:[%s9 + $0x58] sm:$0xff]
    %v1898 = vld [vmem:[%s9 + $0x60] sm:$0xff]
    %v1899 = vld [vmem:[%s9 + $0x68] sm:$0xff]
    %v1900 = vld [vmem:[%s9 + $0x70] sm:$0xff]
    %v1901 = vld [vmem:[%s9 + $0x78] sm:$0xff]
    %1902 = vmatprep.subr.mxu0 0.0
    %1903 = vmatpush1.msra.mxu0 %v1886
    %1904 = vmatprep.subr.mxu0 0.0
    %1905 = vmatpush1.msra.mxu0 %v1887
    %1906 = vmatprep.subr.mxu0 0.0
    %1907 = vmatpush1.msra.mxu0 %v1888
    %1908 = vmatprep.subr.mxu0 0.0
    %1909 = vmatpush1.msra.mxu0 %v1889
    %1910 = vmatprep.subr.mxu0 0.0
    %1911 = vmatpush1.msra.mxu0 %v1890
    %1912 = vmatprep.subr.mxu0 0.0
    %1913 = vmatpush1.msra.mxu0 %v1891
    %1914 = vmatprep.subr.mxu0 0.0
    %1915 = vmatpush1.msra.mxu0 %v1892
    %1916 = vmatprep.subr.mxu0 0.0
    %1917 = vmatpush1.msra.mxu0 %v1893
    %1918 = vmatprep.subr.mxu0 0.0
    %1919 = vmatpush1.msra.mxu0 %v1894
    %1920 = vmatprep.subr.mxu0 0.0
    %1921 = vmatpush1.msra.mxu0 %v1895
    %1922 = vmatprep.subr.mxu0 0.0
    %1923 = vmatpush1.msra.mxu0 %v1896
    %1924 = vmatprep.subr.mxu0 0.0
    %1925 = vmatpush1.msra.mxu0 %v1897
    %1926 = vmatprep.subr.mxu0 0.0
    %1927 = vmatpush1.msra.mxu0 %v1898
    %1928 = vmatprep.subr.mxu0 0.0
    %1929 = vmatpush1.msra.mxu0 %v1899
    %1930 = vmatprep.subr.mxu0 0.0
    %1931 = vmatpush1.msra.mxu0 %v1900
    %1932 = vmatprep.subr.mxu0 0.0
    %1933 = vmatpush1.msra.mxu0 %v1901
    %1934 = vmatprep.subr.mxu0 0.0
    %1935 = vmatpush1.msra.mxu0 0.0
    %1936 = vmatprep.subr.mxu0 0.0
    %1937 = vmatpush1.msra.mxu0 0.0
    %1938 = vmatprep.subr.mxu0 0.0
    %1939 = vmatpush1.msra.mxu0 0.0
    %1940 = vmatprep.subr.mxu0 0.0
    %1941 = vmatpush1.msra.mxu0 0.0
    %1942 = vmatprep.subr.mxu0 0.0
    %1943 = vmatpush1.msra.mxu0 0.0
    %1944 = vmatprep.subr.mxu0 0.0
    %1945 = vmatpush1.msra.mxu0 0.0
    %1946 = vmatprep.subr.mxu0 0.0
    %1947 = vmatpush1.msra.mxu0 0.0
    %1948 = vmatprep.subr.mxu0 0.0
    %1949 = vmatpush1.msra.mxu0 0.0
    %1950 = vmatprep.subr.mxu0 0.0
    %1951 = vmatpush1.msra.mxu0 0.0
    %1952 = vmatprep.subr.mxu0 0.0
    %1953 = vmatpush1.msra.mxu0 0.0
    %1954 = vmatprep.subr.mxu0 0.0
    %1955 = vmatpush1.msra.mxu0 0.0
    %1956 = vmatprep.subr.mxu0 0.0
    %1957 = vmatpush1.msra.mxu0 0.0
    %1958 = vmatprep.subr.mxu0 0.0
    %1959 = vmatpush1.msra.mxu0 0.0
    %1960 = vmatprep.subr.mxu0 0.0
    %1961 = vmatpush1.msra.mxu0 0.0
    %1962 = vmatprep.subr.mxu0 0.0
    %1963 = vmatpush1.msra.mxu0 0.0
    %1964 = vmatprep.subr.mxu0 0.0
    %1965 = vmatpush1.msra.mxu0 0.0
    %1966 = vmatprep.mubr.f32.mxu0 0.0
    %1967 = vmatmul.mubr.f32.gmra.mrb[0].mxu0 %v1885
    %v1968 = vpop.f32.mrb[0].mxu0
    %v1969 = vadd.f32 1e-05, %v1968
    %v1970 = vpop.f32.mrb[0].mxu0
    %1971 = vdwg.mxu0
    %v1972 = vrsqrt.pop %v1969
    %v1973 = vmul.f32 %v1884, %v1972
    %v1974 = vld [vmem:[%s7] sm:$0x1]
    %v1976 = vlaneseq
    %v1977 = vshrl.u32 %v1976, 7
    %v1978 = vsub.s32 0, %v1977
    %v1979 = vrot.slane %v1974, %v1978
    %v1981 = vmul.f32 %v1973, %v1979
    %v1982 = vld [vmem:[%s8] sm:$0x1]
    %v1984 = vlaneseq
    %v1985 = vshrl.u32 %v1984, 7
    %v1986 = vsub.s32 0, %v1985
    %v1987 = vrot.slane %v1982, %v1986
    %v1989 = vadd.f32 %v1981, %v1987
    %v1990 = vadd.f32 %v1790, %v1989
    %v1991 = vxor.u32 %v1990, 2147483648
    %v1992 = vmul.f32 %v1991, 1.442695
    %v1993 = vpow.pop %v1992
    %v1994 = vadd.f32 %v1993, 1.0
    %v1995 = vrcp.pop %v1994
    %v1996 = vmul.f32 1.0, %v1995
    %v1997 = vtanh.pop %v1990
    %v1998 = vmul.f32 %v1996, %v1776
    %2000 = vrot.lane.b32.xlu0 %v1997, 64
    %v2001 = vpop.permute.xlu0 %2000
    %v2003 = vmul.f32 %v1996, %v2001
    %2005 = vrot.lane.b32.xlu0 %v2003, 96
    %v2006 = vpop.permute.xlu0 %2005
    %v2008 = vadd.f32 %v1998, %v2006
    %v2009 = vtanh.pop %v2008
    %2011 = vrot.lane.b32.xlu0 %v2009, 64
    %v2012 = vpop.permute.xlu0 %2011
    %v2014 = vmul.f32 %v1996, %v2012
    %2016 = vrot.lane.b32.xlu0 %v2014, 64
    %v2017 = vpop.permute.xlu0 %2016
    %s2019 = scalar_lea.vmem [#allocation3], 48
    %2020 = vst.msk [vmem:[%s2019] sm:$0xff] %vm418, %v2017
    %s2021 = scalar_lea.vmem [#allocation2], 56
    %v2022 = vld [vmem:[%s2021] sm:$0xff]
    %v2023 = vld [vmem:[%s5] sm:$0xff]
    %v2024 = vld [vmem:[%s5 + $0x8] sm:$0xff]
    %v2025 = vld [vmem:[%s5 + $0x10] sm:$0xff]
    %v2026 = vld [vmem:[%s5 + $0x18] sm:$0xff]
    %v2027 = vld [vmem:[%s5 + $0x20] sm:$0xff]
    %v2028 = vld [vmem:[%s5 + $0x28] sm:$0xff]
    %v2029 = vld [vmem:[%s5 + $0x30] sm:$0xff]
    %v2030 = vld [vmem:[%s5 + $0x38] sm:$0xff]
    %v2031 = vld [vmem:[%s6] sm:$0x3]
    %v2033 = vlaneseq
    %v2034 = vshrl.u32 %v2033, 7
    %v2035 = vsub.s32 0, %v2034
    %v2036 = vrot.slane %v2031, %v2035
    %v2037 = vlaneseq
    %v2038 = vshrl.u32 %v2037, 7
    %v2039 = vsub.s32 1, %v2038
    %v2040 = vrot.slane %v2031, %v2039
    %v2043 = vsel %vm418, %v2017, 0
    %2045 = vmatprep.subr.mxu0 %v2024
    %2046 = vmatpush1.msra.mxu0 %v2023
    %2047 = vmatprep.subr.mxu0 %v2026
    %2048 = vmatpush1.msra.mxu0 %v2025
    %2049 = vmatprep.subr.mxu0 %v2028
    %2050 = vmatpush1.msra.mxu0 %v2027
    %2051 = vmatprep.subr.mxu0 %v2030
    %2052 = vmatpush1.msra.mxu0 %v2029
    %2053 = vmatprep.subr.mxu0 0.0
    %2054 = vmatpush1.msra.mxu0 0.0
    %2055 = vmatprep.subr.mxu0 0.0
    %2056 = vmatpush1.msra.mxu0 0.0
    %2057 = vmatprep.subr.mxu0 0.0
    %2058 = vmatpush1.msra.mxu0 0.0
    %2059 = vmatprep.subr.mxu0 0.0
    %2060 = vmatpush1.msra.mxu0 0.0
    %2061 = vmatprep.subr.mxu0 0.0
    %2062 = vmatpush1.msra.mxu0 0.0
    %2063 = vmatprep.subr.mxu0 0.0
    %2064 = vmatpush1.msra.mxu0 0.0
    %2065 = vmatprep.subr.mxu0 0.0
    %2066 = vmatpush1.msra.mxu0 0.0
    %2067 = vmatprep.subr.mxu0 0.0
    %2068 = vmatpush1.msra.mxu0 0.0
    %2069 = vmatprep.subr.mxu0 0.0
    %2070 = vmatpush1.msra.mxu0 0.0
    %2071 = vmatprep.subr.mxu0 0.0
    %2072 = vmatpush1.msra.mxu0 0.0
    %2073 = vmatprep.subr.mxu0 0.0
    %2074 = vmatpush1.msra.mxu0 0.0
    %2075 = vmatprep.subr.mxu0 0.0
    %2076 = vmatpush1.msra.mxu0 0.0
    %2077 = vmatprep.subr.mxu0 0.0
    %2078 = vmatpush1.msra.mxu0 0.0
    %2079 = vmatprep.subr.mxu0 0.0
    %2080 = vmatpush1.msra.mxu0 0.0
    %2081 = vmatprep.subr.mxu0 0.0
    %2082 = vmatpush1.msra.mxu0 0.0
    %2083 = vmatprep.subr.mxu0 0.0
    %2084 = vmatpush1.msra.mxu0 0.0
    %2085 = vmatprep.subr.mxu0 0.0
    %2086 = vmatpush1.msra.mxu0 0.0
    %2087 = vmatprep.subr.mxu0 0.0
    %2088 = vmatpush1.msra.mxu0 0.0
    %2089 = vmatprep.subr.mxu0 0.0
    %2090 = vmatpush1.msra.mxu0 0.0
    %2091 = vmatprep.subr.mxu0 0.0
    %2092 = vmatpush1.msra.mxu0 0.0
    %2093 = vmatprep.subr.mxu0 0.0
    %2094 = vmatpush1.msra.mxu0 0.0
    %2095 = vmatprep.subr.mxu0 0.0
    %2096 = vmatpush1.msra.mxu0 0.0
    %2097 = vmatprep.subr.mxu0 0.0
    %2098 = vmatpush1.msra.mxu0 0.0
    %2099 = vmatprep.subr.mxu0 0.0
    %2100 = vmatpush1.msra.mxu0 0.0
    %2101 = vmatprep.subr.mxu0 0.0
    %2102 = vmatpush1.msra.mxu0 0.0
    %2103 = vmatprep.subr.mxu0 0.0
    %2104 = vmatpush1.msra.mxu0 0.0
    %2105 = vmatprep.subr.mxu0 0.0
    %2106 = vmatpush1.msra.mxu0 0.0
    %2107 = vmatprep.subr.mxu0 0.0
    %2108 = vmatpush1.msra.mxu0 0.0
    %2109 = vmatprep.mubr.f32.mxu0 0.0
    %2110 = vmatmul.mubr.f32.gmra.mrb[0].mxu0 %v2043
    %v2111 = vpop.f32.mrb[0].mxu0
    %v2112 = vadd.f32 %v2036, %v2111
    %v2113 = vpop.f32.mrb[0].mxu0
    %v2114 = vadd.f32 %v2040, %v2113
    %2115 = vdwg.mxu0
    %v2116 = vsub.f32 %v2112, %v2114
    %v2117 = vmul.f32 %v2116, %v2116
    %v2118 = vld [vmem:[%s9] sm:$0xff]
    %v2119 = vld [vmem:[%s9 + $0x8] sm:$0xff]
    %v2120 = vld [vmem:[%s9 + $0x10] sm:$0xff]
    %v2121 = vld [vmem:[%s9 + $0x18] sm:$0xff]
    %v2122 = vld [vmem:[%s9 + $0x20] sm:$0xff]
    %v2123 = vld [vmem:[%s9 + $0x28] sm:$0xff]
    %v2124 = vld [vmem:[%s9 + $0x30] sm:$0xff]
    %v2125 = vld [vmem:[%s9 + $0x38] sm:$0xff]
    %v2126 = vld [vmem:[%s9 + $0x40] sm:$0xff]
    %v2127 = vld [vmem:[%s9 + $0x48] sm:$0xff]
    %v2128 = vld [vmem:[%s9 + $0x50] sm:$0xff]
    %v2129 = vld [vmem:[%s9 + $0x58] sm:$0xff]
    %v2130 = vld [vmem:[%s9 + $0x60] sm:$0xff]
    %v2131 = vld [vmem:[%s9 + $0x68] sm:$0xff]
    %v2132 = vld [vmem:[%s9 + $0x70] sm:$0xff]
    %v2133 = vld [vmem:[%s9 + $0x78] sm:$0xff]
    %2134 = vmatprep.subr.mxu0 0.0
    %2135 = vmatpush1.msra.mxu0 %v2118
    %2136 = vmatprep.subr.mxu0 0.0
    %2137 = vmatpush1.msra.mxu0 %v2119
    %2138 = vmatprep.subr.mxu0 0.0
    %2139 = vmatpush1.msra.mxu0 %v2120
    %2140 = vmatprep.subr.mxu0 0.0
    %2141 = vmatpush1.msra.mxu0 %v2121
    %2142 = vmatprep.subr.mxu0 0.0
    %2143 = vmatpush1.msra.mxu0 %v2122
    %2144 = vmatprep.subr.mxu0 0.0
    %2145 = vmatpush1.msra.mxu0 %v2123
    %2146 = vmatprep.subr.mxu0 0.0
    %2147 = vmatpush1.msra.mxu0 %v2124
    %2148 = vmatprep.subr.mxu0 0.0
    %2149 = vmatpush1.msra.mxu0 %v2125
    %2150 = vmatprep.subr.mxu0 0.0
    %2151 = vmatpush1.msra.mxu0 %v2126
    %2152 = vmatprep.subr.mxu0 0.0
    %2153 = vmatpush1.msra.mxu0 %v2127
    %2154 = vmatprep.subr.mxu0 0.0
    %2155 = vmatpush1.msra.mxu0 %v2128
    %2156 = vmatprep.subr.mxu0 0.0
    %2157 = vmatpush1.msra.mxu0 %v2129
    %2158 = vmatprep.subr.mxu0 0.0
    %2159 = vmatpush1.msra.mxu0 %v2130
    %2160 = vmatprep.subr.mxu0 0.0
    %2161 = vmatpush1.msra.mxu0 %v2131
    %2162 = vmatprep.subr.mxu0 0.0
    %2163 = vmatpush1.msra.mxu0 %v2132
    %2164 = vmatprep.subr.mxu0 0.0
    %2165 = vmatpush1.msra.mxu0 %v2133
    %2166 = vmatprep.subr.mxu0 0.0
    %2167 = vmatpush1.msra.mxu0 0.0
    %2168 = vmatprep.subr.mxu0 0.0
    %2169 = vmatpush1.msra.mxu0 0.0
    %2170 = vmatprep.subr.mxu0 0.0
    %2171 = vmatpush1.msra.mxu0 0.0
    %2172 = vmatprep.subr.mxu0 0.0
    %2173 = vmatpush1.msra.mxu0 0.0
    %2174 = vmatprep.subr.mxu0 0.0
    %2175 = vmatpush1.msra.mxu0 0.0
    %2176 = vmatprep.subr.mxu0 0.0
    %2177 = vmatpush1.msra.mxu0 0.0
    %2178 = vmatprep.subr.mxu0 0.0
    %2179 = vmatpush1.msra.mxu0 0.0
    %2180 = vmatprep.subr.mxu0 0.0
    %2181 = vmatpush1.msra.mxu0 0.0
    %2182 = vmatprep.subr.mxu0 0.0
    %2183 = vmatpush1.msra.mxu0 0.0
    %2184 = vmatprep.subr.mxu0 0.0
    %2185 = vmatpush1.msra.mxu0 0.0
    %2186 = vmatprep.subr.mxu0 0.0
    %2187 = vmatpush1.msra.mxu0 0.0
    %2188 = vmatprep.subr.mxu0 0.0
    %2189 = vmatpush1.msra.mxu0 0.0
    %2190 = vmatprep.subr.mxu0 0.0
    %2191 = vmatpush1.msra.mxu0 0.0
    %2192 = vmatprep.subr.mxu0 0.0
    %2193 = vmatpush1.msra.mxu0 0.0
    %2194 = vmatprep.subr.mxu0 0.0
    %2195 = vmatpush1.msra.mxu0 0.0
    %2196 = vmatprep.subr.mxu0 0.0
    %2197 = vmatpush1.msra.mxu0 0.0
    %2198 = vmatprep.mubr.f32.mxu0 0.0
    %2199 = vmatmul.mubr.f32.gmra.mrb[0].mxu0 %v2117
    %v2200 = vpop.f32.mrb[0].mxu0
    %v2201 = vadd.f32 1e-05, %v2200
    %v2202 = vpop.f32.mrb[0].mxu0
    %2203 = vdwg.mxu0
    %v2204 = vrsqrt.pop %v2201
    %v2205 = vmul.f32 %v2116, %v2204
    %v2206 = vld [vmem:[%s7] sm:$0x1]
    %v2208 = vlaneseq
    %v2209 = vshrl.u32 %v2208, 7
    %v2210 = vsub.s32 0, %v2209
    %v2211 = vrot.slane %v2206, %v2210
    %v2213 = vmul.f32 %v2205, %v2211
    %v2214 = vld [vmem:[%s8] sm:$0x1]
    %v2216 = vlaneseq
    %v2217 = vshrl.u32 %v2216, 7
    %v2218 = vsub.s32 0, %v2217
    %v2219 = vrot.slane %v2214, %v2218
    %v2221 = vadd.f32 %v2213, %v2219
    %v2222 = vadd.f32 %v2022, %v2221
    %v2223 = vxor.u32 %v2222, 2147483648
    %v2224 = vmul.f32 %v2223, 1.442695
    %v2225 = vpow.pop %v2224
    %v2226 = vadd.f32 %v2225, 1.0
    %v2227 = vrcp.pop %v2226
    %v2228 = vmul.f32 1.0, %v2227
    %v2229 = vtanh.pop %v2222
    %v2230 = vmul.f32 %v2228, %v2008
    %2232 = vrot.lane.b32.xlu0 %v2229, 64
    %v2233 = vpop.permute.xlu0 %2232
    %v2235 = vmul.f32 %v2228, %v2233
    %2237 = vrot.lane.b32.xlu0 %v2235, 96
    %v2238 = vpop.permute.xlu0 %2237
    %v2240 = vadd.f32 %v2230, %v2238
    %v2241 = vtanh.pop %v2240
    %2243 = vrot.lane.b32.xlu0 %v2241, 64
    %v2244 = vpop.permute.xlu0 %2243
    %v2246 = vmul.f32 %v2228, %v2244
    %2248 = vrot.lane.b32.xlu0 %v2246, 64
    %v2249 = vpop.permute.xlu0 %2248
    %s2251 = scalar_lea.vmem [#allocation3], 56
    %2252 = vst.msk [vmem:[%s2251] sm:$0xff] %vm418, %v2249
    %v2253 = vld [vmem:[#allocation3] sm:$0xff]
    %v2254 = vld [vmem:[#allocation3 + $0x8] sm:$0xff]
    %v2255 = vld [vmem:[#allocation3 + $0x10] sm:$0xff]
    %v2256 = vld [vmem:[#allocation3 + $0x18] sm:$0xff]
    %v2257 = vld [vmem:[#allocation3 + $0x20] sm:$0xff]
    %v2258 = vld [vmem:[#allocation3 + $0x28] sm:$0xff]
    %v2259 = vld [vmem:[#allocation3 + $0x30] sm:$0xff]
    %v2260 = vld [vmem:[#allocation3 + $0x38] sm:$0xff]
    %v2261 = vld [vmem:[%s10] sm:$0x1]
    %v2263 = vlaneseq
    %v2264 = vshrl.u32 %v2263, 7
    %v2265 = vsub.s32 0, %v2264
    %v2266 = vrot.slane %v2261, %v2265
    %v2268 = vmul.f32 %v2253, %v2266
    %v2269 = vmul.f32 %v2254, %v2266
    %v2270 = vmul.f32 %v2255, %v2266
    %v2271 = vmul.f32 %v2256, %v2266
    %v2272 = vmul.f32 %v2257, %v2266
    %v2273 = vmul.f32 %v2258, %v2266
    %v2274 = vmul.f32 %v2259, %v2266
    %v2275 = vmul.f32 %v2260, %v2266
    %v2276 = vsel %vm418, %v2268, 0.0
    %2277 = vadd.xlane.f32.xlu0 %v2276
    %v2278 = vpop.xlane.xlu0 %2277
    %v2279 = vsel %vm418, %v2269, 0.0
    %2280 = vadd.xlane.f32.xlu0 %v2279
    %v2281 = vpop.xlane.xlu0 %2280
    %v2282 = vsel %vm418, %v2270, 0.0
    %2283 = vadd.xlane.f32.xlu0 %v2282
    %v2284 = vpop.xlane.xlu0 %2283
    %v2285 = vsel %vm418, %v2271, 0.0
    %2286 = vadd.xlane.f32.xlu0 %v2285
    %v2287 = vpop.xlane.xlu0 %2286
    %v2288 = vsel %vm418, %v2272, 0.0
    %2289 = vadd.xlane.f32.xlu0 %v2288
    %v2290 = vpop.xlane.xlu0 %2289
    %v2291 = vsel %vm418, %v2273, 0.0
    %2292 = vadd.xlane.f32.xlu0 %v2291
    %v2293 = vpop.xlane.xlu0 %2292
    %v2294 = vsel %vm418, %v2274, 0.0
    %2295 = vadd.xlane.f32.xlu0 %v2294
    %v2296 = vpop.xlane.xlu0 %2295
    %v2297 = vsel %vm418, %v2275, 0.0
    %2298 = vadd.xlane.f32.xlu0 %v2297
    %v2299 = vpop.xlane.xlu0 %2298
    %v2300 = vld [vmem:[#allocation4] sm:$0x1]
    %v2302 = vlaneseq
    %v2303 = vshrl.u32 %v2302, 7
    %v2304 = vsub.s32 0, %v2303
    %v2305 = vrot.slane %v2300, %v2304
    %2306 = vset.pattern.permute.xlu0 0
    %2307 = vperm.xlu0 %2306, %v2305
    %v2308 = vpop.permute.xlu0 %2307
    %v2310 = vadd.f32 %v2278, %v2308
    %v2311 = vadd.f32 %v2281, %v2308
    %v2312 = vadd.f32 %v2284, %v2308
    %v2313 = vadd.f32 %v2287, %v2308
    %v2314 = vadd.f32 %v2290, %v2308
    %v2315 = vadd.f32 %v2293, %v2308
    %v2316 = vadd.f32 %v2296, %v2308
    %v2317 = vadd.f32 %v2299, %v2308
    %v2318 = vxor.u32 %v2310, 2147483648
    %v2319 = vxor.u32 %v2311, 2147483648
    %v2320 = vxor.u32 %v2312, 2147483648
    %v2321 = vxor.u32 %v2313, 2147483648
    %v2322 = vxor.u32 %v2314, 2147483648
    %v2323 = vxor.u32 %v2315, 2147483648
    %v2324 = vxor.u32 %v2316, 2147483648
    %v2325 = vxor.u32 %v2317, 2147483648
    %v2326 = vmul.f32 %v2318, 1.442695
    %v2327 = vpow.pop %v2326
    %v2328 = vmul.f32 %v2319, 1.442695
    %v2329 = vpow.pop %v2328
    %v2330 = vmul.f32 %v2320, 1.442695
    %v2331 = vpow.pop %v2330
    %v2332 = vmul.f32 %v2321, 1.442695
    %v2333 = vpow.pop %v2332
    %v2334 = vmul.f32 %v2322, 1.442695
    %v2335 = vpow.pop %v2334
    %v2336 = vmul.f32 %v2323, 1.442695
    %v2337 = vpow.pop %v2336
    %v2338 = vmul.f32 %v2324, 1.442695
    %v2339 = vpow.pop %v2338
    %v2340 = vmul.f32 %v2325, 1.442695
    %v2341 = vpow.pop %v2340
    %v2342 = vadd.f32 %v2327, 1.0
    %v2343 = vadd.f32 %v2329, 1.0
    %v2344 = vadd.f32 %v2331, 1.0
    %v2345 = vadd.f32 %v2333, 1.0
    %v2346 = vadd.f32 %v2335, 1.0
    %v2347 = vadd.f32 %v2337, 1.0
    %v2348 = vadd.f32 %v2339, 1.0
    %v2349 = vadd.f32 %v2341, 1.0
    %v2350 = vrcp.pop %v2342
    %v2351 = vmul.f32 1.0, %v2350
    %v2352 = vrcp.pop %v2343
    %v2353 = vmul.f32 1.0, %v2352
    %v2354 = vrcp.pop %v2344
    %v2355 = vmul.f32 1.0, %v2354
    %v2356 = vrcp.pop %v2345
    %v2357 = vmul.f32 1.0, %v2356
    %v2358 = vrcp.pop %v2346
    %v2359 = vmul.f32 1.0, %v2358
    %v2360 = vrcp.pop %v2347
    %v2361 = vmul.f32 1.0, %v2360
    %v2362 = vrcp.pop %v2348
    %v2363 = vmul.f32 1.0, %v2362
    %v2364 = vrcp.pop %v2349
    %v2365 = vmul.f32 1.0, %v2364
    %v2374 = vlaneseq
    %v2375 = vand.u32 %v2374, 127
    %v2376 = vlaneseq
    %v2377 = vshrl.u32 %v2376, 7
    %v2378 = vsub.s32 %v2375, %v2377
    %v2379 = vrot.slane %v2351, %v2378
    %v2380 = vlaneseq
    %v2381 = vshrl.u32 %v2380, 7
    %v2382 = vsub.s32 %v2375, %v2381
    %v2383 = vrot.slane %v2353, %v2382
    %v2384 = vlaneseq
    %v2385 = vshrl.u32 %v2384, 7
    %v2386 = vsub.s32 %v2375, %v2385
    %v2387 = vrot.slane %v2355, %v2386
    %v2388 = vlaneseq
    %v2389 = vshrl.u32 %v2388, 7
    %v2390 = vsub.s32 %v2375, %v2389
    %v2391 = vrot.slane %v2357, %v2390
    %v2392 = vlaneseq
    %v2393 = vshrl.u32 %v2392, 7
    %v2394 = vsub.s32 %v2375, %v2393
    %v2395 = vrot.slane %v2359, %v2394
    %v2396 = vlaneseq
    %v2397 = vshrl.u32 %v2396, 7
    %v2398 = vsub.s32 %v2375, %v2397
    %v2399 = vrot.slane %v2361, %v2398
    %v2400 = vlaneseq
    %v2401 = vshrl.u32 %v2400, 7
    %v2402 = vsub.s32 %v2375, %v2401
    %v2403 = vrot.slane %v2363, %v2402
    %v2404 = vlaneseq
    %v2405 = vshrl.u32 %v2404, 7
    %v2406 = vsub.s32 %v2375, %v2405
    %v2407 = vrot.slane %v2365, %v2406
    %vm2408 = vcmask 1041409
    %v2409 = vsel %vm2408, %v2383, %v2379
    %vm2410 = vcmask 1042434
    %v2411 = vsel %vm2410, %v2387, %v2409
    %vm2412 = vcmask 1043459
    %v2413 = vsel %vm2412, %v2391, %v2411
    %vm2414 = vcmask 1044484
    %v2415 = vsel %vm2414, %v2395, %v2413
    %vm2416 = vcmask 1045509
    %v2417 = vsel %vm2416, %v2399, %v2415
    %vm2418 = vcmask 1046534
    %v2419 = vsel %vm2418, %v2403, %v2417
    %vm2420 = vcmask 1047559
    %v2421 = vsel %vm2420, %v2407, %v2419
    %2423 = vxpose.xlu0.b32.start [1/16] %v2421, 128
    %2424 = vxpose.xlu0.b32.cont [2/16] 0.0, 128
    %2425 = vxpose.xlu0.b32.cont [3/16] 0.0, 128
    %2426 = vxpose.xlu0.b32.cont [4/16] 0.0, 128
    %2427 = vxpose.xlu0.b32.cont [5/16] 0.0, 128
    %2428 = vxpose.xlu0.b32.cont [6/16] 0.0, 128
    %2429 = vxpose.xlu0.b32.cont [7/16] 0.0, 128
    %2430 = vxpose.xlu0.b32.cont [8/16] 0.0, 128
    %2431 = vxpose.xlu0.b32.cont [9/16] 0.0, 128
    %2432 = vxpose.xlu0.b32.cont [10/16] 0.0, 128
    %2433 = vxpose.xlu0.b32.cont [11/16] 0.0, 128
    %2434 = vxpose.xlu0.b32.cont [12/16] 0.0, 128
    %2435 = vxpose.xlu0.b32.cont [13/16] 0.0, 128
    %2436 = vxpose.xlu0.b32.cont [14/16] 0.0, 128
    %2437 = vxpose.xlu0.b32.cont [15/16] 0.0, 128
    %2438 = vxpose.xlu0.b32.end [16/16] 0.0, 128
    %v2439 = vpop.trf.xlu0
    %v2440 = vpop.trf.xlu0
    %v2441 = vpop.trf.xlu0
    %v2442 = vpop.trf.xlu0
    %v2443 = vpop.trf.xlu0
    %v2444 = vpop.trf.xlu0
    %v2445 = vpop.trf.xlu0
    %v2446 = vpop.trf.xlu0
    %v2447 = vpop.trf.xlu0
    %v2448 = vpop.trf.xlu0
    %v2449 = vpop.trf.xlu0
    %v2450 = vpop.trf.xlu0
    %v2451 = vpop.trf.xlu0
    %v2452 = vpop.trf.xlu0
    %v2453 = vpop.trf.xlu0
    %v2454 = vpop.trf.xlu0
    %vm2455 = vcmask 64512
    %2456 = vst.msk [vmem:[#allocation5] sm:$0xff] %vm2455, %v2439
    // Predicated region
    $region50: #{combined_video_rnn_forward.1} parent=1 // pred_check
      _
    $region51: #{combined_video_rnn_forward.1} parent=1 // pred_check_branch
      %2458 = sbr.rel (0) target = $region53
    $region52: #{combined_video_rnn_forward.1} parent=1 // pred_region
      %s2460 = ssub.s32 128, 128
      %2461 = vsyncadd [#allocation6], %s2460
      %s2463 = sshll.u32 [#allocation5], 4
      %s2464 = int_to_ptr.vmem [resolvable:$true] %s2463
      %2466 = dma.vmem_to_hbm [thread:$0]  %s2464, 128, %s12, [#allocation6]
    $region53: #{combined_video_rnn_forward.1} parent=1 // pred_fallthru
      _
    // Predicated region
    $region54: #{combined_video_rnn_forward.1} parent=1 // pred_check
      _
    $region55: #{combined_video_rnn_forward.1} parent=1 // pred_check_branch
      %2468 = sbr.rel (0) target = $region57
    $region56: #{combined_video_rnn_forward.1} parent=1 // pred_region
      %2469 = dma.done [#allocation6], 128
    $region57: #{combined_video_rnn_forward.1} parent=1 // pred_fallthru
      _
    %2470 = vsyncpa [#allocation6], 1

</llo_original>
